<compile_context>
chip_gen: v6e
topology: v6e:2x2x1
jax: 0.10.0
libtpu: 0.0.40
codegen_flags: <defaults>
</compile_context>

<pallas_src>
import functools
import math

import jax
import jax.numpy as jnp
from jax.experimental import pallas as pl
from jax.experimental.pallas import tpu as pltpu

EPS = 1e-5           # BatchNorm eps (PyTorch default)
_BF16 = jnp.bfloat16


def _round_up(x, m):
    return (x + m - 1) // m * m


def _cdiv(a, b):
    return -(-a // b)


def _tpu_vmem_capacity():
    """Physical VMEM capacity (conservative 64 MiB default if query fails)."""
    cap = 64 * 1024 * 1024
    try:
        cap = int(pltpu.get_tpu_info().vmem_capacity_bytes)
    except Exception:
        pass
    return cap


def _vmem_limit_bytes():
    """Generation-aware scoped VMEM limit (~48 MiB on v7x, 96 MiB on v5e/v6e)."""
    cap = _tpu_vmem_capacity()
    return int(min(96 * 1024 * 1024, max(32 * 1024 * 1024, cap - 16 * 1024 * 1024)))


def _compiler_params():
    return pltpu.CompilerParams(
        dimension_semantics=("parallel",),
        vmem_limit_bytes=_vmem_limit_bytes())


def _pick_tm(M):
    """M-tile: multiple of 16 (bf16), chip-aware target, >=2 grid steps when large."""
    target = 1024 if _tpu_vmem_capacity() >= (100 << 20) else 512
    tm = min(target, _round_up(M, 16))
    if M > 256 and _cdiv(M, tm) < 2:          # give v7x's second core something to do
        tm = _round_up(_cdiv(M, 2), 16)
    return tm


# ----------------------------------------------------------------------------
# 1x1 conv kernels: single step over K, weight resident in VMEM, fused BN
# (+ residual) (+ ReLU).  No accumulator scratch, no init/finalize.
# ----------------------------------------------------------------------------
def _mm_bn_kernel(p_ref, w_ref, s_ref, b_ref, o_ref, *, relu):
    y = jnp.dot(p_ref[...], w_ref[...], preferred_element_type=jnp.float32)
    y = y * s_ref[...] + b_ref[...]
    if relu:
        y = jnp.maximum(y, 0.0)
    o_ref[...] = y.astype(o_ref.dtype)


def _mm_bn_res_kernel(p_ref, w_ref, s_ref, b_ref, r_ref, o_ref, *, relu):
    y = jnp.dot(p_ref[...], w_ref[...], preferred_element_type=jnp.float32)
    y = y * s_ref[...] + b_ref[...] + r_ref[...].astype(jnp.float32)
    if relu:
        y = jnp.maximum(y, 0.0)
    o_ref[...] = y.astype(o_ref.dtype)


def conv1x1_bn(x, w, bn_scale, bn_bias, *, stride=1, relu=True,
               residual=None, out_dtype=_BF16):
    """1x1 conv (no bias) + frozen BN (+ residual) (+ ReLU).

    x: [N,H,W,Cin] NHWC (any float dtype, cast to bf16)
    w: [Cout,Cin,1,1] (PyTorch layout)
    residual: NHWC [N,OH,OW,Cout] (or None)
    """
    if stride > 1:
        x = x[:, ::stride, ::stride, :]
    N, OH, OW, Cin = x.shape
    Cout = w.shape[0]
    M = N * OH * OW

    patches = x.reshape(M, Cin).astype(_BF16)
    wmat = jnp.transpose(w, (2, 3, 1, 0)).reshape(Cin, Cout).astype(_BF16)
    s2 = bn_scale.reshape(1, Cout).astype(jnp.float32)
    b2 = bn_bias.reshape(1, Cout).astype(jnp.float32)

    tm = _pick_tm(M)
    Mp = _round_up(M, tm)
    if Mp != M:
        patches = jnp.pad(patches, ((0, Mp - M), (0, 0)))

    in_specs = [
        pl.BlockSpec((tm, Cin), lambda i: (i, 0)),      # activation tile (streamed)
        pl.BlockSpec((Cin, Cout), lambda i: (0, 0)),    # weight, VMEM-resident
        pl.BlockSpec((1, Cout), lambda i: (0, 0)),      # BN scale
        pl.BlockSpec((1, Cout), lambda i: (0, 0)),      # BN bias
    ]
    args = [patches, wmat, s2, b2]

    if residual is not None:
        r = residual.reshape(M, Cout).astype(_BF16)     # residual streamed as bf16
        if Mp != M:
            r = jnp.pad(r, ((0, Mp - M), (0, 0)))
        in_specs.append(pl.BlockSpec((tm, Cout), lambda i: (i, 0)))
        args.append(r)
        kern = functools.partial(_mm_bn_res_kernel, relu=relu)
    else:
        kern = functools.partial(_mm_bn_kernel, relu=relu)

    out = pl.pallas_call(
        kern,
        out_shape=jax.ShapeDtypeStruct((Mp, Cout), out_dtype),
        grid=(Mp // tm,),
        in_specs=in_specs,
        out_specs=pl.BlockSpec((tm, Cout), lambda i: (i, 0)),
        compiler_params=_compiler_params(),
    )(*args)

    if Mp != M:
        out = out[:M]
    return out.reshape(N, OH, OW, Cout)


# ----------------------------------------------------------------------------
# 3x3 conv kernel (padding=1, stride 1 or 2): im2col-free.
# Per grid step: one row-group window of the padded input (bf16, DMA-pipelined
# by BlockSpec), 9 tap matmuls against a VMEM-resident (9,Cin,Cout) weight,
# fused BN + ReLU, lane-dense (toh*OW, Cout) store.
# ----------------------------------------------------------------------------
def _conv3x3_bn_kernel(xw_ref, w_ref, s_ref, b_ref, o_ref, *, taps, toh, ow, cin, relu):
    m = toh * ow
    acc = jnp.zeros((m, w_ref.shape[-1]), jnp.float32)
    for kh in range(3):
        for kw in range(3):
            win = taps(xw_ref, kh, kw)                       # (toh, ow, cin) bf16
            acc = acc + jnp.dot(win.reshape(m, cin), w_ref[kh * 3 + kw],
                                preferred_element_type=jnp.float32)
    y = acc * s_ref[...] + b_ref[...]
    if relu:
        y = jnp.maximum(y, 0.0)
    o_ref[...] = y.astype(o_ref.dtype)


def conv3x3_bn(x, w, bn_scale, bn_bias, *, stride, relu=True, out_dtype=_BF16):
    """3x3 conv (padding=1, stride in {1,2}) + frozen BN (+ ReLU), no 9x im2col."""
    assert stride in (1, 2)
    N, H, W, Cin = x.shape
    Cout = w.shape[0]
    OH = (H + 2 - 3) // stride + 1
    OW = (W + 2 - 3) // stride + 1

    x = x.astype(_BF16)
    w9 = jnp.transpose(w, (2, 3, 1, 0)).reshape(9, Cin, Cout).astype(_BF16)
    s2 = bn_scale.reshape(1, Cout).astype(jnp.float32)
    b2 = bn_bias.reshape(1, Cout).astype(jnp.float32)

    # Output rows per grid step (bigger on v5e/v6e, smaller on v7x's 64 MiB VMEM).
    row_target = 1024 if _tpu_vmem_capacity() >= (100 << 20) else 512
    toh = min(OH, max(1, row_target // max(OW, 1)))
    n_r = _cdiv(OH, toh)

    if stride == 1:
        # Padded input (halo of 1 on each side, extra bottom rows for row groups).
        Hp = n_r * toh + 2
        Wp = W + 2
        xp = jnp.pad(x, ((0, 0), (1, Hp - H - 1), (1, 1), (0, 0)))
        # Overlapping row groups: (N*n_r, toh+2, Wp, Cin)  (~(toh+2)/toh copy)
        xg = jnp.stack([xp[:, r * toh: r * toh + toh + 2] for r in range(n_r)],
                       axis=1).reshape(N * n_r, toh + 2, Wp, Cin)
        x_spec = pl.BlockSpec((None, toh + 2, Wp, Cin), lambda s: (s, 0, 0, 0))

        def taps(ref, kh, kw):
            return ref[kh:kh + toh, kw:kw + OW, :]
    else:
        # stride 2: split H and W into even/odd phases so every tap read is a
        # static contiguous slice (no strided VMEM access).
        Hp2 = 2 * n_r * toh + 2               # even, >= H + 2
        Wp2 = 2 * OW + 2                      # even, >= W + 2
        xp = jnp.pad(x, ((0, 0), (1, Hp2 - H - 1), (1, Wp2 - W - 1), (0, 0)))
        # [n, hh, ph, j, pw, c] = xp[n, 2*hh+ph, 2*j+pw, c]
        xp2 = xp.reshape(N, Hp2 // 2, 2, OW + 1, 2, Cin)
        xg = jnp.stack([xp2[:, r * toh: r * toh + toh + 1] for r in range(n_r)],
                       axis=1)                                # (N,n_r,toh+1,2,OW+1,2,C)
        xg = jnp.transpose(xg, (0, 1, 2, 3, 5, 4, 6))          # -> (...,2,2,OW+1,C)
        xg = xg.reshape(N * n_r, toh + 1, 2, 2, OW + 1, Cin)
        x_spec = pl.BlockSpec((None, toh + 1, 2, 2, OW + 1, Cin),
                              lambda s: (s, 0, 0, 0, 0, 0))

        def taps(ref, kh, kw):
            return ref[kh // 2: kh // 2 + toh, kh % 2, kw % 2,
                       kw // 2: kw // 2 + OW, :]

    kern = functools.partial(_conv3x3_bn_kernel, taps=taps, toh=toh, ow=OW,
                             cin=Cin, relu=relu)

    out = pl.pallas_call(
        kern,
        out_shape=jax.ShapeDtypeStruct((N * n_r, toh * OW, Cout), out_dtype),
        grid=(N * n_r,),
        in_specs=[
            x_spec,
            pl.BlockSpec((9, Cin, Cout), lambda s: (0, 0, 0)),   # resident weight
            pl.BlockSpec((1, Cout), lambda s: (0, 0)),           # BN scale
            pl.BlockSpec((1, Cout), lambda s: (0, 0)),           # BN bias
        ],
        out_specs=pl.BlockSpec((None, toh * OW, Cout), lambda s: (s, 0, 0)),
        compiler_params=_compiler_params(),
    )(xg, w9, s2, b2)

    out = out.reshape(N, n_r * toh, OW, Cout)
    if n_r * toh != OH:
        out = out[:, :OH]
    return out


# ----------------------------------------------------------------------------
# Parameter init (deterministic; BN folded as eval/frozen with fresh init)
# ----------------------------------------------------------------------------
def _conv_weight(key, cin, cout, k):
    # m.weight.data.normal_(0, sqrt(2.0 / n)), n = k*k*out_channels
    n = k * k * cout
    return jax.random.normal(key, (cout, cin, k, k), dtype=jnp.float32) * math.sqrt(2.0 / n)


def _fold_bn(c):
    # gamma=1, beta=0, running_mean=0, running_var=1 (fresh init), eval/frozen mode
    gamma = jnp.ones((c,), jnp.float32)
    beta = jnp.zeros((c,), jnp.float32)
    mean = jnp.zeros((c,), jnp.float32)
    var = jnp.ones((c,), jnp.float32)
    scale = gamma / jnp.sqrt(var + EPS)
    bias = beta - mean * scale
    return scale, bias


def init_bottleneck_params(key, inplanes, planes, stride=1, expansion=4):
    k1, k2, k3, k4 = jax.random.split(key, 4)
    p = {"stride": stride}
    p["w1"] = _conv_weight(k1, inplanes, planes, 1)
    p["s1"], p["b1"] = _fold_bn(planes)
    p["w2"] = _conv_weight(k2, planes, planes, 3)
    p["s2"], p["b2"] = _fold_bn(planes)
    p["w3"] = _conv_weight(k3, planes, planes * expansion, 1)
    p["s3"], p["b3"] = _fold_bn(planes * expansion)
    if stride != 1 or inplanes != planes * expansion:
        # downsample = 1x1 conv (stride) + BN, as built by ResNet._make_layer
        p["wd"] = _conv_weight(k4, inplanes, planes * expansion, 1)
        p["sd"], p["bd"] = _fold_bn(planes * expansion)
    return p


# ----------------------------------------------------------------------------
# Forward: matches Bottleneck.forward (bf16 MXU / intermediate activations,
# f32 accumulation; results differ from f32 PyTorch at ~bf16 relative error).
# ----------------------------------------------------------------------------
def bottleneck_forward(params, x_nchw):
    x = jnp.transpose(x_nchw, (0, 2, 3, 1)).astype(_BF16)     # NCHW -> NHWC, bf16
    stride = params["stride"]

    out = conv1x1_bn(x, params["w1"], params["s1"], params["b1"],
                     relu=True)                                # conv1 1x1 + bn1 + relu
    out = conv3x3_bn(out, params["w2"], params["s2"], params["b2"],
                     stride=stride, relu=True)                 # conv2 3x3 + bn2 + relu
    if "wd" in params:
        identity = conv1x1_bn(x, params["wd"], params["sd"], params["bd"],
                              stride=stride, relu=False)       # downsample
    else:
        identity = x
    # conv3 1x1 + bn3 + residual add + relu, all fused in one Pallas kernel
    out = conv1x1_bn(out, params["w3"], params["s3"], params["b3"],
                     relu=True, residual=identity, out_dtype=jnp.float32)

    return jnp.transpose(out, (0, 3, 1, 2))                    # NHWC -> NCHW


if __name__ == "__main__":
    key = jax.random.PRNGKey(0)
    kp1, kp2, kx = jax.random.split(key, 3)

    # Small NCHW input.
    N, Cin, H, W = 2, 64, 16, 16
    planes = 32
    x = jax.random.normal(kx, (N, Cin, H, W), dtype=jnp.float32)

    # Block with stride=2 and a 1x1 downsample on the skip path
    # (exercises conv1/conv2/conv3 + downsample, strided 3x3 and strided 1x1).
    blk_down = init_bottleneck_params(kp1, inplanes=Cin, planes=planes, stride=2)
    fwd_down = jax.jit(functools.partial(bottleneck_forward, blk_down))
    y = fwd_down(x)
    assert y.shape == (N, planes * 4, H // 2, W // 2)

    # Block with identity skip (inplanes == planes*expansion, stride=1).
    blk_id = init_bottleneck_params(kp2, inplanes=planes * 4, planes=planes, stride=1)
    fwd_id = jax.jit(functools.partial(bottleneck_forward, blk_id))
    z = fwd_id(y)
    assert z.shape == y.shape

    jax.block_until_ready((y, z))
    print("KERNEL_OK")
</pallas_src>

<mosaic_0001>
module attributes {stable_mosaic.version = 11 : i64} {
  func.func @_mm_bn_kernel(%arg0: i32, %arg1: memref<256x64xbf16, #tpu.memory_space<vmem>>, %arg2: memref<64x32xbf16, #tpu.memory_space<vmem>>, %arg3: memref<1x32xf32, #tpu.memory_space<vmem>>, %arg4: memref<1x32xf32, #tpu.memory_space<vmem>>, %arg5: memref<256x32xbf16, #tpu.memory_space<vmem>>) attributes {dimension_semantics = [#tpu.dimension_semantics<parallel>], iteration_bounds = array<i64: 2>, scalar_prefetch = 0 : i64, scratch_operands = 0 : i64, tpu.core_type = #tpu.core_type<tc>, window_params = [{transform_indices = @transform_0, window_bounds = array<i64: 256, 64>}, {pipeline_mode = #tpu.pipeline_mode<synchronous>, transform_indices = @transform_1, window_bounds = array<i64: 64, 32>}, {pipeline_mode = #tpu.pipeline_mode<synchronous>, transform_indices = @transform_2, window_bounds = array<i64: 1, 32>}, {pipeline_mode = #tpu.pipeline_mode<synchronous>, transform_indices = @transform_3, window_bounds = array<i64: 1, 32>}, {transform_indices = @transform_4, window_bounds = array<i64: 256, 32>}]} {
    %c0 = arith.constant 0 : index
    %c0_0 = arith.constant 0 : index
    %0 = vector.load %arg1[%c0, %c0_0] : memref<256x64xbf16, #tpu.memory_space<vmem>>, vector<256x64xbf16>
    %c0_1 = arith.constant 0 : index
    %c0_2 = arith.constant 0 : index
    %1 = vector.load %arg2[%c0_1, %c0_2] : memref<64x32xbf16, #tpu.memory_space<vmem>>, vector<64x32xbf16>
    %cst = arith.constant dense<0.000000e+00> : vector<256x32xf32>
    %2 = tpu.matmul %0, %1, %cst {dimension_numbers = #tpu.dot_dimension_numbers<[1], [0], [0], [1], [0, 0, 1, 1], [], []>} : vector<256x64xbf16>, vector<64x32xbf16>, vector<256x32xf32> -> vector<256x32xf32>
    %c0_3 = arith.constant 0 : index
    %c0_4 = arith.constant 0 : index
    %3 = vector.load %arg3[%c0_3, %c0_4] : memref<1x32xf32, #tpu.memory_space<vmem>>, vector<1x32xf32>
    %4 = vector.broadcast %3 : vector<1x32xf32> to vector<256x32xf32>
    %5 = arith.mulf %2, %4 : vector<256x32xf32>
    %c0_5 = arith.constant 0 : index
    %c0_6 = arith.constant 0 : index
    %6 = vector.load %arg4[%c0_5, %c0_6] : memref<1x32xf32, #tpu.memory_space<vmem>>, vector<1x32xf32>
    %7 = vector.broadcast %6 : vector<1x32xf32> to vector<256x32xf32>
    %8 = arith.addf %5, %7 : vector<256x32xf32>
    %cst_7 = arith.constant 0.000000e+00 : f32
    %9 = vector.broadcast %cst_7 : f32 to vector<256x32xf32>
    %10 = arith.maximumf %8, %9 : vector<256x32xf32>
    %11 = arith.truncf %10 : vector<256x32xf32> to vector<256x32xbf16>
    %c0_8 = arith.constant 0 : index
    %c0_9 = arith.constant 0 : index
    %12 = vector.load %arg5[%c0_8, %c0_9] : memref<256x32xbf16, #tpu.memory_space<vmem>>, vector<256x32xbf16>
    tpu.vector_store %arg5[%c0_8, %c0_9], %11 {strides = array<i32>} : memref<256x32xbf16, #tpu.memory_space<vmem>>, vector<256x32xbf16>,
    return
  }
  func.func @transform_0(%arg0: i32) -> (i32, i32) {
    %c0_i32 = arith.constant 0 : i32
    %c0_i32_0 = arith.constant 0 : i32
    return %arg0, %c0_i32 : i32, i32
  }
  func.func @transform_1(%arg0: i32) -> (i32, i32) {
    %c0_i32 = arith.constant 0 : i32
    %c0_i32_0 = arith.constant 0 : i32
    %c0_i32_1 = arith.constant 0 : i32
    return %c0_i32, %c0_i32_0 : i32, i32
  }
  func.func @transform_2(%arg0: i32) -> (i32, i32) {
    %c0_i32 = arith.constant 0 : i32
    %c0_i32_0 = arith.constant 0 : i32
    %c0_i32_1 = arith.constant 0 : i32
    return %c0_i32, %c0_i32_0 : i32, i32
  }
  func.func @transform_3(%arg0: i32) -> (i32, i32) {
    %c0_i32 = arith.constant 0 : i32
    %c0_i32_0 = arith.constant 0 : i32
    %c0_i32_1 = arith.constant 0 : i32
    return %c0_i32, %c0_i32_0 : i32, i32
  }
  func.func @transform_4(%arg0: i32) -> (i32, i32) {
    %c0_i32 = arith.constant 0 : i32
    %c0_i32_0 = arith.constant 0 : i32
    return %arg0, %c0_i32 : i32, i32
  }
}

module attributes {stable_mosaic.version = 11 : i64} {
  func.func @_conv3x3_bn_kernel(%arg0: i32, %arg1: memref<1x9x2x2x9x32xbf16, #tpu.memory_space<vmem>>, %arg2: memref<9x32x32xbf16, #tpu.memory_space<vmem>>, %arg3: memref<1x32xf32, #tpu.memory_space<vmem>>, %arg4: memref<1x32xf32, #tpu.memory_space<vmem>>, %arg5: memref<1x64x32xbf16, #tpu.memory_space<vmem>>) attributes {dimension_semantics = [#tpu.dimension_semantics<parallel>], iteration_bounds = array<i64: 2>, scalar_prefetch = 0 : i64, scratch_operands = 0 : i64, tpu.core_type = #tpu.core_type<tc>, window_params = [{transform_indices = @transform_0, window_bounds = array<i64: 1, 9, 2, 2, 9, 32>}, {pipeline_mode = #tpu.pipeline_mode<synchronous>, transform_indices = @transform_1, window_bounds = array<i64: 9, 32, 32>}, {pipeline_mode = #tpu.pipeline_mode<synchronous>, transform_indices = @transform_2, window_bounds = array<i64: 1, 32>}, {pipeline_mode = #tpu.pipeline_mode<synchronous>, transform_indices = @transform_3, window_bounds = array<i64: 1, 32>}, {transform_indices = @transform_4, window_bounds = array<i64: 1, 64, 32>}]} {
    %cst = arith.constant 0.000000e+00 : f32
    %0 = vector.broadcast %cst : f32 to vector<64x32xf32>
    %c0 = arith.constant 0 : index
    %c0_0 = arith.constant 0 : index
    %c0_1 = arith.constant 0 : index
    %c0_2 = arith.constant 0 : index
    %c0_3 = arith.constant 0 : index
    %c0_4 = arith.constant 0 : index
    %1 = vector.load %arg1[%c0, %c0_0, %c0_1, %c0_2, %c0_3, %c0_4] : memref<1x9x2x2x9x32xbf16, #tpu.memory_space<vmem>>, vector<1x8x1x1x8x32xbf16>
    %2 = vector.shape_cast %1 : vector<1x8x1x1x8x32xbf16> to vector<8x8x32xbf16>
    %3 = vector.shape_cast %2 : vector<8x8x32xbf16> to vector<64x32xbf16>
    %c0_5 = arith.constant 0 : index
    %c0_6 = arith.constant 0 : index
    %c0_7 = arith.constant 0 : index
    %4 = vector.load %arg2[%c0_5, %c0_6, %c0_7] : memref<9x32x32xbf16, #tpu.memory_space<vmem>>, vector<1x32x32xbf16>
    %5 = vector.shape_cast %4 : vector<1x32x32xbf16> to vector<32x32xbf16>
    %cst_8 = arith.constant dense<0.000000e+00> : vector<64x32xf32>
    %6 = tpu.matmul %3, %5, %cst_8 {dimension_numbers = #tpu.dot_dimension_numbers<[1], [0], [0], [1], [0, 0, 1, 1], [], []>} : vector<64x32xbf16>, vector<32x32xbf16>, vector<64x32xf32> -> vector<64x32xf32>
    %7 = arith.addf %0, %6 : vector<64x32xf32>
    %c0_9 = arith.constant 0 : index
    %c0_10 = arith.constant 0 : index
    %c0_11 = arith.constant 0 : index
    %c1 = arith.constant 1 : index
    %c0_12 = arith.constant 0 : index
    %c0_13 = arith.constant 0 : index
    %8 = vector.load %arg1[%c0_9, %c0_10, %c0_11, %c1, %c0_12, %c0_13] : memref<1x9x2x2x9x32xbf16, #tpu.memory_space<vmem>>, vector<1x8x1x1x8x32xbf16>
    %9 = vector.shape_cast %8 : vector<1x8x1x1x8x32xbf16> to vector<8x8x32xbf16>
    %10 = vector.shape_cast %9 : vector<8x8x32xbf16> to vector<64x32xbf16>
    %c1_14 = arith.constant 1 : index
    %c0_15 = arith.constant 0 : index
    %c0_16 = arith.constant 0 : index
    %11 = vector.load %arg2[%c1_14, %c0_15, %c0_16] : memref<9x32x32xbf16, #tpu.memory_space<vmem>>, vector<1x32x32xbf16>
    %12 = vector.shape_cast %11 : vector<1x32x32xbf16> to vector<32x32xbf16>
    %cst_17 = arith.constant dense<0.000000e+00> : vector<64x32xf32>
    %13 = tpu.matmul %10, %12, %cst_17 {dimension_numbers = #tpu.dot_dimension_numbers<[1], [0], [0], [1], [0, 0, 1, 1], [], []>} : vector<64x32xbf16>, vector<32x32xbf16>, vector<64x32xf32> -> vector<64x32xf32>
    %14 = arith.addf %7, %13 : vector<64x32xf32>
    %c0_18 = arith.constant 0 : index
    %c0_19 = arith.constant 0 : index
    %c0_20 = arith.constant 0 : index
    %c0_21 = arith.constant 0 : index
    %c1_22 = arith.constant 1 : index
    %c0_23 = arith.constant 0 : index
    %15 = vector.load %arg1[%c0_18, %c0_19, %c0_20, %c0_21, %c1_22, %c0_23] : memref<1x9x2x2x9x32xbf16, #tpu.memory_space<vmem>>, vector<1x8x1x1x8x32xbf16>
    %16 = vector.shape_cast %15 : vector<1x8x1x1x8x32xbf16> to vector<8x8x32xbf16>
    %17 = vector.shape_cast %16 : vector<8x8x32xbf16> to vector<64x32xbf16>
    %c2 = arith.constant 2 : index
    %c0_24 = arith.constant 0 : index
    %c0_25 = arith.constant 0 : index
    %18 = vector.load %arg2[%c2, %c0_24, %c0_25] : memref<9x32x32xbf16, #tpu.memory_space<vmem>>, vector<1x32x32xbf16>
    %19 = vector.shape_cast %18 : vector<1x32x32xbf16> to vector<32x32xbf16>
    %cst_26 = arith.constant dense<0.000000e+00> : vector<64x32xf32>
    %20 = tpu.matmul %17, %19, %cst_26 {dimension_numbers = #tpu.dot_dimension_numbers<[1], [0], [0], [1], [0, 0, 1, 1], [], []>} : vector<64x32xbf16>, vector<32x32xbf16>, vector<64x32xf32> -> vector<64x32xf32>
    %21 = arith.addf %14, %20 : vector<64x32xf32>
    %c0_27 = arith.constant 0 : index
    %c0_28 = arith.constant 0 : index
    %c1_29 = arith.constant 1 : index
    %c0_30 = arith.constant 0 : index
    %c0_31 = arith.constant 0 : index
    %c0_32 = arith.constant 0 : index
    %22 = vector.load %arg1[%c0_27, %c0_28, %c1_29, %c0_30, %c0_31, %c0_32] : memref<1x9x2x2x9x32xbf16, #tpu.memory_space<vmem>>, vector<1x8x1x1x8x32xbf16>
    %23 = vector.shape_cast %22 : vector<1x8x1x1x8x32xbf16> to vector<8x8x32xbf16>
    %24 = vector.shape_cast %23 : vector<8x8x32xbf16> to vector<64x32xbf16>
    %c3 = arith.constant 3 : index
    %c0_33 = arith.constant 0 : index
    %c0_34 = arith.constant 0 : index
    %25 = vector.load %arg2[%c3, %c0_33, %c0_34] : memref<9x32x32xbf16, #tpu.memory_space<vmem>>, vector<1x32x32xbf16>
    %26 = vector.shape_cast %25 : vector<1x32x32xbf16> to vector<32x32xbf16>
    %cst_35 = arith.constant dense<0.000000e+00> : vector<64x32xf32>
    %27 = tpu.matmul %24, %26, %cst_35 {dimension_numbers = #tpu.dot_dimension_numbers<[1], [0], [0], [1], [0, 0, 1, 1], [], []>} : vector<64x32xbf16>, vector<32x32xbf16>, vector<64x32xf32> -> vector<64x32xf32>
    %28 = arith.addf %21, %27 : vector<64x32xf32>
    %c0_36 = arith.constant 0 : index
    %c0_37 = arith.constant 0 : index
    %c1_38 = arith.constant 1 : index
    %c1_39 = arith.constant 1 : index
    %c0_40 = arith.constant 0 : index
    %c0_41 = arith.constant 0 : index
    %29 = vector.load %arg1[%c0_36, %c0_37, %c1_38, %c1_39, %c0_40, %c0_41] : memref<1x9x2x2x9x32xbf16, #tpu.memory_space<vmem>>, vector<1x8x1x1x8x32xbf16>
    %30 = vector.shape_cast %29 : vector<1x8x1x1x8x32xbf16> to vector<8x8x32xbf16>
    %31 = vector.shape_cast %30 : vector<8x8x32xbf16> to vector<64x32xbf16>
    %c4 = arith.constant 4 : index
    %c0_42 = arith.constant 0 : index
    %c0_43 = arith.constant 0 : index
    %32 = vector.load %arg2[%c4, %c0_42, %c0_43] : memref<9x32x32xbf16, #tpu.memory_space<vmem>>, vector<1x32x32xbf16>
    %33 = vector.shape_cast %32 : vector<1x32x32xbf16> to vector<32x32xbf16>
    %cst_44 = arith.constant dense<0.000000e+00> : vector<64x32xf32>
    %34 = tpu.matmul %31, %33, %cst_44 {dimension_numbers = #tpu.dot_dimension_numbers<[1], [0], [0], [1], [0, 0, 1, 1], [], []>} : vector<64x32xbf16>, vector<32x32xbf16>, vector<64x32xf32> -> vector<64x32xf32>
    %35 = arith.addf %28, %34 : vector<64x32xf32>
    %c0_45 = arith.constant 0 : index
    %c0_46 = arith.constant 0 : index
    %c1_47 = arith.constant 1 : index
    %c0_48 = arith.constant 0 : index
    %c1_49 = arith.constant 1 : index
    %c0_50 = arith.constant 0 : index
    %36 = vector.load %arg1[%c0_45, %c0_46, %c1_47, %c0_48, %c1_49, %c0_50] : memref<1x9x2x2x9x32xbf16, #tpu.memory_space<vmem>>, vector<1x8x1x1x8x32xbf16>
    %37 = vector.shape_cast %36 : vector<1x8x1x1x8x32xbf16> to vector<8x8x32xbf16>
    %38 = vector.shape_cast %37 : vector<8x8x32xbf16> to vector<64x32xbf16>
    %c5 = arith.constant 5 : index
    %c0_51 = arith.constant 0 : index
    %c0_52 = arith.constant 0 : index
    %39 = vector.load %arg2[%c5, %c0_51, %c0_52] : memref<9x32x32xbf16, #tpu.memory_space<vmem>>, vector<1x32x32xbf16>
    %40 = vector.shape_cast %39 : vector<1x32x32xbf16> to vector<32x32xbf16>
    %cst_53 = arith.constant dense<0.000000e+00> : vector<64x32xf32>
    %41 = tpu.matmul %38, %40, %cst_53 {dimension_numbers = #tpu.dot_dimension_numbers<[1], [0], [0], [1], [0, 0, 1, 1], [], []>} : vector<64x32xbf16>, vector<32x32xbf16>, vector<64x32xf32> -> vector<64x32xf32>
    %42 = arith.addf %35, %41 : vector<64x32xf32>
    %c0_54 = arith.constant 0 : index
    %c1_55 = arith.constant 1 : index
    %c0_56 = arith.constant 0 : index
    %c0_57 = arith.constant 0 : index
    %c0_58 = arith.constant 0 : index
    %c0_59 = arith.constant 0 : index
    %43 = vector.load %arg1[%c0_54, %c1_55, %c0_56, %c0_57, %c0_58, %c0_59] : memref<1x9x2x2x9x32xbf16, #tpu.memory_space<vmem>>, vector<1x8x1x1x8x32xbf16>
    %44 = vector.shape_cast %43 : vector<1x8x1x1x8x32xbf16> to vector<8x8x32xbf16>
    %45 = vector.shape_cast %44 : vector<8x8x32xbf16> to vector<64x32xbf16>
    %c6 = arith.constant 6 : index
    %c0_60 = arith.constant 0 : index
    %c0_61 = arith.constant 0 : index
    %46 = vector.load %arg2[%c6, %c0_60, %c0_61] : memref<9x32x32xbf16, #tpu.memory_space<vmem>>, vector<1x32x32xbf16>
    %47 = vector.shape_cast %46 : vector<1x32x32xbf16> to vector<32x32xbf16>
    %cst_62 = arith.constant dense<0.000000e+00> : vector<64x32xf32>
    %48 = tpu.matmul %45, %47, %cst_62 {dimension_numbers = #tpu.dot_dimension_numbers<[1], [0], [0], [1], [0, 0, 1, 1], [], []>} : vector<64x32xbf16>, vector<32x32xbf16>, vector<64x32xf32> -> vector<64x32xf32>
    %49 = arith.addf %42, %48 : vector<64x32xf32>
    %c0_63 = arith.constant 0 : index
    %c1_64 = arith.constant 1 : index
    %c0_65 = arith.constant 0 : index
    %c1_66 = arith.constant 1 : index
    %c0_67 = arith.constant 0 : index
    %c0_68 = arith.constant 0 : index
    %50 = vector.load %arg1[%c0_63, %c1_64, %c0_65, %c1_66, %c0_67, %c0_68] : memref<1x9x2x2x9x32xbf16, #tpu.memory_space<vmem>>, vector<1x8x1x1x8x32xbf16>
    %51 = vector.shape_cast %50 : vector<1x8x1x1x8x32xbf16> to vector<8x8x32xbf16>
    %52 = vector.shape_cast %51 : vector<8x8x32xbf16> to vector<64x32xbf16>
    %c7 = arith.constant 7 : index
    %c0_69 = arith.constant 0 : index
    %c0_70 = arith.constant 0 : index
    %53 = vector.load %arg2[%c7, %c0_69, %c0_70] : memref<9x32x32xbf16, #tpu.memory_space<vmem>>, vector<1x32x32xbf16>
    %54 = vector.shape_cast %53 : vector<1x32x32xbf16> to vector<32x32xbf16>
    %cst_71 = arith.constant dense<0.000000e+00> : vector<64x32xf32>
    %55 = tpu.matmul %52, %54, %cst_71 {dimension_numbers = #tpu.dot_dimension_numbers<[1], [0], [0], [1], [0, 0, 1, 1], [], []>} : vector<64x32xbf16>, vector<32x32xbf16>, vector<64x32xf32> -> vector<64x32xf32>
    %56 = arith.addf %49, %55 : vector<64x32xf32>
    %c0_72 = arith.constant 0 : index
    %c1_73 = arith.constant 1 : index
    %c0_74 = arith.constant 0 : index
    %c0_75 = arith.constant 0 : index
    %c1_76 = arith.constant 1 : index
    %c0_77 = arith.constant 0 : index
    %57 = vector.load %arg1[%c0_72, %c1_73, %c0_74, %c0_75, %c1_76, %c0_77] : memref<1x9x2x2x9x32xbf16, #tpu.memory_space<vmem>>, vector<1x8x1x1x8x32xbf16>
    %58 = vector.shape_cast %57 : vector<1x8x1x1x8x32xbf16> to vector<8x8x32xbf16>
    %59 = vector.shape_cast %58 : vector<8x8x32xbf16> to vector<64x32xbf16>
    %c8 = arith.constant 8 : index
    %c0_78 = arith.constant 0 : index
    %c0_79 = arith.constant 0 : index
    %60 = vector.load %arg2[%c8, %c0_78, %c0_79] : memref<9x32x32xbf16, #tpu.memory_space<vmem>>, vector<1x32x32xbf16>
    %61 = vector.shape_cast %60 : vector<1x32x32xbf16> to vector<32x32xbf16>
    %cst_80 = arith.constant dense<0.000000e+00> : vector<64x32xf32>
    %62 = tpu.matmul %59, %61, %cst_80 {dimension_numbers = #tpu.dot_dimension_numbers<[1], [0], [0], [1], [0, 0, 1, 1], [], []>} : vector<64x32xbf16>, vector<32x32xbf16>, vector<64x32xf32> -> vector<64x32xf32>
    %63 = arith.addf %56, %62 : vector<64x32xf32>
    %c0_81 = arith.constant 0 : index
    %c0_82 = arith.constant 0 : index
    %64 = vector.load %arg3[%c0_81, %c0_82] : memref<1x32xf32, #tpu.memory_space<vmem>>, vector<1x32xf32>
    %65 = vector.broadcast %64 : vector<1x32xf32> to vector<64x32xf32>
    %66 = arith.mulf %63, %65 : vector<64x32xf32>
    %c0_83 = arith.constant 0 : index
    %c0_84 = arith.constant 0 : index
    %67 = vector.load %arg4[%c0_83, %c0_84] : memref<1x32xf32, #tpu.memory_space<vmem>>, vector<1x32xf32>
    %68 = vector.broadcast %67 : vector<1x32xf32> to vector<64x32xf32>
    %69 = arith.addf %66, %68 : vector<64x32xf32>
    %cst_85 = arith.constant 0.000000e+00 : f32
    %70 = vector.broadcast %cst_85 : f32 to vector<64x32xf32>
    %71 = arith.maximumf %69, %70 : vector<64x32xf32>
    %72 = arith.truncf %71 : vector<64x32xf32> to vector<64x32xbf16>
    %c0_86 = arith.constant 0 : index
    %c0_87 = arith.constant 0 : index
    %c0_88 = arith.constant 0 : index
    %73 = vector.load %arg5[%c0_86, %c0_87, %c0_88] : memref<1x64x32xbf16, #tpu.memory_space<vmem>>, vector<1x64x32xbf16>
    %74 = vector.shape_cast %73 : vector<1x64x32xbf16> to vector<64x32xbf16>
    %75 = vector.shape_cast %72 : vector<64x32xbf16> to vector<1x64x32xbf16>
    tpu.vector_store %arg5[%c0_86, %c0_87, %c0_88], %75 {strides = array<i32>} : memref<1x64x32xbf16, #tpu.memory_space<vmem>>, vector<1x64x32xbf16>,
    return
  }
  func.func @transform_0(%arg0: i32) -> (i32, i32, i32, i32, i32, i32) {
    %c0_i32 = arith.constant 0 : i32
    %c0_i32_0 = arith.constant 0 : i32
    %c0_i32_1 = arith.constant 0 : i32
    %c0_i32_2 = arith.constant 0 : i32
    %c0_i32_3 = arith.constant 0 : i32
    %c0_i32_4 = arith.constant 0 : i32
    return %arg0, %c0_i32, %c0_i32_0, %c0_i32_1, %c0_i32_2, %c0_i32_3 : i32, i32, i32, i32, i32, i32
  }
  func.func @transform_1(%arg0: i32) -> (i32, i32, i32) {
    %c0_i32 = arith.constant 0 : i32
    %c0_i32_0 = arith.constant 0 : i32
    %c0_i32_1 = arith.constant 0 : i32
    %c0_i32_2 = arith.constant 0 : i32
    return %c0_i32, %c0_i32_0, %c0_i32_1 : i32, i32, i32
  }
  func.func @transform_2(%arg0: i32) -> (i32, i32) {
    %c0_i32 = arith.constant 0 : i32
    %c0_i32_0 = arith.constant 0 : i32
    %c0_i32_1 = arith.constant 0 : i32
    return %c0_i32, %c0_i32_0 : i32, i32
  }
  func.func @transform_3(%arg0: i32) -> (i32, i32) {
    %c0_i32 = arith.constant 0 : i32
    %c0_i32_0 = arith.constant 0 : i32
    %c0_i32_1 = arith.constant 0 : i32
    return %c0_i32, %c0_i32_0 : i32, i32
  }
  func.func @transform_4(%arg0: i32) -> (i32, i32, i32) {
    %c0_i32 = arith.constant 0 : i32
    %c0_i32_0 = arith.constant 0 : i32
    %c0_i32_1 = arith.constant 0 : i32
    return %arg0, %c0_i32, %c0_i32_0 : i32, i32, i32
  }
}

module attributes {stable_mosaic.version = 11 : i64} {
  func.func @_mm_bn_kernel(%arg0: i32, %arg1: memref<128x64xbf16, #tpu.memory_space<vmem>>, %arg2: memref<64x128xbf16, #tpu.memory_space<vmem>>, %arg3: memref<1x128xf32, #tpu.memory_space<vmem>>, %arg4: memref<1x128xf32, #tpu.memory_space<vmem>>, %arg5: memref<128x128xbf16, #tpu.memory_space<vmem>>) attributes {dimension_semantics = [#tpu.dimension_semantics<parallel>], iteration_bounds = array<i64: 1>, scalar_prefetch = 0 : i64, scratch_operands = 0 : i64, tpu.core_type = #tpu.core_type<tc>, window_params = [{transform_indices = @transform_0, window_bounds = array<i64: 128, 64>}, {pipeline_mode = #tpu.pipeline_mode<synchronous>, transform_indices = @transform_1, window_bounds = array<i64: 64, 128>}, {pipeline_mode = #tpu.pipeline_mode<synchronous>, transform_indices = @transform_2, window_bounds = array<i64: 1, 128>}, {pipeline_mode = #tpu.pipeline_mode<synchronous>, transform_indices = @transform_3, window_bounds = array<i64: 1, 128>}, {transform_indices = @transform_4, window_bounds = array<i64: 128, 128>}]} {
    %c0 = arith.constant 0 : index
    %c0_0 = arith.constant 0 : index
    %0 = vector.load %arg1[%c0, %c0_0] : memref<128x64xbf16, #tpu.memory_space<vmem>>, vector<128x64xbf16>
    %c0_1 = arith.constant 0 : index
    %c0_2 = arith.constant 0 : index
    %1 = vector.load %arg2[%c0_1, %c0_2] : memref<64x128xbf16, #tpu.memory_space<vmem>>, vector<64x128xbf16>
    %cst = arith.constant dense<0.000000e+00> : vector<128x128xf32>
    %2 = tpu.matmul %0, %1, %cst {dimension_numbers = #tpu.dot_dimension_numbers<[1], [0], [0], [1], [0, 0, 1, 1], [], []>} : vector<128x64xbf16>, vector<64x128xbf16>, vector<128x128xf32> -> vector<128x128xf32>
    %c0_3 = arith.constant 0 : index
    %c0_4 = arith.constant 0 : index
    %3 = vector.load %arg3[%c0_3, %c0_4] : memref<1x128xf32, #tpu.memory_space<vmem>>, vector<1x128xf32>
    %4 = vector.broadcast %3 : vector<1x128xf32> to vector<128x128xf32>
    %5 = arith.mulf %2, %4 : vector<128x128xf32>
    %c0_5 = arith.constant 0 : index
    %c0_6 = arith.constant 0 : index
    %6 = vector.load %arg4[%c0_5, %c0_6] : memref<1x128xf32, #tpu.memory_space<vmem>>, vector<1x128xf32>
    %7 = vector.broadcast %6 : vector<1x128xf32> to vector<128x128xf32>
    %8 = arith.addf %5, %7 : vector<128x128xf32>
    %9 = arith.truncf %8 : vector<128x128xf32> to vector<128x128xbf16>
    %c0_7 = arith.constant 0 : index
    %c0_8 = arith.constant 0 : index
    %10 = vector.load %arg5[%c0_7, %c0_8] : memref<128x128xbf16, #tpu.memory_space<vmem>>, vector<128x128xbf16>
    tpu.vector_store %arg5[%c0_7, %c0_8], %9 {strides = array<i32>} : memref<128x128xbf16, #tpu.memory_space<vmem>>, vector<128x128xbf16>,
    return
  }
  func.func @transform_0(%arg0: i32) -> (i32, i32) {
    %c0_i32 = arith.constant 0 : i32
    %c0_i32_0 = arith.constant 0 : i32
    return %arg0, %c0_i32 : i32, i32
  }
  func.func @transform_1(%arg0: i32) -> (i32, i32) {
    %c0_i32 = arith.constant 0 : i32
    %c0_i32_0 = arith.constant 0 : i32
    %c0_i32_1 = arith.constant 0 : i32
    return %c0_i32, %c0_i32_0 : i32, i32
  }
  func.func @transform_2(%arg0: i32) -> (i32, i32) {
    %c0_i32 = arith.constant 0 : i32
    %c0_i32_0 = arith.constant 0 : i32
    %c0_i32_1 = arith.constant 0 : i32
    return %c0_i32, %c0_i32_0 : i32, i32
  }
  func.func @transform_3(%arg0: i32) -> (i32, i32) {
    %c0_i32 = arith.constant 0 : i32
    %c0_i32_0 = arith.constant 0 : i32
    %c0_i32_1 = arith.constant 0 : i32
    return %c0_i32, %c0_i32_0 : i32, i32
  }
  func.func @transform_4(%arg0: i32) -> (i32, i32) {
    %c0_i32 = arith.constant 0 : i32
    %c0_i32_0 = arith.constant 0 : i32
    return %arg0, %c0_i32 : i32, i32
  }
}

module attributes {stable_mosaic.version = 11 : i64} {
  func.func @_mm_bn_res_kernel(%arg0: i32, %arg1: memref<128x32xbf16, #tpu.memory_space<vmem>>, %arg2: memref<32x128xbf16, #tpu.memory_space<vmem>>, %arg3: memref<1x128xf32, #tpu.memory_space<vmem>>, %arg4: memref<1x128xf32, #tpu.memory_space<vmem>>, %arg5: memref<128x128xbf16, #tpu.memory_space<vmem>>, %arg6: memref<128x128xf32, #tpu.memory_space<vmem>>) attributes {dimension_semantics = [#tpu.dimension_semantics<parallel>], iteration_bounds = array<i64: 1>, scalar_prefetch = 0 : i64, scratch_operands = 0 : i64, tpu.core_type = #tpu.core_type<tc>, window_params = [{transform_indices = @transform_0, window_bounds = array<i64: 128, 32>}, {pipeline_mode = #tpu.pipeline_mode<synchronous>, transform_indices = @transform_1, window_bounds = array<i64: 32, 128>}, {pipeline_mode = #tpu.pipeline_mode<synchronous>, transform_indices = @transform_2, window_bounds = array<i64: 1, 128>}, {pipeline_mode = #tpu.pipeline_mode<synchronous>, transform_indices = @transform_3, window_bounds = array<i64: 1, 128>}, {transform_indices = @transform_4, window_bounds = array<i64: 128, 128>}, {transform_indices = @transform_5, window_bounds = array<i64: 128, 128>}]} {
    %c0 = arith.constant 0 : index
    %c0_0 = arith.constant 0 : index
    %0 = vector.load %arg1[%c0, %c0_0] : memref<128x32xbf16, #tpu.memory_space<vmem>>, vector<128x32xbf16>
    %c0_1 = arith.constant 0 : index
    %c0_2 = arith.constant 0 : index
    %1 = vector.load %arg2[%c0_1, %c0_2] : memref<32x128xbf16, #tpu.memory_space<vmem>>, vector<32x128xbf16>
    %cst = arith.constant dense<0.000000e+00> : vector<128x128xf32>
    %2 = tpu.matmul %0, %1, %cst {dimension_numbers = #tpu.dot_dimension_numbers<[1], [0], [0], [1], [0, 0, 1, 1], [], []>} : vector<128x32xbf16>, vector<32x128xbf16>, vector<128x128xf32> -> vector<128x128xf32>
    %c0_3 = arith.constant 0 : index
    %c0_4 = arith.constant 0 : index
    %3 = vector.load %arg3[%c0_3, %c0_4] : memref<1x128xf32, #tpu.memory_space<vmem>>, vector<1x128xf32>
    %4 = vector.broadcast %3 : vector<1x128xf32> to vector<128x128xf32>
    %5 = arith.mulf %2, %4 : vector<128x128xf32>
    %c0_5 = arith.constant 0 : index
    %c0_6 = arith.constant 0 : index
    %6 = vector.load %arg4[%c0_5, %c0_6] : memref<1x128xf32, #tpu.memory_space<vmem>>, vector<1x128xf32>
    %7 = vector.broadcast %6 : vector<1x128xf32> to vector<128x128xf32>
    %8 = arith.addf %5, %7 : vector<128x128xf32>
    %c0_7 = arith.constant 0 : index
    %c0_8 = arith.constant 0 : index
    %9 = vector.load %arg5[%c0_7, %c0_8] : memref<128x128xbf16, #tpu.memory_space<vmem>>, vector<128x128xbf16>
    %10 = arith.extf %9 : vector<128x128xbf16> to vector<128x128xf32>
    %11 = arith.addf %8, %10 : vector<128x128xf32>
    %cst_9 = arith.constant 0.000000e+00 : f32
    %12 = vector.broadcast %cst_9 : f32 to vector<128x128xf32>
    %13 = arith.maximumf %11, %12 : vector<128x128xf32>
    %c0_10 = arith.constant 0 : index
    %c0_11 = arith.constant 0 : index
    %14 = vector.load %arg6[%c0_10, %c0_11] : memref<128x128xf32, #tpu.memory_space<vmem>>, vector<128x128xf32>
    tpu.vector_store %arg6[%c0_10, %c0_11], %13 {strides = array<i32>} : memref<128x128xf32, #tpu.memory_space<vmem>>, vector<128x128xf32>,
    return
  }
  func.func @transform_0(%arg0: i32) -> (i32, i32) {
    %c0_i32 = arith.constant 0 : i32
    %c0_i32_0 = arith.constant 0 : i32
    return %arg0, %c0_i32 : i32, i32
  }
  func.func @transform_1(%arg0: i32) -> (i32, i32) {
    %c0_i32 = arith.constant 0 : i32
    %c0_i32_0 = arith.constant 0 : i32
    %c0_i32_1 = arith.constant 0 : i32
    return %c0_i32, %c0_i32_0 : i32, i32
  }
  func.func @transform_2(%arg0: i32) -> (i32, i32) {
    %c0_i32 = arith.constant 0 : i32
    %c0_i32_0 = arith.constant 0 : i32
    %c0_i32_1 = arith.constant 0 : i32
    return %c0_i32, %c0_i32_0 : i32, i32
  }
  func.func @transform_3(%arg0: i32) -> (i32, i32) {
    %c0_i32 = arith.constant 0 : i32
    %c0_i32_0 = arith.constant 0 : i32
    %c0_i32_1 = arith.constant 0 : i32
    return %c0_i32, %c0_i32_0 : i32, i32
  }
  func.func @transform_4(%arg0: i32) -> (i32, i32) {
    %c0_i32 = arith.constant 0 : i32
    %c0_i32_0 = arith.constant 0 : i32
    return %arg0, %c0_i32 : i32, i32
  }
  func.func @transform_5(%arg0: i32) -> (i32, i32) {
    %c0_i32 = arith.constant 0 : i32
    %c0_i32_0 = arith.constant 0 : i32
    return %arg0, %c0_i32 : i32, i32
  }
}

</mosaic_0001>

<llo_original>
// kernel: bottleneck_forward.4
$region0: #{bottleneck_forward.4}
  #allocation0 [shape = 'u32[]', space=smem, size = 0x4, offset = 0x4, fixed_abs, tag = 'smem constant byte address 0x4 - core index']
  #allocation1 [shape = 'u32[144,128]{1,0:T(1,128)}', space=vmem, size = 0x12000, scoped, tag = 'internal scratch']
  %s0 = inlined_call_operand.vmem [shape: bf16[512,64], index: 0, kind: input, shape index: {}]
  %s1 = inlined_call_operand.vmem [shape: bf16[64,32], index: 1, kind: input, shape index: {}]
  %s2 = inlined_call_operand.vmem [shape: f32[1,32], index: 2, kind: input, shape index: {}]
  %s3 = inlined_call_operand.vmem [shape: f32[1,32], index: 3, kind: input, shape index: {}]
  %s4 = inlined_call_operand.vmem [shape: bf16[512,32], index: 4, kind: output, shape index: {}]
  %s5 = sld [smem:[#allocation0]]
  $region49: #{bottleneck_forward.4} parent=0
    _
  %s7 = ssub.s32 1, %s5
  %s8 = scalar_select 0, %s7, %s5
  loop: start=0, step=1, limit=4
  $region2: #{bottleneck_forward.4} parent=0 // loop_pre_header
    _
  $region3: #{bottleneck_forward.4} parent=0 // loop_header
    %s10 = sphi 0, %s14
    %p11 = scmp.ge.s32.totalorder %s10, 4
    %s20 = sphi 0, %s22
    %s23 = sphi 0, %s20
    %s24 = sphi 0, %s23
    %s40 = sphi 0, %s24
    %s44 = sphi 0, %s44
    %s46 = sphi 0, %s44
    %s47 = sphi 0, %s46
    %s61 = sphi 0, %s47
    %s65 = sphi 0, %s65
    %s67 = sphi 0, %s65
    %s68 = sphi 0, %s67
    %s82 = sphi 0, %s68
    %s86 = sphi 0, %s86
    %s88 = sphi 0, %s86
    %s89 = sphi 0, %s88
    %s103 = sphi 0, %s89
    %s109 = sphi 0, %s111
    %s112 = sphi 0, %s109
    %s113 = sphi 0, %s112
    %s129 = sphi 0, %s113
  $region4: #{bottleneck_forward.4} parent=0 // loop_header_branch
    %13 = sbr.rel (%p11) target = $region8
  $region5: #{bottleneck_forward.4} parent=0 // loop_body
    %s15 = ssub.s32 %s10, 1
    %s16 = ssub.s32 %s10, 2
    %s17 = sadd.s32 %s10, 1
    %s18 = ssub.s32 %s10, %s17
    %p19 = scmp.eq.s32.totalorder %s18, 0
    %s21 = sadd.s32 %s20, 1
    %s22 = scalar_select %p19, %s20, %s21
    %p25 = pneg %p19
    %p26 = scmp.eq.s32.totalorder %s10, 1
    %p27 = por %p25, %p26
    %p28 = scmp.ne.s32.totalorder %s20, %s23
    %p29 = scmp.eq.s32.totalorder %s10, 0
    %p30 = por %p28, %p29
    %p31 = scmp.ne.s32.totalorder %s20, %s23
    %p32 = scmp.eq.s32.totalorder %s15, 1
    %p33 = por %p31, %p32
    %p34 = scmp.ne.s32.totalorder %s23, %s24
    %p35 = scmp.eq.s32.totalorder %s15, 0
    %p36 = por %p34, %p35
    %p37 = scmp.ne.s32.totalorder %s23, %s24
    %p38 = scmp.eq.s32.totalorder %s16, 1
    %p39 = por %p37, %p38
    %p41 = scmp.ne.s32.totalorder %s24, %s40
    %p42 = scmp.eq.s32.totalorder %s16, 0
    %p43 = por %p41, %p42
    %s45 = sadd.s32 %s44, 1
    %p48 = scmp.eq.s32.totalorder %s10, 1
    %p49 = scmp.ne.s32.totalorder %s44, %s46
    %p50 = scmp.eq.s32.totalorder %s10, 0
    %p51 = por %p49, %p50
    %p52 = scmp.ne.s32.totalorder %s44, %s46
    %p53 = scmp.eq.s32.totalorder %s15, 1
    %p54 = por %p52, %p53
    %p55 = scmp.ne.s32.totalorder %s46, %s47
    %p56 = scmp.eq.s32.totalorder %s15, 0
    %p57 = por %p55, %p56
    %p58 = scmp.ne.s32.totalorder %s46, %s47
    %p59 = scmp.eq.s32.totalorder %s16, 1
    %p60 = por %p58, %p59
    %p62 = scmp.ne.s32.totalorder %s47, %s61
    %p63 = scmp.eq.s32.totalorder %s16, 0
    %p64 = por %p62, %p63
    %s66 = sadd.s32 %s65, 1
    %p69 = scmp.eq.s32.totalorder %s10, 1
    %p70 = scmp.ne.s32.totalorder %s65, %s67
    %p71 = scmp.eq.s32.totalorder %s10, 0
    %p72 = por %p70, %p71
    %p73 = scmp.ne.s32.totalorder %s65, %s67
    %p74 = scmp.eq.s32.totalorder %s15, 1
    %p75 = por %p73, %p74
    %p76 = scmp.ne.s32.totalorder %s67, %s68
    %p77 = scmp.eq.s32.totalorder %s15, 0
    %p78 = por %p76, %p77
    %p79 = scmp.ne.s32.totalorder %s67, %s68
    %p80 = scmp.eq.s32.totalorder %s16, 1
    %p81 = por %p79, %p80
    %p83 = scmp.ne.s32.totalorder %s68, %s82
    %p84 = scmp.eq.s32.totalorder %s16, 0
    %p85 = por %p83, %p84
    %s87 = sadd.s32 %s86, 1
    %p90 = scmp.eq.s32.totalorder %s10, 1
    %p91 = scmp.ne.s32.totalorder %s86, %s88
    %p92 = scmp.eq.s32.totalorder %s10, 0
    %p93 = por %p91, %p92
    %p94 = scmp.ne.s32.totalorder %s86, %s88
    %p95 = scmp.eq.s32.totalorder %s15, 1
    %p96 = por %p94, %p95
    %p97 = scmp.ne.s32.totalorder %s88, %s89
    %p98 = scmp.eq.s32.totalorder %s15, 0
    %p99 = por %p97, %p98
    %p100 = scmp.ne.s32.totalorder %s88, %s89
    %p101 = scmp.eq.s32.totalorder %s16, 1
    %p102 = por %p100, %p101
    %p104 = scmp.ne.s32.totalorder %s89, %s103
    %p105 = scmp.eq.s32.totalorder %s16, 0
    %p106 = por %p104, %p105
    %s107 = ssub.s32 %s10, %s17
    %p108 = scmp.eq.s32.totalorder %s107, 0
    %s110 = sadd.s32 %s109, 1
    %s111 = scalar_select %p108, %s109, %s110
    %p114 = pneg %p108
    %p115 = scmp.eq.s32.totalorder %s10, 1
    %p116 = por %p114, %p115
    %p117 = scmp.ne.s32.totalorder %s109, %s112
    %p118 = scmp.eq.s32.totalorder %s10, 0
    %p119 = por %p117, %p118
    %p120 = scmp.ne.s32.totalorder %s109, %s112
    %p121 = scmp.eq.s32.totalorder %s15, 1
    %p122 = por %p120, %p121
    %p123 = scmp.ne.s32.totalorder %s112, %s113
    %p124 = scmp.eq.s32.totalorder %s15, 0
    %p125 = por %p123, %p124
    %p126 = scmp.ne.s32.totalorder %s112, %s113
    %p127 = scmp.eq.s32.totalorder %s16, 1
    %p128 = por %p126, %p127
    %p130 = scmp.ne.s32.totalorder %s113, %s129
    %p131 = scmp.eq.s32.totalorder %s16, 0
    %p132 = por %p130, %p131
    %p133 = scmp.le.s32.totalorder 1, %s10
    %p134 = scmp.lt.s32.totalorder %s10, 3
    %p135 = pnand %p133, %p134
    %p136 = pneg %p135
    // Predicated region
    $region9: #{bottleneck_forward.4} parent=5 // pred_check
      _
    $region10: #{bottleneck_forward.4} parent=5 // pred_check_branch
      %138 = sbr.rel (%p135) target = $region12
    $region11: #{bottleneck_forward.4} parent=5 // pred_region
      %s139 = ssub.s32 %s10, 1
      // Predicated region
      $region13: #{bottleneck_forward.4} parent=11 // pred_check
        %p140 = pneg %p57
      $region14: #{bottleneck_forward.4} parent=11 // pred_check_branch
        %142 = sbr.rel (%p140) target = $region16
      $region15: #{bottleneck_forward.4} parent=11 // pred_region
        _
      $region16: #{bottleneck_forward.4} parent=11 // pred_fallthru
        _
      // Predicated region
      $region17: #{bottleneck_forward.4} parent=11 // pred_check
        %p143 = pneg %p78
      $region18: #{bottleneck_forward.4} parent=11 // pred_check_branch
        %145 = sbr.rel (%p143) target = $region20
      $region19: #{bottleneck_forward.4} parent=11 // pred_region
        _
      $region20: #{bottleneck_forward.4} parent=11 // pred_fallthru
        _
      // Predicated region
      $region21: #{bottleneck_forward.4} parent=11 // pred_check
        %p146 = pneg %p99
      $region22: #{bottleneck_forward.4} parent=11 // pred_check_branch
        %148 = sbr.rel (%p146) target = $region24
      $region23: #{bottleneck_forward.4} parent=11 // pred_region
        _
      $region24: #{bottleneck_forward.4} parent=11 // pred_fallthru
        _
    $region12: #{bottleneck_forward.4} parent=5 // pred_fallthru
      _
    %p149 = scmp.lt.s32.totalorder %s10, 2
    // Predicated region
    $region25: #{bottleneck_forward.4} parent=5 // pred_check
      %p150 = pneg %p149
    $region26: #{bottleneck_forward.4} parent=5 // pred_check_branch
      %152 = sbr.rel (%p150) target = $region28
    $region27: #{bottleneck_forward.4} parent=5 // pred_region
      // Predicated region
      $region29: #{bottleneck_forward.4} parent=27 // pred_check
        %p153 = pneg %p30
      $region30: #{bottleneck_forward.4} parent=27 // pred_check_branch
        %155 = sbr.rel (%p153) target = $region32
      $region31: #{bottleneck_forward.4} parent=27 // pred_region
        %s156 = smul.u32 32, %s10
        %p157 = scmp.lt.s32.totalorder %s156, 63
        %s158 = scalar_select %p157, %s156, 63
        %s159 = smul.addr %s158, 4
        %s160 = scalar_lea.vmem %s0, %s159
        %s161 = smul.u32 32, %s10
      $region32: #{bottleneck_forward.4} parent=27 // pred_fallthru
        _
    $region28: #{bottleneck_forward.4} parent=5 // pred_fallthru
      _
    %p162 = scmp.le.s32.totalorder 1, %s10
    %p163 = scmp.lt.s32.totalorder %s10, 3
    %p164 = pnand %p162, %p163
    %p165 = pneg %p164
    // Predicated region
    $region33: #{bottleneck_forward.4} parent=5 // pred_check
      _
    $region34: #{bottleneck_forward.4} parent=5 // pred_check_branch
      %167 = sbr.rel (%p164) target = $region36
    $region35: #{bottleneck_forward.4} parent=5 // pred_region
      %s168 = ssub.s32 %s10, 1
      %s169 = smul.u32 32, %s15
      %p170 = scmp.lt.s32.totalorder %s169, 63
      %s171 = scalar_select %p170, %s169, 63
      %s172 = smul.addr %s171, 4
      %s173 = scalar_lea.vmem %s0, %s172
      %p174 = pneg %p36
      %p175 = pneg %p33
      %p176 = pneg %p57
      %p177 = pneg %p54
      %p178 = pneg %p78
      %p179 = pneg %p75
      %p180 = pneg %p99
      %p181 = pneg %p96
      %p182 = pneg %p125
      %p183 = pneg %p122
      %s184 = smul.u32 32, %s15
      %p185 = scmp.lt.s32.totalorder %s184, 63
      %s186 = scalar_select %p185, %s184, 63
      %s187 = smul.addr %s186, 4
      %s188 = scalar_lea.vmem %s4, %s187
      %s189 = smul.u32 32, %s15
      %p190 = scmp.lt.s32.totalorder %s189, 63
      %s191 = scalar_select %p190, %s189, 63
      %s192 = smul.addr %s191, 4
      %s193 = scalar_lea.vmem %s0, %s192
      %s194 = smul.u32 32, %s15
      %s195 = smul.u32 32, %s15
      %p196 = scmp.lt.s32.totalorder %s195, 63
      %s197 = scalar_select %p196, %s195, 63
      %s198 = smul.addr %s197, 4
      %s199 = scalar_lea.vmem %s4, %s198
      %s200 = smul.u32 32, %s15
      %v202 = vld [vmem:[%s193] sm:$0xf]
      %v203 = vld [vmem:[%s193 + $0x4] sm:$0xf]
      %v204 = vld [vmem:[%s193 + $0x8] sm:$0xf]
      %v205 = vld [vmem:[%s193 + $0xc] sm:$0xf]
      %v206 = vld [vmem:[%s193 + $0x10] sm:$0xf]
      %v207 = vld [vmem:[%s193 + $0x14] sm:$0xf]
      %v208 = vld [vmem:[%s193 + $0x18] sm:$0xf]
      %v209 = vld [vmem:[%s193 + $0x1c] sm:$0xf]
      %v210 = vld [vmem:[%s193 + $0x20] sm:$0xf]
      %v211 = vld [vmem:[%s193 + $0x24] sm:$0xf]
      %v212 = vld [vmem:[%s193 + $0x28] sm:$0xf]
      %v213 = vld [vmem:[%s193 + $0x2c] sm:$0xf]
      %v214 = vld [vmem:[%s193 + $0x30] sm:$0xf]
      %v215 = vld [vmem:[%s193 + $0x34] sm:$0xf]
      %v216 = vld [vmem:[%s193 + $0x38] sm:$0xf]
      %v217 = vld [vmem:[%s193 + $0x3c] sm:$0xf]
      %v218 = vld [vmem:[%s193 + $0x40] sm:$0xf]
      %v219 = vld [vmem:[%s193 + $0x44] sm:$0xf]
      %v220 = vld [vmem:[%s193 + $0x48] sm:$0xf]
      %v221 = vld [vmem:[%s193 + $0x4c] sm:$0xf]
      %v222 = vld [vmem:[%s193 + $0x50] sm:$0xf]
      %v223 = vld [vmem:[%s193 + $0x54] sm:$0xf]
      %v224 = vld [vmem:[%s193 + $0x58] sm:$0xf]
      %v225 = vld [vmem:[%s193 + $0x5c] sm:$0xf]
      %v226 = vld [vmem:[%s193 + $0x60] sm:$0xf]
      %v227 = vld [vmem:[%s193 + $0x64] sm:$0xf]
      %v228 = vld [vmem:[%s193 + $0x68] sm:$0xf]
      %v229 = vld [vmem:[%s193 + $0x6c] sm:$0xf]
      %v230 = vld [vmem:[%s193 + $0x70] sm:$0xf]
      %v231 = vld [vmem:[%s193 + $0x74] sm:$0xf]
      %v232 = vld [vmem:[%s193 + $0x78] sm:$0xf]
      %v233 = vld [vmem:[%s193 + $0x7c] sm:$0xf]
      %v234 = vld [vmem:[%s1] sm:$0xf]
      %v235 = vld [vmem:[%s1 + $0x4] sm:$0xf]
      %v236 = vld [vmem:[%s1 + $0x8] sm:$0xf]
      %v237 = vld [vmem:[%s1 + $0xc] sm:$0xf]
      %v238 = vld [vmem:[%s1 + $0x10] sm:$0xf]
      %v239 = vld [vmem:[%s1 + $0x14] sm:$0xf]
      %v240 = vld [vmem:[%s1 + $0x18] sm:$0xf]
      %v241 = vld [vmem:[%s1 + $0x1c] sm:$0xf]
      %v274 = vunpack.c.l.b16 %v202
      %v275 = vunpack.c.l.b16 %v203
      %v276 = vunpack.c.l.b16 %v204
      %v277 = vunpack.c.l.b16 %v205
      %v278 = vunpack.c.l.b16 %v206
      %v279 = vunpack.c.l.b16 %v207
      %v280 = vunpack.c.l.b16 %v208
      %v281 = vunpack.c.l.b16 %v209
      %v282 = vunpack.c.l.b16 %v210
      %v283 = vunpack.c.l.b16 %v211
      %v284 = vunpack.c.l.b16 %v212
      %v285 = vunpack.c.l.b16 %v213
      %v286 = vunpack.c.l.b16 %v214
      %v287 = vunpack.c.l.b16 %v215
      %v288 = vunpack.c.l.b16 %v216
      %v289 = vunpack.c.l.b16 %v217
      %v290 = vunpack.c.l.b16 %v218
      %v291 = vunpack.c.l.b16 %v219
      %v292 = vunpack.c.l.b16 %v220
      %v293 = vunpack.c.l.b16 %v221
      %v294 = vunpack.c.l.b16 %v222
      %v295 = vunpack.c.l.b16 %v223
      %v296 = vunpack.c.l.b16 %v224
      %v297 = vunpack.c.l.b16 %v225
      %v298 = vunpack.c.l.b16 %v226
      %v299 = vunpack.c.l.b16 %v227
      %v300 = vunpack.c.l.b16 %v228
      %v301 = vunpack.c.l.b16 %v229
      %v302 = vunpack.c.l.b16 %v230
      %v303 = vunpack.c.l.b16 %v231
      %v304 = vunpack.c.l.b16 %v232
      %v305 = vunpack.c.l.b16 %v233
      %v306 = vpack.c.b16 %v275, %v274
      %v307 = vpack.c.b16 %v277, %v276
      %v308 = vpack.c.b16 %v279, %v278
      %v309 = vpack.c.b16 %v281, %v280
      %v310 = vpack.c.b16 %v283, %v282
      %v311 = vpack.c.b16 %v285, %v284
      %v312 = vpack.c.b16 %v287, %v286
      %v313 = vpack.c.b16 %v289, %v288
      %v314 = vpack.c.b16 %v291, %v290
      %v315 = vpack.c.b16 %v293, %v292
      %v316 = vpack.c.b16 %v295, %v294
      %v317 = vpack.c.b16 %v297, %v296
      %v318 = vpack.c.b16 %v299, %v298
      %v319 = vpack.c.b16 %v301, %v300
      %v320 = vpack.c.b16 %v303, %v302
      %v321 = vpack.c.b16 %v305, %v304
      %v330 = vunpack.c.l.b16 %v234
      %v331 = vunpack.c.l.b16 %v235
      %v332 = vunpack.c.l.b16 %v236
      %v333 = vunpack.c.l.b16 %v237
      %v334 = vunpack.c.l.b16 %v238
      %v335 = vunpack.c.l.b16 %v239
      %v336 = vunpack.c.l.b16 %v240
      %v337 = vunpack.c.l.b16 %v241
      %v338 = vpack.c.b16 %v331, %v330
      %v339 = vpack.c.b16 %v333, %v332
      %v340 = vpack.c.b16 %v335, %v334
      %v341 = vpack.c.b16 %v337, %v336
      %vm346 = vcmask 523264
      %v348 = vsel %vm346, %v306, 0
      %v351 = vsel %vm346, %v307, 0
      %v354 = vsel %vm346, %v308, 0
      %v357 = vsel %vm346, %v309, 0
      %v360 = vsel %vm346, %v310, 0
      %v363 = vsel %vm346, %v311, 0
      %v366 = vsel %vm346, %v312, 0
      %v369 = vsel %vm346, %v313, 0
      %v372 = vsel %vm346, %v314, 0
      %v375 = vsel %vm346, %v315, 0
      %v378 = vsel %vm346, %v316, 0
      %v381 = vsel %vm346, %v317, 0
      %v384 = vsel %vm346, %v318, 0
      %v387 = vsel %vm346, %v319, 0
      %v390 = vsel %vm346, %v320, 0
      %v393 = vsel %vm346, %v321, 0
      %395 = vmatprep.subr.bf16.mxu0 0
      %396 = vmatpush1.bf16.msra.mxu0 0
      %397 = vmatprep.subr.bf16.mxu0 0
      %398 = vmatpush1.bf16.msra.mxu0 0
      %399 = vmatprep.subr.bf16.mxu0 0
      %400 = vmatpush1.bf16.msra.mxu0 0
      %401 = vmatprep.subr.bf16.mxu0 0
      %402 = vmatpush1.bf16.msra.mxu0 0
      %403 = vmatprep.subr.bf16.mxu0 0
      %404 = vmatpush1.bf16.msra.mxu0 %v341
      %405 = vmatprep.subr.bf16.mxu0 0
      %406 = vmatpush1.bf16.msra.mxu0 %v340
      %407 = vmatprep.subr.bf16.mxu0 0
      %408 = vmatpush1.bf16.msra.mxu0 %v339
      %409 = vmatprep.subr.bf16.mxu0 0
      %410 = vmatpush1.bf16.msra.mxu0 %v338
      %411 = vmatprep.subr.bf16.mxu0 0
      %412 = vmatpush2.bf16.msra.mxu0 0
      %413 = vmatprep.subr.bf16.mxu0 0
      %414 = vmatpush2.bf16.msra.mxu0 0
      %415 = vmatprep.subr.bf16.mxu0 0
      %416 = vmatpush2.bf16.msra.mxu0 0
      %417 = vmatprep.subr.bf16.mxu0 0
      %418 = vmatpush2.bf16.msra.mxu0 0
      %419 = vmatprep.subr.bf16.mxu0 0
      %420 = vmatpush2.bf16.msra.mxu0 0
      %421 = vmatprep.subr.bf16.mxu0 0
      %422 = vmatpush2.bf16.msra.mxu0 0
      %423 = vmatprep.subr.bf16.mxu0 0
      %424 = vmatpush2.bf16.msra.mxu0 0
      %425 = vmatprep.subr.bf16.mxu0 0
      %426 = vmatpush2.bf16.msra.mxu0 0
      %427 = vmatprep.mubr.bf16.mxu0 0
      %428 = vmatmul.mubr.bf16.gmra.mxu0 %v348
      %v429 = vpop.f32.mrf.mxu0
      %v430 = vadd.f32 0.0, %v429
      %v431 = vpop.f32.mrf.mxu0
      %v432 = vpop.f32.mrf.mxu0
      %v433 = vadd.f32 0.0, %v432
      %v434 = vpop.f32.mrf.mxu0
      %435 = vmatprep.mubr.bf16.mxu0 0
      %436 = vmatmul.mubr.bf16.gmra.mxu0 %v351
      %v437 = vpop.f32.mrf.mxu0
      %v438 = vadd.f32 0.0, %v437
      %v439 = vpop.f32.mrf.mxu0
      %v440 = vpop.f32.mrf.mxu0
      %v441 = vadd.f32 0.0, %v440
      %v442 = vpop.f32.mrf.mxu0
      %443 = vmatprep.mubr.bf16.mxu0 0
      %444 = vmatmul.mubr.bf16.gmra.mxu0 %v354
      %v445 = vpop.f32.mrf.mxu0
      %v446 = vadd.f32 0.0, %v445
      %v447 = vpop.f32.mrf.mxu0
      %v448 = vpop.f32.mrf.mxu0
      %v449 = vadd.f32 0.0, %v448
      %v450 = vpop.f32.mrf.mxu0
      %451 = vmatprep.mubr.bf16.mxu0 0
      %452 = vmatmul.mubr.bf16.gmra.mxu0 %v357
      %v453 = vpop.f32.mrf.mxu0
      %v454 = vadd.f32 0.0, %v453
      %v455 = vpop.f32.mrf.mxu0
      %v456 = vpop.f32.mrf.mxu0
      %v457 = vadd.f32 0.0, %v456
      %v458 = vpop.f32.mrf.mxu0
      %459 = vmatprep.mubr.bf16.mxu0 0
      %460 = vmatmul.mubr.bf16.gmra.mxu0 %v360
      %v461 = vpop.f32.mrf.mxu0
      %v462 = vadd.f32 0.0, %v461
      %v463 = vpop.f32.mrf.mxu0
      %v464 = vpop.f32.mrf.mxu0
      %v465 = vadd.f32 0.0, %v464
      %v466 = vpop.f32.mrf.mxu0
      %467 = vmatprep.mubr.bf16.mxu0 0
      %468 = vmatmul.mubr.bf16.gmra.mxu0 %v363
      %v469 = vpop.f32.mrf.mxu0
      %v470 = vadd.f32 0.0, %v469
      %v471 = vpop.f32.mrf.mxu0
      %v472 = vpop.f32.mrf.mxu0
      %v473 = vadd.f32 0.0, %v472
      %v474 = vpop.f32.mrf.mxu0
      %475 = vmatprep.mubr.bf16.mxu0 0
      %476 = vmatmul.mubr.bf16.gmra.mxu0 %v366
      %v477 = vpop.f32.mrf.mxu0
      %v478 = vadd.f32 0.0, %v477
      %v479 = vpop.f32.mrf.mxu0
      %v480 = vpop.f32.mrf.mxu0
      %v481 = vadd.f32 0.0, %v480
      %v482 = vpop.f32.mrf.mxu0
      %483 = vmatprep.mubr.bf16.mxu0 0
      %484 = vmatmul.mubr.bf16.gmra.mxu0 %v369
      %v485 = vpop.f32.mrf.mxu0
      %v486 = vadd.f32 0.0, %v485
      %v487 = vpop.f32.mrf.mxu0
      %v488 = vpop.f32.mrf.mxu0
      %v489 = vadd.f32 0.0, %v488
      %v490 = vpop.f32.mrf.mxu0
      %491 = vmatprep.mubr.bf16.mxu0 0
      %492 = vmatmul.mubr.bf16.gmra.mxu0 %v372
      %v493 = vpop.f32.mrf.mxu0
      %v494 = vadd.f32 0.0, %v493
      %v495 = vpop.f32.mrf.mxu0
      %v496 = vpop.f32.mrf.mxu0
      %v497 = vadd.f32 0.0, %v496
      %v498 = vpop.f32.mrf.mxu0
      %499 = vmatprep.mubr.bf16.mxu0 0
      %500 = vmatmul.mubr.bf16.gmra.mxu0 %v375
      %v501 = vpop.f32.mrf.mxu0
      %v502 = vadd.f32 0.0, %v501
      %v503 = vpop.f32.mrf.mxu0
      %v504 = vpop.f32.mrf.mxu0
      %v505 = vadd.f32 0.0, %v504
      %v506 = vpop.f32.mrf.mxu0
      %507 = vmatprep.mubr.bf16.mxu0 0
      %508 = vmatmul.mubr.bf16.gmra.mxu0 %v378
      %v509 = vpop.f32.mrf.mxu0
      %v510 = vadd.f32 0.0, %v509
      %v511 = vpop.f32.mrf.mxu0
      %v512 = vpop.f32.mrf.mxu0
      %v513 = vadd.f32 0.0, %v512
      %v514 = vpop.f32.mrf.mxu0
      %515 = vmatprep.mubr.bf16.mxu0 0
      %516 = vmatmul.mubr.bf16.gmra.mxu0 %v381
      %v517 = vpop.f32.mrf.mxu0
      %v518 = vadd.f32 0.0, %v517
      %v519 = vpop.f32.mrf.mxu0
      %v520 = vpop.f32.mrf.mxu0
      %v521 = vadd.f32 0.0, %v520
      %v522 = vpop.f32.mrf.mxu0
      %523 = vmatprep.mubr.bf16.mxu0 0
      %524 = vmatmul.mubr.bf16.gmra.mxu0 %v384
      %v525 = vpop.f32.mrf.mxu0
      %v526 = vadd.f32 0.0, %v525
      %v527 = vpop.f32.mrf.mxu0
      %v528 = vpop.f32.mrf.mxu0
      %v529 = vadd.f32 0.0, %v528
      %v530 = vpop.f32.mrf.mxu0
      %531 = vmatprep.mubr.bf16.mxu0 0
      %532 = vmatmul.mubr.bf16.gmra.mxu0 %v387
      %v533 = vpop.f32.mrf.mxu0
      %v534 = vadd.f32 0.0, %v533
      %v535 = vpop.f32.mrf.mxu0
      %v536 = vpop.f32.mrf.mxu0
      %v537 = vadd.f32 0.0, %v536
      %v538 = vpop.f32.mrf.mxu0
      %539 = vmatprep.mubr.bf16.mxu0 0
      %540 = vmatmul.mubr.bf16.gmra.mxu0 %v390
      %v541 = vpop.f32.mrf.mxu0
      %v542 = vadd.f32 0.0, %v541
      %v543 = vpop.f32.mrf.mxu0
      %v544 = vpop.f32.mrf.mxu0
      %v545 = vadd.f32 0.0, %v544
      %v546 = vpop.f32.mrf.mxu0
      %547 = vmatprep.mubr.bf16.mxu0 0
      %548 = vmatmul.mubr.bf16.gmra.mxu0 %v393
      %v549 = vpop.f32.mrf.mxu0
      %v550 = vadd.f32 0.0, %v549
      %v551 = vpop.f32.mrf.mxu0
      %v552 = vpop.f32.mrf.mxu0
      %v553 = vadd.f32 0.0, %v552
      %v554 = vpop.f32.mrf.mxu0
      %555 = vdwg.mxu0
      %v556 = vld [vmem:[%s2] sm:$0x1]
      %v558 = vlaneseq
      %v559 = vshrl.u32 %v558, 7
      %v560 = vsub.s32 0, %v559
      %v561 = vrot.slane %v556, %v560
      %v563 = vmul.f32 %v430, %v561
      %v564 = vmul.f32 %v433, %v561
      %v565 = vmul.f32 %v438, %v561
      %v566 = vmul.f32 %v441, %v561
      %v567 = vmul.f32 %v446, %v561
      %v568 = vmul.f32 %v449, %v561
      %v569 = vmul.f32 %v454, %v561
      %v570 = vmul.f32 %v457, %v561
      %v571 = vmul.f32 %v462, %v561
      %v572 = vmul.f32 %v465, %v561
      %v573 = vmul.f32 %v470, %v561
      %v574 = vmul.f32 %v473, %v561
      %v575 = vmul.f32 %v478, %v561
      %v576 = vmul.f32 %v481, %v561
      %v577 = vmul.f32 %v486, %v561
      %v578 = vmul.f32 %v489, %v561
      %v579 = vmul.f32 %v494, %v561
      %v580 = vmul.f32 %v497, %v561
      %v581 = vmul.f32 %v502, %v561
      %v582 = vmul.f32 %v505, %v561
      %v583 = vmul.f32 %v510, %v561
      %v584 = vmul.f32 %v513, %v561
      %v585 = vmul.f32 %v518, %v561
      %v586 = vmul.f32 %v521, %v561
      %v587 = vmul.f32 %v526, %v561
      %v588 = vmul.f32 %v529, %v561
      %v589 = vmul.f32 %v534, %v561
      %v590 = vmul.f32 %v537, %v561
      %v591 = vmul.f32 %v542, %v561
      %v592 = vmul.f32 %v545, %v561
      %v593 = vmul.f32 %v550, %v561
      %v594 = vmul.f32 %v553, %v561
      %v595 = vld [vmem:[%s3] sm:$0x1]
      %v597 = vlaneseq
      %v598 = vshrl.u32 %v597, 7
      %v599 = vsub.s32 0, %v598
      %v600 = vrot.slane %v595, %v599
      %v602 = vadd.f32 %v563, %v600
      %v603 = vadd.f32 %v564, %v600
      %v604 = vadd.f32 %v565, %v600
      %v605 = vadd.f32 %v566, %v600
      %v606 = vadd.f32 %v567, %v600
      %v607 = vadd.f32 %v568, %v600
      %v608 = vadd.f32 %v569, %v600
      %v609 = vadd.f32 %v570, %v600
      %v610 = vadd.f32 %v571, %v600
      %v611 = vadd.f32 %v572, %v600
      %v612 = vadd.f32 %v573, %v600
      %v613 = vadd.f32 %v574, %v600
      %v614 = vadd.f32 %v575, %v600
      %v615 = vadd.f32 %v576, %v600
      %v616 = vadd.f32 %v577, %v600
      %v617 = vadd.f32 %v578, %v600
      %v618 = vadd.f32 %v579, %v600
      %v619 = vadd.f32 %v580, %v600
      %v620 = vadd.f32 %v581, %v600
      %v621 = vadd.f32 %v582, %v600
      %v622 = vadd.f32 %v583, %v600
      %v623 = vadd.f32 %v584, %v600
      %v624 = vadd.f32 %v585, %v600
      %v625 = vadd.f32 %v586, %v600
      %v626 = vadd.f32 %v587, %v600
      %v627 = vadd.f32 %v588, %v600
      %v628 = vadd.f32 %v589, %v600
      %v629 = vadd.f32 %v590, %v600
      %v630 = vadd.f32 %v591, %v600
      %v631 = vadd.f32 %v592, %v600
      %v632 = vadd.f32 %v593, %v600
      %v633 = vadd.f32 %v594, %v600
      %v634 = vmax.f32 %v602, 0.0
      %v635 = vmax.f32 %v603, 0.0
      %v636 = vmax.f32 %v604, 0.0
      %v637 = vmax.f32 %v605, 0.0
      %v638 = vmax.f32 %v606, 0.0
      %v639 = vmax.f32 %v607, 0.0
      %v640 = vmax.f32 %v608, 0.0
      %v641 = vmax.f32 %v609, 0.0
      %v642 = vmax.f32 %v610, 0.0
      %v643 = vmax.f32 %v611, 0.0
      %v644 = vmax.f32 %v612, 0.0
      %v645 = vmax.f32 %v613, 0.0
      %v646 = vmax.f32 %v614, 0.0
      %v647 = vmax.f32 %v615, 0.0
      %v648 = vmax.f32 %v616, 0.0
      %v649 = vmax.f32 %v617, 0.0
      %v650 = vmax.f32 %v618, 0.0
      %v651 = vmax.f32 %v619, 0.0
      %v652 = vmax.f32 %v620, 0.0
      %v653 = vmax.f32 %v621, 0.0
      %v654 = vmax.f32 %v622, 0.0
      %v655 = vmax.f32 %v623, 0.0
      %v656 = vmax.f32 %v624, 0.0
      %v657 = vmax.f32 %v625, 0.0
      %v658 = vmax.f32 %v626, 0.0
      %v659 = vmax.f32 %v627, 0.0
      %v660 = vmax.f32 %v628, 0.0
      %v661 = vmax.f32 %v629, 0.0
      %v662 = vmax.f32 %v630, 0.0
      %v663 = vmax.f32 %v631, 0.0
      %v664 = vmax.f32 %v632, 0.0
      %v665 = vmax.f32 %v633, 0.0
      %v666 = vpack.c.bf16 %v635, %v634
      %v667 = vpack.c.bf16 %v637, %v636
      %v668 = vpack.c.bf16 %v639, %v638
      %v669 = vpack.c.bf16 %v641, %v640
      %v670 = vpack.c.bf16 %v643, %v642
      %v671 = vpack.c.bf16 %v645, %v644
      %v672 = vpack.c.bf16 %v647, %v646
      %v673 = vpack.c.bf16 %v649, %v648
      %v674 = vpack.c.bf16 %v651, %v650
      %v675 = vpack.c.bf16 %v653, %v652
      %v676 = vpack.c.bf16 %v655, %v654
      %v677 = vpack.c.bf16 %v657, %v656
      %v678 = vpack.c.bf16 %v659, %v658
      %v679 = vpack.c.bf16 %v661, %v660
      %v680 = vpack.c.bf16 %v663, %v662
      %v681 = vpack.c.bf16 %v665, %v664
      %v698 = vunpack.c.l.b16 %v666
      %v699 = vunpack.c.h.b16 %v666
      %v700 = vunpack.c.l.b16 %v667
      %v701 = vunpack.c.h.b16 %v667
      %v702 = vunpack.c.l.b16 %v668
      %v703 = vunpack.c.h.b16 %v668
      %v704 = vunpack.c.l.b16 %v669
      %v705 = vunpack.c.h.b16 %v669
      %v706 = vunpack.c.l.b16 %v670
      %v707 = vunpack.c.h.b16 %v670
      %v708 = vunpack.c.l.b16 %v671
      %v709 = vunpack.c.h.b16 %v671
      %v710 = vunpack.c.l.b16 %v672
      %v711 = vunpack.c.h.b16 %v672
      %v712 = vunpack.c.l.b16 %v673
      %v713 = vunpack.c.h.b16 %v673
      %v714 = vunpack.c.l.b16 %v674
      %v715 = vunpack.c.h.b16 %v674
      %v716 = vunpack.c.l.b16 %v675
      %v717 = vunpack.c.h.b16 %v675
      %v718 = vunpack.c.l.b16 %v676
      %v719 = vunpack.c.h.b16 %v676
      %v720 = vunpack.c.l.b16 %v677
      %v721 = vunpack.c.h.b16 %v677
      %v722 = vunpack.c.l.b16 %v678
      %v723 = vunpack.c.h.b16 %v678
      %v724 = vunpack.c.l.b16 %v679
      %v725 = vunpack.c.h.b16 %v679
      %v726 = vunpack.c.l.b16 %v680
      %v727 = vunpack.c.h.b16 %v680
      %v728 = vunpack.c.l.b16 %v681
      %v729 = vunpack.c.h.b16 %v681
      %v730 = vpack.c.b16 %v698, %v698
      %v731 = vpack.c.b16 %v699, %v699
      %v732 = vpack.c.b16 %v700, %v700
      %v733 = vpack.c.b16 %v701, %v701
      %v734 = vpack.c.b16 %v702, %v702
      %v735 = vpack.c.b16 %v703, %v703
      %v736 = vpack.c.b16 %v704, %v704
      %v737 = vpack.c.b16 %v705, %v705
      %v738 = vpack.c.b16 %v706, %v706
      %v739 = vpack.c.b16 %v707, %v707
      %v740 = vpack.c.b16 %v708, %v708
      %v741 = vpack.c.b16 %v709, %v709
      %v742 = vpack.c.b16 %v710, %v710
      %v743 = vpack.c.b16 %v711, %v711
      %v744 = vpack.c.b16 %v712, %v712
      %v745 = vpack.c.b16 %v713, %v713
      %v746 = vpack.c.b16 %v714, %v714
      %v747 = vpack.c.b16 %v715, %v715
      %v748 = vpack.c.b16 %v716, %v716
      %v749 = vpack.c.b16 %v717, %v717
      %v750 = vpack.c.b16 %v718, %v718
      %v751 = vpack.c.b16 %v719, %v719
      %v752 = vpack.c.b16 %v720, %v720
      %v753 = vpack.c.b16 %v721, %v721
      %v754 = vpack.c.b16 %v722, %v722
      %v755 = vpack.c.b16 %v723, %v723
      %v756 = vpack.c.b16 %v724, %v724
      %v757 = vpack.c.b16 %v725, %v725
      %v758 = vpack.c.b16 %v726, %v726
      %v759 = vpack.c.b16 %v727, %v727
      %v760 = vpack.c.b16 %v728, %v728
      %v761 = vpack.c.b16 %v729, %v729
      %vm794 = vcmask 257024
      %795 = vst.msk [vmem:[%s199] sm:$0xf] %vm794, %v730
      %796 = vst.msk [vmem:[%s199 + $0x4] sm:$0xf] %vm794, %v731
      %797 = vst.msk [vmem:[%s199 + $0x8] sm:$0xf] %vm794, %v732
      %798 = vst.msk [vmem:[%s199 + $0xc] sm:$0xf] %vm794, %v733
      %799 = vst.msk [vmem:[%s199 + $0x10] sm:$0xf] %vm794, %v734
      %800 = vst.msk [vmem:[%s199 + $0x14] sm:$0xf] %vm794, %v735
      %801 = vst.msk [vmem:[%s199 + $0x18] sm:$0xf] %vm794, %v736
      %802 = vst.msk [vmem:[%s199 + $0x1c] sm:$0xf] %vm794, %v737
      %803 = vst.msk [vmem:[%s199 + $0x20] sm:$0xf] %vm794, %v738
      %804 = vst.msk [vmem:[%s199 + $0x24] sm:$0xf] %vm794, %v739
      %805 = vst.msk [vmem:[%s199 + $0x28] sm:$0xf] %vm794, %v740
      %806 = vst.msk [vmem:[%s199 + $0x2c] sm:$0xf] %vm794, %v741
      %807 = vst.msk [vmem:[%s199 + $0x30] sm:$0xf] %vm794, %v742
      %808 = vst.msk [vmem:[%s199 + $0x34] sm:$0xf] %vm794, %v743
      %809 = vst.msk [vmem:[%s199 + $0x38] sm:$0xf] %vm794, %v744
      %810 = vst.msk [vmem:[%s199 + $0x3c] sm:$0xf] %vm794, %v745
      %811 = vst.msk [vmem:[%s199 + $0x40] sm:$0xf] %vm794, %v746
      %812 = vst.msk [vmem:[%s199 + $0x44] sm:$0xf] %vm794, %v747
      %813 = vst.msk [vmem:[%s199 + $0x48] sm:$0xf] %vm794, %v748
      %814 = vst.msk [vmem:[%s199 + $0x4c] sm:$0xf] %vm794, %v749
      %815 = vst.msk [vmem:[%s199 + $0x50] sm:$0xf] %vm794, %v750
      %816 = vst.msk [vmem:[%s199 + $0x54] sm:$0xf] %vm794, %v751
      %817 = vst.msk [vmem:[%s199 + $0x58] sm:$0xf] %vm794, %v752
      %818 = vst.msk [vmem:[%s199 + $0x5c] sm:$0xf] %vm794, %v753
      %819 = vst.msk [vmem:[%s199 + $0x60] sm:$0xf] %vm794, %v754
      %820 = vst.msk [vmem:[%s199 + $0x64] sm:$0xf] %vm794, %v755
      %821 = vst.msk [vmem:[%s199 + $0x68] sm:$0xf] %vm794, %v756
      %822 = vst.msk [vmem:[%s199 + $0x6c] sm:$0xf] %vm794, %v757
      %823 = vst.msk [vmem:[%s199 + $0x70] sm:$0xf] %vm794, %v758
      %824 = vst.msk [vmem:[%s199 + $0x74] sm:$0xf] %vm794, %v759
      %825 = vst.msk [vmem:[%s199 + $0x78] sm:$0xf] %vm794, %v760
      %826 = vst.msk [vmem:[%s199 + $0x7c] sm:$0xf] %vm794, %v761
      %s827 = smul.u32 32, %s15
      %p828 = scmp.lt.s32.totalorder %s827, 63
      %s829 = scalar_select %p828, %s827, 63
      %s830 = smul.addr %s829, 4
      %s831 = scalar_lea.vmem %s4, %s830
      // Predicated region
      $region37: #{bottleneck_forward.4} parent=35 // pred_check
        %p832 = pneg %p122
      $region38: #{bottleneck_forward.4} parent=35 // pred_check_branch
        %834 = sbr.rel (%p832) target = $region40
      $region39: #{bottleneck_forward.4} parent=35 // pred_region
        %s835 = smul.u32 32, %s15
      $region40: #{bottleneck_forward.4} parent=35 // pred_fallthru
        _
    $region36: #{bottleneck_forward.4} parent=5 // pred_fallthru
      _
    %p836 = scmp.le.s32.totalorder 2, %s10
    // Predicated region
    $region41: #{bottleneck_forward.4} parent=5 // pred_check
      %p837 = pneg %p836
    $region42: #{bottleneck_forward.4} parent=5 // pred_check_branch
      %839 = sbr.rel (%p837) target = $region44
    $region43: #{bottleneck_forward.4} parent=5 // pred_region
      %s840 = ssub.s32 %s10, 2
      // Predicated region
      $region45: #{bottleneck_forward.4} parent=43 // pred_check
        %p841 = pneg %p128
      $region46: #{bottleneck_forward.4} parent=43 // pred_check_branch
        %843 = sbr.rel (%p841) target = $region48
      $region47: #{bottleneck_forward.4} parent=43 // pred_region
        %s844 = smul.u32 32, %s16
        %p845 = scmp.lt.s32.totalorder %s844, 63
        %s846 = scalar_select %p845, %s844, 63
        %s847 = smul.addr %s846, 4
        %s848 = scalar_lea.vmem %s4, %s847
      $region48: #{bottleneck_forward.4} parent=43 // pred_fallthru
        _
    $region44: #{bottleneck_forward.4} parent=5 // pred_fallthru
      _
  $region6: #{bottleneck_forward.4} parent=0 // loop_footer
    %s14 = sadd.s32 1, %s10
  $region7: #{bottleneck_forward.4} parent=0 // loop_footer_branch
    %9 = sbr.rel target = $region3
  $region8: #{bottleneck_forward.4} parent=0 // loop_exit
    _

// kernel: bottleneck_forward.6
$region0: #{bottleneck_forward.6}
  #allocation0 [shape = 'u32[]', space=smem, size = 0x4, offset = 0x4, fixed_abs, tag = 'smem constant byte address 0x4 - core index']
  #allocation1 [shape = 'u32[144,128]{1,0:T(1,128)}', space=vmem, size = 0x12000, scoped, tag = 'internal scratch']
  %s0 = inlined_call_operand.vmem [shape: bf16[128,64], index: 0, kind: input, shape index: {}]
  %s1 = inlined_call_operand.vmem [shape: bf16[64,128], index: 1, kind: input, shape index: {}]
  %s2 = inlined_call_operand.vmem [shape: f32[1,128], index: 2, kind: input, shape index: {}]
  %s3 = inlined_call_operand.vmem [shape: f32[1,128], index: 3, kind: input, shape index: {}]
  %s4 = inlined_call_operand.vmem [shape: bf16[128,128], index: 4, kind: output, shape index: {}]
  %s5 = sld [smem:[#allocation0]]
  $region26: #{bottleneck_forward.6} parent=0
    _
  %s7 = ssub.s32 1, %s5
  %s8 = scalar_select 0, %s7, %s5
  // Predicated region
  $region2: #{bottleneck_forward.6} parent=0 // pred_check
    _
  $region3: #{bottleneck_forward.6} parent=0 // pred_check_branch
    %10 = sbr.rel (0) target = $region5
  $region4: #{bottleneck_forward.6} parent=0 // pred_region
    _
  $region5: #{bottleneck_forward.6} parent=0 // pred_fallthru
    _
  // Predicated region
  $region6: #{bottleneck_forward.6} parent=0 // pred_check
    _
  $region7: #{bottleneck_forward.6} parent=0 // pred_check_branch
    %12 = sbr.rel (0) target = $region9
  $region8: #{bottleneck_forward.6} parent=0 // pred_region
    _
  $region9: #{bottleneck_forward.6} parent=0 // pred_fallthru
    _
  // Predicated region
  $region10: #{bottleneck_forward.6} parent=0 // pred_check
    _
  $region11: #{bottleneck_forward.6} parent=0 // pred_check_branch
    %14 = sbr.rel (0) target = $region13
  $region12: #{bottleneck_forward.6} parent=0 // pred_region
    _
  $region13: #{bottleneck_forward.6} parent=0 // pred_fallthru
    _
  // Predicated region
  $region14: #{bottleneck_forward.6} parent=0 // pred_check
    _
  $region15: #{bottleneck_forward.6} parent=0 // pred_check_branch
    %16 = sbr.rel (0) target = $region17
  $region16: #{bottleneck_forward.6} parent=0 // pred_region
    _
  $region17: #{bottleneck_forward.6} parent=0 // pred_fallthru
    _
  %v18 = vld [vmem:[%s0] sm:$0xf]
  %v19 = vld [vmem:[%s0 + $0x4] sm:$0xf]
  %v20 = vld [vmem:[%s0 + $0x8] sm:$0xf]
  %v21 = vld [vmem:[%s0 + $0xc] sm:$0xf]
  %v22 = vld [vmem:[%s0 + $0x10] sm:$0xf]
  %v23 = vld [vmem:[%s0 + $0x14] sm:$0xf]
  %v24 = vld [vmem:[%s0 + $0x18] sm:$0xf]
  %v25 = vld [vmem:[%s0 + $0x1c] sm:$0xf]
  %v26 = vld [vmem:[%s0 + $0x20] sm:$0xf]
  %v27 = vld [vmem:[%s0 + $0x24] sm:$0xf]
  %v28 = vld [vmem:[%s0 + $0x28] sm:$0xf]
  %v29 = vld [vmem:[%s0 + $0x2c] sm:$0xf]
  %v30 = vld [vmem:[%s0 + $0x30] sm:$0xf]
  %v31 = vld [vmem:[%s0 + $0x34] sm:$0xf]
  %v32 = vld [vmem:[%s0 + $0x38] sm:$0xf]
  %v33 = vld [vmem:[%s0 + $0x3c] sm:$0xf]
  %v34 = vld [vmem:[%s1] sm:$0xf]
  %v35 = vld [vmem:[%s1 + $0x4] sm:$0xf]
  %v36 = vld [vmem:[%s1 + $0x8] sm:$0xf]
  %v37 = vld [vmem:[%s1 + $0xc] sm:$0xf]
  %v38 = vld [vmem:[%s1 + $0x10] sm:$0xf]
  %v39 = vld [vmem:[%s1 + $0x14] sm:$0xf]
  %v40 = vld [vmem:[%s1 + $0x18] sm:$0xf]
  %v41 = vld [vmem:[%s1 + $0x1c] sm:$0xf]
  %v58 = vunpack.c.l.b16 %v18
  %v59 = vunpack.c.l.b16 %v19
  %v60 = vunpack.c.l.b16 %v20
  %v61 = vunpack.c.l.b16 %v21
  %v62 = vunpack.c.l.b16 %v22
  %v63 = vunpack.c.l.b16 %v23
  %v64 = vunpack.c.l.b16 %v24
  %v65 = vunpack.c.l.b16 %v25
  %v66 = vunpack.c.l.b16 %v26
  %v67 = vunpack.c.l.b16 %v27
  %v68 = vunpack.c.l.b16 %v28
  %v69 = vunpack.c.l.b16 %v29
  %v70 = vunpack.c.l.b16 %v30
  %v71 = vunpack.c.l.b16 %v31
  %v72 = vunpack.c.l.b16 %v32
  %v73 = vunpack.c.l.b16 %v33
  %v74 = vpack.c.b16 %v59, %v58
  %v75 = vpack.c.b16 %v61, %v60
  %v76 = vpack.c.b16 %v63, %v62
  %v77 = vpack.c.b16 %v65, %v64
  %v78 = vpack.c.b16 %v67, %v66
  %v79 = vpack.c.b16 %v69, %v68
  %v80 = vpack.c.b16 %v71, %v70
  %v81 = vpack.c.b16 %v73, %v72
  %v90 = vunpack.c.l.b16 %v34
  %v91 = vunpack.c.l.b16 %v35
  %v92 = vunpack.c.l.b16 %v36
  %v93 = vunpack.c.l.b16 %v37
  %v94 = vunpack.c.l.b16 %v38
  %v95 = vunpack.c.l.b16 %v39
  %v96 = vunpack.c.l.b16 %v40
  %v97 = vunpack.c.l.b16 %v41
  %v98 = vpack.c.b16 %v91, %v90
  %v99 = vpack.c.b16 %v93, %v92
  %v100 = vpack.c.b16 %v95, %v94
  %v101 = vpack.c.b16 %v97, %v96
  %vm106 = vcmask 523264
  %v108 = vsel %vm106, %v74, 0
  %v111 = vsel %vm106, %v75, 0
  %v114 = vsel %vm106, %v76, 0
  %v117 = vsel %vm106, %v77, 0
  %v120 = vsel %vm106, %v78, 0
  %v123 = vsel %vm106, %v79, 0
  %v126 = vsel %vm106, %v80, 0
  %v129 = vsel %vm106, %v81, 0
  %131 = vmatprep.subr.bf16.mxu0 0
  %132 = vmatpush1.bf16.msra.mxu0 0
  %133 = vmatprep.subr.bf16.mxu0 0
  %134 = vmatpush1.bf16.msra.mxu0 0
  %135 = vmatprep.subr.bf16.mxu0 0
  %136 = vmatpush1.bf16.msra.mxu0 0
  %137 = vmatprep.subr.bf16.mxu0 0
  %138 = vmatpush1.bf16.msra.mxu0 0
  %139 = vmatprep.subr.bf16.mxu0 0
  %140 = vmatpush1.bf16.msra.mxu0 %v101
  %141 = vmatprep.subr.bf16.mxu0 0
  %142 = vmatpush1.bf16.msra.mxu0 %v100
  %143 = vmatprep.subr.bf16.mxu0 0
  %144 = vmatpush1.bf16.msra.mxu0 %v99
  %145 = vmatprep.subr.bf16.mxu0 0
  %146 = vmatpush1.bf16.msra.mxu0 %v98
  %147 = vmatprep.subr.bf16.mxu0 0
  %148 = vmatpush2.bf16.msra.mxu0 0
  %149 = vmatprep.subr.bf16.mxu0 0
  %150 = vmatpush2.bf16.msra.mxu0 0
  %151 = vmatprep.subr.bf16.mxu0 0
  %152 = vmatpush2.bf16.msra.mxu0 0
  %153 = vmatprep.subr.bf16.mxu0 0
  %154 = vmatpush2.bf16.msra.mxu0 0
  %155 = vmatprep.subr.bf16.mxu0 0
  %156 = vmatpush2.bf16.msra.mxu0 0
  %157 = vmatprep.subr.bf16.mxu0 0
  %158 = vmatpush2.bf16.msra.mxu0 0
  %159 = vmatprep.subr.bf16.mxu0 0
  %160 = vmatpush2.bf16.msra.mxu0 0
  %161 = vmatprep.subr.bf16.mxu0 0
  %162 = vmatpush2.bf16.msra.mxu0 0
  %163 = vmatprep.mubr.bf16.mxu0 0
  %164 = vmatmul.mubr.bf16.gmra.mxu0 %v108
  %v165 = vpop.f32.mrf.mxu0
  %v166 = vadd.f32 0.0, %v165
  %v167 = vpop.f32.mrf.mxu0
  %v168 = vpop.f32.mrf.mxu0
  %v169 = vadd.f32 0.0, %v168
  %v170 = vpop.f32.mrf.mxu0
  %171 = vmatprep.mubr.bf16.mxu0 0
  %172 = vmatmul.mubr.bf16.gmra.mxu0 %v111
  %v173 = vpop.f32.mrf.mxu0
  %v174 = vadd.f32 0.0, %v173
  %v175 = vpop.f32.mrf.mxu0
  %v176 = vpop.f32.mrf.mxu0
  %v177 = vadd.f32 0.0, %v176
  %v178 = vpop.f32.mrf.mxu0
  %179 = vmatprep.mubr.bf16.mxu0 0
  %180 = vmatmul.mubr.bf16.gmra.mxu0 %v114
  %v181 = vpop.f32.mrf.mxu0
  %v182 = vadd.f32 0.0, %v181
  %v183 = vpop.f32.mrf.mxu0
  %v184 = vpop.f32.mrf.mxu0
  %v185 = vadd.f32 0.0, %v184
  %v186 = vpop.f32.mrf.mxu0
  %187 = vmatprep.mubr.bf16.mxu0 0
  %188 = vmatmul.mubr.bf16.gmra.mxu0 %v117
  %v189 = vpop.f32.mrf.mxu0
  %v190 = vadd.f32 0.0, %v189
  %v191 = vpop.f32.mrf.mxu0
  %v192 = vpop.f32.mrf.mxu0
  %v193 = vadd.f32 0.0, %v192
  %v194 = vpop.f32.mrf.mxu0
  %195 = vmatprep.mubr.bf16.mxu0 0
  %196 = vmatmul.mubr.bf16.gmra.mxu0 %v120
  %v197 = vpop.f32.mrf.mxu0
  %v198 = vadd.f32 0.0, %v197
  %v199 = vpop.f32.mrf.mxu0
  %v200 = vpop.f32.mrf.mxu0
  %v201 = vadd.f32 0.0, %v200
  %v202 = vpop.f32.mrf.mxu0
  %203 = vmatprep.mubr.bf16.mxu0 0
  %204 = vmatmul.mubr.bf16.gmra.mxu0 %v123
  %v205 = vpop.f32.mrf.mxu0
  %v206 = vadd.f32 0.0, %v205
  %v207 = vpop.f32.mrf.mxu0
  %v208 = vpop.f32.mrf.mxu0
  %v209 = vadd.f32 0.0, %v208
  %v210 = vpop.f32.mrf.mxu0
  %211 = vmatprep.mubr.bf16.mxu0 0
  %212 = vmatmul.mubr.bf16.gmra.mxu0 %v126
  %v213 = vpop.f32.mrf.mxu0
  %v214 = vadd.f32 0.0, %v213
  %v215 = vpop.f32.mrf.mxu0
  %v216 = vpop.f32.mrf.mxu0
  %v217 = vadd.f32 0.0, %v216
  %v218 = vpop.f32.mrf.mxu0
  %219 = vmatprep.mubr.bf16.mxu0 0
  %220 = vmatmul.mubr.bf16.gmra.mxu0 %v129
  %v221 = vpop.f32.mrf.mxu0
  %v222 = vadd.f32 0.0, %v221
  %v223 = vpop.f32.mrf.mxu0
  %v224 = vpop.f32.mrf.mxu0
  %v225 = vadd.f32 0.0, %v224
  %v226 = vpop.f32.mrf.mxu0
  %227 = vdwg.mxu0
  %v228 = vld [vmem:[%s2] sm:$0x1]
  %v230 = vlaneseq
  %v231 = vshrl.u32 %v230, 7
  %v232 = vsub.s32 0, %v231
  %v233 = vrot.slane %v228, %v232
  %v235 = vmul.f32 %v166, %v233
  %v236 = vmul.f32 %v169, %v233
  %v237 = vmul.f32 %v174, %v233
  %v238 = vmul.f32 %v177, %v233
  %v239 = vmul.f32 %v182, %v233
  %v240 = vmul.f32 %v185, %v233
  %v241 = vmul.f32 %v190, %v233
  %v242 = vmul.f32 %v193, %v233
  %v243 = vmul.f32 %v198, %v233
  %v244 = vmul.f32 %v201, %v233
  %v245 = vmul.f32 %v206, %v233
  %v246 = vmul.f32 %v209, %v233
  %v247 = vmul.f32 %v214, %v233
  %v248 = vmul.f32 %v217, %v233
  %v249 = vmul.f32 %v222, %v233
  %v250 = vmul.f32 %v225, %v233
  %v251 = vld [vmem:[%s3] sm:$0x1]
  %v253 = vlaneseq
  %v254 = vshrl.u32 %v253, 7
  %v255 = vsub.s32 0, %v254
  %v256 = vrot.slane %v251, %v255
  %v258 = vadd.f32 %v235, %v256
  %v259 = vadd.f32 %v236, %v256
  %v260 = vadd.f32 %v237, %v256
  %v261 = vadd.f32 %v238, %v256
  %v262 = vadd.f32 %v239, %v256
  %v263 = vadd.f32 %v240, %v256
  %v264 = vadd.f32 %v241, %v256
  %v265 = vadd.f32 %v242, %v256
  %v266 = vadd.f32 %v243, %v256
  %v267 = vadd.f32 %v244, %v256
  %v268 = vadd.f32 %v245, %v256
  %v269 = vadd.f32 %v246, %v256
  %v270 = vadd.f32 %v247, %v256
  %v271 = vadd.f32 %v248, %v256
  %v272 = vadd.f32 %v249, %v256
  %v273 = vadd.f32 %v250, %v256
  %v274 = vpack.c.bf16 %v259, %v258
  %v275 = vpack.c.bf16 %v261, %v260
  %v276 = vpack.c.bf16 %v263, %v262
  %v277 = vpack.c.bf16 %v265, %v264
  %v278 = vpack.c.bf16 %v267, %v266
  %v279 = vpack.c.bf16 %v269, %v268
  %v280 = vpack.c.bf16 %v271, %v270
  %v281 = vpack.c.bf16 %v273, %v272
  %v290 = vunpack.c.l.b16 %v274
  %v291 = vunpack.c.h.b16 %v274
  %v292 = vunpack.c.l.b16 %v275
  %v293 = vunpack.c.h.b16 %v275
  %v294 = vunpack.c.l.b16 %v276
  %v295 = vunpack.c.h.b16 %v276
  %v296 = vunpack.c.l.b16 %v277
  %v297 = vunpack.c.h.b16 %v277
  %v298 = vunpack.c.l.b16 %v278
  %v299 = vunpack.c.h.b16 %v278
  %v300 = vunpack.c.l.b16 %v279
  %v301 = vunpack.c.h.b16 %v279
  %v302 = vunpack.c.l.b16 %v280
  %v303 = vunpack.c.h.b16 %v280
  %v304 = vunpack.c.l.b16 %v281
  %v305 = vunpack.c.h.b16 %v281
  %v306 = vpack.c.b16 %v290, %v290
  %v307 = vpack.c.b16 %v291, %v291
  %v308 = vpack.c.b16 %v292, %v292
  %v309 = vpack.c.b16 %v293, %v293
  %v310 = vpack.c.b16 %v294, %v294
  %v311 = vpack.c.b16 %v295, %v295
  %v312 = vpack.c.b16 %v296, %v296
  %v313 = vpack.c.b16 %v297, %v297
  %v314 = vpack.c.b16 %v298, %v298
  %v315 = vpack.c.b16 %v299, %v299
  %v316 = vpack.c.b16 %v300, %v300
  %v317 = vpack.c.b16 %v301, %v301
  %v318 = vpack.c.b16 %v302, %v302
  %v319 = vpack.c.b16 %v303, %v303
  %v320 = vpack.c.b16 %v304, %v304
  %v321 = vpack.c.b16 %v305, %v305
  %338 = vst [vmem:[%s4] sm:$0xf] %v306
  %339 = vst [vmem:[%s4 + $0x4] sm:$0xf] %v307
  %340 = vst [vmem:[%s4 + $0x8] sm:$0xf] %v308
  %341 = vst [vmem:[%s4 + $0xc] sm:$0xf] %v309
  %342 = vst [vmem:[%s4 + $0x10] sm:$0xf] %v310
  %343 = vst [vmem:[%s4 + $0x14] sm:$0xf] %v311
  %344 = vst [vmem:[%s4 + $0x18] sm:$0xf] %v312
  %345 = vst [vmem:[%s4 + $0x1c] sm:$0xf] %v313
  %346 = vst [vmem:[%s4 + $0x20] sm:$0xf] %v314
  %347 = vst [vmem:[%s4 + $0x24] sm:$0xf] %v315
  %348 = vst [vmem:[%s4 + $0x28] sm:$0xf] %v316
  %349 = vst [vmem:[%s4 + $0x2c] sm:$0xf] %v317
  %350 = vst [vmem:[%s4 + $0x30] sm:$0xf] %v318
  %351 = vst [vmem:[%s4 + $0x34] sm:$0xf] %v319
  %352 = vst [vmem:[%s4 + $0x38] sm:$0xf] %v320
  %353 = vst [vmem:[%s4 + $0x3c] sm:$0xf] %v321
  // Predicated region
  $region18: #{bottleneck_forward.6} parent=0 // pred_check
    _
  $region19: #{bottleneck_forward.6} parent=0 // pred_check_branch
    %355 = sbr.rel (0) target = $region21
  $region20: #{bottleneck_forward.6} parent=0 // pred_region
    _
  $region21: #{bottleneck_forward.6} parent=0 // pred_fallthru
    _
  // Predicated region
  $region22: #{bottleneck_forward.6} parent=0 // pred_check
    _
  $region23: #{bottleneck_forward.6} parent=0 // pred_check_branch
    %357 = sbr.rel (0) target = $region25
  $region24: #{bottleneck_forward.6} parent=0 // pred_region
    _
  $region25: #{bottleneck_forward.6} parent=0 // pred_fallthru
    _

// kernel: bottleneck_forward.7
$region0: #{bottleneck_forward.7}
  #allocation0 [shape = 'u32[]', space=smem, size = 0x4, offset = 0x4, fixed_abs, tag = 'smem constant byte address 0x4 - core index']
  #allocation1 [shape = 'u32[144,128]{1,0:T(1,128)}', space=vmem, size = 0x12000, scoped, tag = 'internal scratch']
  %s0 = inlined_call_operand.vmem [shape: bf16[128,32], index: 0, kind: input, shape index: {}]
  %s1 = inlined_call_operand.vmem [shape: bf16[32,128], index: 1, kind: input, shape index: {}]
  %s2 = inlined_call_operand.vmem [shape: f32[1,128], index: 2, kind: input, shape index: {}]
  %s3 = inlined_call_operand.vmem [shape: f32[1,128], index: 3, kind: input, shape index: {}]
  %s4 = inlined_call_operand.vmem [shape: bf16[128,128], index: 4, kind: input, shape index: {}]
  %s5 = inlined_call_operand.hbm [shape: f32[128,128], index: 5, kind: output, shape index: {}]
  %s6 = sld [smem:[#allocation0]]
  $region30: #{bottleneck_forward.7} parent=0
    _
  %s8 = ssub.s32 1, %s6
  %s9 = scalar_select 0, %s8, %s6
  $region1: #{bottleneck_forward.7} parent=0
    #allocation2 [shape = 'u8[65536]{0}', space=vmem, size = 0x10000, scoped, tag = 'output window, operand 0, single buffered']
    #allocation3 [shape = 's32[1]{0}', space=sflag, size = 0x4, scoped, tag = 'scoped memory for bottleneck_forward.7']
    %10 = vsyncpa [#allocation3], 0
    // Predicated region
    $region2: #{bottleneck_forward.7} parent=1 // pred_check
      _
    $region3: #{bottleneck_forward.7} parent=1 // pred_check_branch
      %12 = sbr.rel (0) target = $region5
    $region4: #{bottleneck_forward.7} parent=1 // pred_region
      _
    $region5: #{bottleneck_forward.7} parent=1 // pred_fallthru
      _
    // Predicated region
    $region6: #{bottleneck_forward.7} parent=1 // pred_check
      _
    $region7: #{bottleneck_forward.7} parent=1 // pred_check_branch
      %14 = sbr.rel (0) target = $region9
    $region8: #{bottleneck_forward.7} parent=1 // pred_region
      _
    $region9: #{bottleneck_forward.7} parent=1 // pred_fallthru
      _
    // Predicated region
    $region10: #{bottleneck_forward.7} parent=1 // pred_check
      _
    $region11: #{bottleneck_forward.7} parent=1 // pred_check_branch
      %16 = sbr.rel (0) target = $region13
    $region12: #{bottleneck_forward.7} parent=1 // pred_region
      _
    $region13: #{bottleneck_forward.7} parent=1 // pred_fallthru
      _
    // Predicated region
    $region14: #{bottleneck_forward.7} parent=1 // pred_check
      _
    $region15: #{bottleneck_forward.7} parent=1 // pred_check_branch
      %18 = sbr.rel (0) target = $region17
    $region16: #{bottleneck_forward.7} parent=1 // pred_region
      _
    $region17: #{bottleneck_forward.7} parent=1 // pred_fallthru
      _
    // Predicated region
    $region18: #{bottleneck_forward.7} parent=1 // pred_check
      _
    $region19: #{bottleneck_forward.7} parent=1 // pred_check_branch
      %20 = sbr.rel (0) target = $region21
    $region20: #{bottleneck_forward.7} parent=1 // pred_region
      _
    $region21: #{bottleneck_forward.7} parent=1 // pred_fallthru
      _
    %v22 = vld [vmem:[%s0] sm:$0xf]
    %v23 = vld [vmem:[%s0 + $0x4] sm:$0xf]
    %v24 = vld [vmem:[%s0 + $0x8] sm:$0xf]
    %v25 = vld [vmem:[%s0 + $0xc] sm:$0xf]
    %v26 = vld [vmem:[%s0 + $0x10] sm:$0xf]
    %v27 = vld [vmem:[%s0 + $0x14] sm:$0xf]
    %v28 = vld [vmem:[%s0 + $0x18] sm:$0xf]
    %v29 = vld [vmem:[%s0 + $0x1c] sm:$0xf]
    %v30 = vld [vmem:[%s0 + $0x20] sm:$0xf]
    %v31 = vld [vmem:[%s0 + $0x24] sm:$0xf]
    %v32 = vld [vmem:[%s0 + $0x28] sm:$0xf]
    %v33 = vld [vmem:[%s0 + $0x2c] sm:$0xf]
    %v34 = vld [vmem:[%s0 + $0x30] sm:$0xf]
    %v35 = vld [vmem:[%s0 + $0x34] sm:$0xf]
    %v36 = vld [vmem:[%s0 + $0x38] sm:$0xf]
    %v37 = vld [vmem:[%s0 + $0x3c] sm:$0xf]
    %v38 = vld [vmem:[%s1] sm:$0xf]
    %v39 = vld [vmem:[%s1 + $0x4] sm:$0xf]
    %v40 = vld [vmem:[%s1 + $0x8] sm:$0xf]
    %v41 = vld [vmem:[%s1 + $0xc] sm:$0xf]
    %v58 = vunpack.c.l.b16 %v22
    %v59 = vunpack.c.l.b16 %v23
    %v60 = vunpack.c.l.b16 %v24
    %v61 = vunpack.c.l.b16 %v25
    %v62 = vunpack.c.l.b16 %v26
    %v63 = vunpack.c.l.b16 %v27
    %v64 = vunpack.c.l.b16 %v28
    %v65 = vunpack.c.l.b16 %v29
    %v66 = vunpack.c.l.b16 %v30
    %v67 = vunpack.c.l.b16 %v31
    %v68 = vunpack.c.l.b16 %v32
    %v69 = vunpack.c.l.b16 %v33
    %v70 = vunpack.c.l.b16 %v34
    %v71 = vunpack.c.l.b16 %v35
    %v72 = vunpack.c.l.b16 %v36
    %v73 = vunpack.c.l.b16 %v37
    %v74 = vpack.c.b16 %v59, %v58
    %v75 = vpack.c.b16 %v61, %v60
    %v76 = vpack.c.b16 %v63, %v62
    %v77 = vpack.c.b16 %v65, %v64
    %v78 = vpack.c.b16 %v67, %v66
    %v79 = vpack.c.b16 %v69, %v68
    %v80 = vpack.c.b16 %v71, %v70
    %v81 = vpack.c.b16 %v73, %v72
    %v86 = vunpack.c.l.b16 %v38
    %v87 = vunpack.c.l.b16 %v39
    %v88 = vunpack.c.l.b16 %v40
    %v89 = vunpack.c.l.b16 %v41
    %v90 = vpack.c.b16 %v87, %v86
    %v91 = vpack.c.b16 %v89, %v88
    %vm94 = vcmask 261120
    %v96 = vsel %vm94, %v74, 0
    %v99 = vsel %vm94, %v75, 0
    %v102 = vsel %vm94, %v76, 0
    %v105 = vsel %vm94, %v77, 0
    %v108 = vsel %vm94, %v78, 0
    %v111 = vsel %vm94, %v79, 0
    %v114 = vsel %vm94, %v80, 0
    %v117 = vsel %vm94, %v81, 0
    %119 = vmatprep.subr.bf16.mxu0 0
    %120 = vmatpush1.bf16.msra.mxu0 0
    %121 = vmatprep.subr.bf16.mxu0 0
    %122 = vmatpush1.bf16.msra.mxu0 0
    %123 = vmatprep.subr.bf16.mxu0 0
    %124 = vmatpush1.bf16.msra.mxu0 0
    %125 = vmatprep.subr.bf16.mxu0 0
    %126 = vmatpush1.bf16.msra.mxu0 0
    %127 = vmatprep.subr.bf16.mxu0 0
    %128 = vmatpush1.bf16.msra.mxu0 0
    %129 = vmatprep.subr.bf16.mxu0 0
    %130 = vmatpush1.bf16.msra.mxu0 0
    %131 = vmatprep.subr.bf16.mxu0 0
    %132 = vmatpush1.bf16.msra.mxu0 %v91
    %133 = vmatprep.subr.bf16.mxu0 0
    %134 = vmatpush1.bf16.msra.mxu0 %v90
    %135 = vmatprep.subr.bf16.mxu0 0
    %136 = vmatpush2.bf16.msra.mxu0 0
    %137 = vmatprep.subr.bf16.mxu0 0
    %138 = vmatpush2.bf16.msra.mxu0 0
    %139 = vmatprep.subr.bf16.mxu0 0
    %140 = vmatpush2.bf16.msra.mxu0 0
    %141 = vmatprep.subr.bf16.mxu0 0
    %142 = vmatpush2.bf16.msra.mxu0 0
    %143 = vmatprep.subr.bf16.mxu0 0
    %144 = vmatpush2.bf16.msra.mxu0 0
    %145 = vmatprep.subr.bf16.mxu0 0
    %146 = vmatpush2.bf16.msra.mxu0 0
    %147 = vmatprep.subr.bf16.mxu0 0
    %148 = vmatpush2.bf16.msra.mxu0 0
    %149 = vmatprep.subr.bf16.mxu0 0
    %150 = vmatpush2.bf16.msra.mxu0 0
    %151 = vmatprep.mubr.bf16.mxu0 0
    %152 = vmatmul.mubr.bf16.gmra.mxu0 %v96
    %v153 = vpop.f32.mrf.mxu0
    %v154 = vadd.f32 0.0, %v153
    %v155 = vpop.f32.mrf.mxu0
    %v156 = vpop.f32.mrf.mxu0
    %v157 = vadd.f32 0.0, %v156
    %v158 = vpop.f32.mrf.mxu0
    %159 = vmatprep.mubr.bf16.mxu0 0
    %160 = vmatmul.mubr.bf16.gmra.mxu0 %v99
    %v161 = vpop.f32.mrf.mxu0
    %v162 = vadd.f32 0.0, %v161
    %v163 = vpop.f32.mrf.mxu0
    %v164 = vpop.f32.mrf.mxu0
    %v165 = vadd.f32 0.0, %v164
    %v166 = vpop.f32.mrf.mxu0
    %167 = vmatprep.mubr.bf16.mxu0 0
    %168 = vmatmul.mubr.bf16.gmra.mxu0 %v102
    %v169 = vpop.f32.mrf.mxu0
    %v170 = vadd.f32 0.0, %v169
    %v171 = vpop.f32.mrf.mxu0
    %v172 = vpop.f32.mrf.mxu0
    %v173 = vadd.f32 0.0, %v172
    %v174 = vpop.f32.mrf.mxu0
    %175 = vmatprep.mubr.bf16.mxu0 0
    %176 = vmatmul.mubr.bf16.gmra.mxu0 %v105
    %v177 = vpop.f32.mrf.mxu0
    %v178 = vadd.f32 0.0, %v177
    %v179 = vpop.f32.mrf.mxu0
    %v180 = vpop.f32.mrf.mxu0
    %v181 = vadd.f32 0.0, %v180
    %v182 = vpop.f32.mrf.mxu0
    %183 = vmatprep.mubr.bf16.mxu0 0
    %184 = vmatmul.mubr.bf16.gmra.mxu0 %v108
    %v185 = vpop.f32.mrf.mxu0
    %v186 = vadd.f32 0.0, %v185
    %v187 = vpop.f32.mrf.mxu0
    %v188 = vpop.f32.mrf.mxu0
    %v189 = vadd.f32 0.0, %v188
    %v190 = vpop.f32.mrf.mxu0
    %191 = vmatprep.mubr.bf16.mxu0 0
    %192 = vmatmul.mubr.bf16.gmra.mxu0 %v111
    %v193 = vpop.f32.mrf.mxu0
    %v194 = vadd.f32 0.0, %v193
    %v195 = vpop.f32.mrf.mxu0
    %v196 = vpop.f32.mrf.mxu0
    %v197 = vadd.f32 0.0, %v196
    %v198 = vpop.f32.mrf.mxu0
    %199 = vmatprep.mubr.bf16.mxu0 0
    %200 = vmatmul.mubr.bf16.gmra.mxu0 %v114
    %v201 = vpop.f32.mrf.mxu0
    %v202 = vadd.f32 0.0, %v201
    %v203 = vpop.f32.mrf.mxu0
    %v204 = vpop.f32.mrf.mxu0
    %v205 = vadd.f32 0.0, %v204
    %v206 = vpop.f32.mrf.mxu0
    %207 = vmatprep.mubr.bf16.mxu0 0
    %208 = vmatmul.mubr.bf16.gmra.mxu0 %v117
    %v209 = vpop.f32.mrf.mxu0
    %v210 = vadd.f32 0.0, %v209
    %v211 = vpop.f32.mrf.mxu0
    %v212 = vpop.f32.mrf.mxu0
    %v213 = vadd.f32 0.0, %v212
    %v214 = vpop.f32.mrf.mxu0
    %215 = vdwg.mxu0
    %v216 = vld [vmem:[%s2] sm:$0x1]
    %v218 = vlaneseq
    %v219 = vshrl.u32 %v218, 7
    %v220 = vsub.s32 0, %v219
    %v221 = vrot.slane %v216, %v220
    %v223 = vmul.f32 %v154, %v221
    %v224 = vmul.f32 %v157, %v221
    %v225 = vmul.f32 %v162, %v221
    %v226 = vmul.f32 %v165, %v221
    %v227 = vmul.f32 %v170, %v221
    %v228 = vmul.f32 %v173, %v221
    %v229 = vmul.f32 %v178, %v221
    %v230 = vmul.f32 %v181, %v221
    %v231 = vmul.f32 %v186, %v221
    %v232 = vmul.f32 %v189, %v221
    %v233 = vmul.f32 %v194, %v221
    %v234 = vmul.f32 %v197, %v221
    %v235 = vmul.f32 %v202, %v221
    %v236 = vmul.f32 %v205, %v221
    %v237 = vmul.f32 %v210, %v221
    %v238 = vmul.f32 %v213, %v221
    %v239 = vld [vmem:[%s3] sm:$0x1]
    %v241 = vlaneseq
    %v242 = vshrl.u32 %v241, 7
    %v243 = vsub.s32 0, %v242
    %v244 = vrot.slane %v239, %v243
    %v246 = vadd.f32 %v223, %v244
    %v247 = vadd.f32 %v224, %v244
    %v248 = vadd.f32 %v225, %v244
    %v249 = vadd.f32 %v226, %v244
    %v250 = vadd.f32 %v227, %v244
    %v251 = vadd.f32 %v228, %v244
    %v252 = vadd.f32 %v229, %v244
    %v253 = vadd.f32 %v230, %v244
    %v254 = vadd.f32 %v231, %v244
    %v255 = vadd.f32 %v232, %v244
    %v256 = vadd.f32 %v233, %v244
    %v257 = vadd.f32 %v234, %v244
    %v258 = vadd.f32 %v235, %v244
    %v259 = vadd.f32 %v236, %v244
    %v260 = vadd.f32 %v237, %v244
    %v261 = vadd.f32 %v238, %v244
    %v262 = vld [vmem:[%s4] sm:$0xf]
    %v263 = vld [vmem:[%s4 + $0x4] sm:$0xf]
    %v264 = vld [vmem:[%s4 + $0x8] sm:$0xf]
    %v265 = vld [vmem:[%s4 + $0xc] sm:$0xf]
    %v266 = vld [vmem:[%s4 + $0x10] sm:$0xf]
    %v267 = vld [vmem:[%s4 + $0x14] sm:$0xf]
    %v268 = vld [vmem:[%s4 + $0x18] sm:$0xf]
    %v269 = vld [vmem:[%s4 + $0x1c] sm:$0xf]
    %v270 = vld [vmem:[%s4 + $0x20] sm:$0xf]
    %v271 = vld [vmem:[%s4 + $0x24] sm:$0xf]
    %v272 = vld [vmem:[%s4 + $0x28] sm:$0xf]
    %v273 = vld [vmem:[%s4 + $0x2c] sm:$0xf]
    %v274 = vld [vmem:[%s4 + $0x30] sm:$0xf]
    %v275 = vld [vmem:[%s4 + $0x34] sm:$0xf]
    %v276 = vld [vmem:[%s4 + $0x38] sm:$0xf]
    %v277 = vld [vmem:[%s4 + $0x3c] sm:$0xf]
    %v278 = vunpack.c.l.bf16 %v262
    %v279 = vunpack.c.l.bf16 %v263
    %v280 = vunpack.c.l.bf16 %v264
    %v281 = vunpack.c.l.bf16 %v265
    %v282 = vunpack.c.l.bf16 %v266
    %v283 = vunpack.c.l.bf16 %v267
    %v284 = vunpack.c.l.bf16 %v268
    %v285 = vunpack.c.l.bf16 %v269
    %v286 = vunpack.c.l.bf16 %v270
    %v287 = vunpack.c.l.bf16 %v271
    %v288 = vunpack.c.l.bf16 %v272
    %v289 = vunpack.c.l.bf16 %v273
    %v290 = vunpack.c.l.bf16 %v274
    %v291 = vunpack.c.l.bf16 %v275
    %v292 = vunpack.c.l.bf16 %v276
    %v293 = vunpack.c.l.bf16 %v277
    %v294 = vadd.f32 %v246, %v278
    %v295 = vadd.f32 %v247, %v279
    %v296 = vadd.f32 %v248, %v280
    %v297 = vadd.f32 %v249, %v281
    %v298 = vadd.f32 %v250, %v282
    %v299 = vadd.f32 %v251, %v283
    %v300 = vadd.f32 %v252, %v284
    %v301 = vadd.f32 %v253, %v285
    %v302 = vadd.f32 %v254, %v286
    %v303 = vadd.f32 %v255, %v287
    %v304 = vadd.f32 %v256, %v288
    %v305 = vadd.f32 %v257, %v289
    %v306 = vadd.f32 %v258, %v290
    %v307 = vadd.f32 %v259, %v291
    %v308 = vadd.f32 %v260, %v292
    %v309 = vadd.f32 %v261, %v293
    %v310 = vmax.f32 %v294, 0.0
    %v311 = vmax.f32 %v295, 0.0
    %v312 = vmax.f32 %v296, 0.0
    %v313 = vmax.f32 %v297, 0.0
    %v314 = vmax.f32 %v298, 0.0
    %v315 = vmax.f32 %v299, 0.0
    %v316 = vmax.f32 %v300, 0.0
    %v317 = vmax.f32 %v301, 0.0
    %v318 = vmax.f32 %v302, 0.0
    %v319 = vmax.f32 %v303, 0.0
    %v320 = vmax.f32 %v304, 0.0
    %v321 = vmax.f32 %v305, 0.0
    %v322 = vmax.f32 %v306, 0.0
    %v323 = vmax.f32 %v307, 0.0
    %v324 = vmax.f32 %v308, 0.0
    %v325 = vmax.f32 %v309, 0.0
    %326 = vst [vmem:[#allocation2] sm:$0xff] %v310
    %327 = vst [vmem:[#allocation2 + $0x8] sm:$0xff] %v311
    %328 = vst [vmem:[#allocation2 + $0x10] sm:$0xff] %v312
    %329 = vst [vmem:[#allocation2 + $0x18] sm:$0xff] %v313
    %330 = vst [vmem:[#allocation2 + $0x20] sm:$0xff] %v314
    %331 = vst [vmem:[#allocation2 + $0x28] sm:$0xff] %v315
    %332 = vst [vmem:[#allocation2 + $0x30] sm:$0xff] %v316
    %333 = vst [vmem:[#allocation2 + $0x38] sm:$0xff] %v317
    %334 = vst [vmem:[#allocation2 + $0x40] sm:$0xff] %v318
    %335 = vst [vmem:[#allocation2 + $0x48] sm:$0xff] %v319
    %336 = vst [vmem:[#allocation2 + $0x50] sm:$0xff] %v320
    %337 = vst [vmem:[#allocation2 + $0x58] sm:$0xff] %v321
    %338 = vst [vmem:[#allocation2 + $0x60] sm:$0xff] %v322
    %339 = vst [vmem:[#allocation2 + $0x68] sm:$0xff] %v323
    %340 = vst [vmem:[#allocation2 + $0x70] sm:$0xff] %v324
    %341 = vst [vmem:[#allocation2 + $0x78] sm:$0xff] %v325
    // Predicated region
    $region22: #{bottleneck_forward.7} parent=1 // pred_check
      _
    $region23: #{bottleneck_forward.7} parent=1 // pred_check_branch
      %343 = sbr.rel (0) target = $region25
    $region24: #{bottleneck_forward.7} parent=1 // pred_region
      %s345 = ssub.s32 2048, 2048
      %346 = vsyncadd [#allocation3], %s345
      %s347 = sshll.u32 [#allocation2], 4
      %s348 = int_to_ptr.vmem [resolvable:$true] %s347
      %353 = dma.vmem_to_hbm [thread:$0]  %s348, 2048, %s5, [#allocation3], 128, 128, 8
    $region25: #{bottleneck_forward.7} parent=1 // pred_fallthru
      _
    // Predicated region
    $region26: #{bottleneck_forward.7} parent=1 // pred_check
      _
    $region27: #{bottleneck_forward.7} parent=1 // pred_check_branch
      %355 = sbr.rel (0) target = $region29
    $region28: #{bottleneck_forward.7} parent=1 // pred_region
      %356 = dma.done [#allocation3], 2048
    $region29: #{bottleneck_forward.7} parent=1 // pred_fallthru
      _
    %357 = vsyncpa [#allocation3], 1

// kernel: bottleneck_forward.5
$region0: #{bottleneck_forward.5}
  #allocation0 [shape = 'u32[]', space=smem, size = 0x4, offset = 0x4, fixed_abs, tag = 'smem constant byte address 0x4 - core index']
  #allocation1 [shape = 'u32[144,128]{1,0:T(1,128)}', space=vmem, size = 0x12000, scoped, tag = 'internal scratch']
  %s0 = inlined_call_operand.vmem [shape: bf16[2,9,2,2,9,32], index: 0, kind: input, shape index: {}]
  %s1 = inlined_call_operand.vmem [shape: bf16[9,32,32], index: 1, kind: input, shape index: {}]
  %s2 = inlined_call_operand.vmem [shape: f32[1,32], index: 2, kind: input, shape index: {}]
  %s3 = inlined_call_operand.vmem [shape: f32[1,32], index: 3, kind: input, shape index: {}]
  %s4 = inlined_call_operand.vmem [shape: bf16[2,64,32], index: 4, kind: output, shape index: {}]
  %s5 = sld [smem:[#allocation0]]
  $region49: #{bottleneck_forward.5} parent=0
    _
  %s7 = ssub.s32 1, %s5
  %s8 = scalar_select 0, %s7, %s5
  loop: start=0, step=1, limit=4
  $region2: #{bottleneck_forward.5} parent=0 // loop_pre_header
    _
  $region3: #{bottleneck_forward.5} parent=0 // loop_header
    %s10 = sphi 0, %s14
    %p11 = scmp.ge.s32.totalorder %s10, 4
    %s20 = sphi 0, %s22
    %s23 = sphi 0, %s20
    %s24 = sphi 0, %s23
    %s40 = sphi 0, %s24
    %s44 = sphi 0, %s44
    %s46 = sphi 0, %s44
    %s47 = sphi 0, %s46
    %s61 = sphi 0, %s47
    %s65 = sphi 0, %s65
    %s67 = sphi 0, %s65
    %s68 = sphi 0, %s67
    %s82 = sphi 0, %s68
    %s86 = sphi 0, %s86
    %s88 = sphi 0, %s86
    %s89 = sphi 0, %s88
    %s103 = sphi 0, %s89
    %s109 = sphi 0, %s111
    %s112 = sphi 0, %s109
    %s113 = sphi 0, %s112
    %s129 = sphi 0, %s113
  $region4: #{bottleneck_forward.5} parent=0 // loop_header_branch
    %13 = sbr.rel (%p11) target = $region8
  $region5: #{bottleneck_forward.5} parent=0 // loop_body
    %s15 = ssub.s32 %s10, 1
    %s16 = ssub.s32 %s10, 2
    %s17 = sadd.s32 %s10, 1
    %s18 = ssub.s32 %s10, %s17
    %p19 = scmp.eq.s32.totalorder %s18, 0
    %s21 = sadd.s32 %s20, 1
    %s22 = scalar_select %p19, %s20, %s21
    %p25 = pneg %p19
    %p26 = scmp.eq.s32.totalorder %s10, 1
    %p27 = por %p25, %p26
    %p28 = scmp.ne.s32.totalorder %s20, %s23
    %p29 = scmp.eq.s32.totalorder %s10, 0
    %p30 = por %p28, %p29
    %p31 = scmp.ne.s32.totalorder %s20, %s23
    %p32 = scmp.eq.s32.totalorder %s15, 1
    %p33 = por %p31, %p32
    %p34 = scmp.ne.s32.totalorder %s23, %s24
    %p35 = scmp.eq.s32.totalorder %s15, 0
    %p36 = por %p34, %p35
    %p37 = scmp.ne.s32.totalorder %s23, %s24
    %p38 = scmp.eq.s32.totalorder %s16, 1
    %p39 = por %p37, %p38
    %p41 = scmp.ne.s32.totalorder %s24, %s40
    %p42 = scmp.eq.s32.totalorder %s16, 0
    %p43 = por %p41, %p42
    %s45 = sadd.s32 %s44, 1
    %p48 = scmp.eq.s32.totalorder %s10, 1
    %p49 = scmp.ne.s32.totalorder %s44, %s46
    %p50 = scmp.eq.s32.totalorder %s10, 0
    %p51 = por %p49, %p50
    %p52 = scmp.ne.s32.totalorder %s44, %s46
    %p53 = scmp.eq.s32.totalorder %s15, 1
    %p54 = por %p52, %p53
    %p55 = scmp.ne.s32.totalorder %s46, %s47
    %p56 = scmp.eq.s32.totalorder %s15, 0
    %p57 = por %p55, %p56
    %p58 = scmp.ne.s32.totalorder %s46, %s47
    %p59 = scmp.eq.s32.totalorder %s16, 1
    %p60 = por %p58, %p59
    %p62 = scmp.ne.s32.totalorder %s47, %s61
    %p63 = scmp.eq.s32.totalorder %s16, 0
    %p64 = por %p62, %p63
    %s66 = sadd.s32 %s65, 1
    %p69 = scmp.eq.s32.totalorder %s10, 1
    %p70 = scmp.ne.s32.totalorder %s65, %s67
    %p71 = scmp.eq.s32.totalorder %s10, 0
    %p72 = por %p70, %p71
    %p73 = scmp.ne.s32.totalorder %s65, %s67
    %p74 = scmp.eq.s32.totalorder %s15, 1
    %p75 = por %p73, %p74
    %p76 = scmp.ne.s32.totalorder %s67, %s68
    %p77 = scmp.eq.s32.totalorder %s15, 0
    %p78 = por %p76, %p77
    %p79 = scmp.ne.s32.totalorder %s67, %s68
    %p80 = scmp.eq.s32.totalorder %s16, 1
    %p81 = por %p79, %p80
    %p83 = scmp.ne.s32.totalorder %s68, %s82
    %p84 = scmp.eq.s32.totalorder %s16, 0
    %p85 = por %p83, %p84
    %s87 = sadd.s32 %s86, 1
    %p90 = scmp.eq.s32.totalorder %s10, 1
    %p91 = scmp.ne.s32.totalorder %s86, %s88
    %p92 = scmp.eq.s32.totalorder %s10, 0
    %p93 = por %p91, %p92
    %p94 = scmp.ne.s32.totalorder %s86, %s88
    %p95 = scmp.eq.s32.totalorder %s15, 1
    %p96 = por %p94, %p95
    %p97 = scmp.ne.s32.totalorder %s88, %s89
    %p98 = scmp.eq.s32.totalorder %s15, 0
    %p99 = por %p97, %p98
    %p100 = scmp.ne.s32.totalorder %s88, %s89
    %p101 = scmp.eq.s32.totalorder %s16, 1
    %p102 = por %p100, %p101
    %p104 = scmp.ne.s32.totalorder %s89, %s103
    %p105 = scmp.eq.s32.totalorder %s16, 0
    %p106 = por %p104, %p105
    %s107 = ssub.s32 %s10, %s17
    %p108 = scmp.eq.s32.totalorder %s107, 0
    %s110 = sadd.s32 %s109, 1
    %s111 = scalar_select %p108, %s109, %s110
    %p114 = pneg %p108
    %p115 = scmp.eq.s32.totalorder %s10, 1
    %p116 = por %p114, %p115
    %p117 = scmp.ne.s32.totalorder %s109, %s112
    %p118 = scmp.eq.s32.totalorder %s10, 0
    %p119 = por %p117, %p118
    %p120 = scmp.ne.s32.totalorder %s109, %s112
    %p121 = scmp.eq.s32.totalorder %s15, 1
    %p122 = por %p120, %p121
    %p123 = scmp.ne.s32.totalorder %s112, %s113
    %p124 = scmp.eq.s32.totalorder %s15, 0
    %p125 = por %p123, %p124
    %p126 = scmp.ne.s32.totalorder %s112, %s113
    %p127 = scmp.eq.s32.totalorder %s16, 1
    %p128 = por %p126, %p127
    %p130 = scmp.ne.s32.totalorder %s113, %s129
    %p131 = scmp.eq.s32.totalorder %s16, 0
    %p132 = por %p130, %p131
    %p133 = scmp.le.s32.totalorder 1, %s10
    %p134 = scmp.lt.s32.totalorder %s10, 3
    %p135 = pnand %p133, %p134
    %p136 = pneg %p135
    // Predicated region
    $region9: #{bottleneck_forward.5} parent=5 // pred_check
      _
    $region10: #{bottleneck_forward.5} parent=5 // pred_check_branch
      %138 = sbr.rel (%p135) target = $region12
    $region11: #{bottleneck_forward.5} parent=5 // pred_region
      %s139 = ssub.s32 %s10, 1
      // Predicated region
      $region13: #{bottleneck_forward.5} parent=11 // pred_check
        %p140 = pneg %p57
      $region14: #{bottleneck_forward.5} parent=11 // pred_check_branch
        %142 = sbr.rel (%p140) target = $region16
      $region15: #{bottleneck_forward.5} parent=11 // pred_region
        _
      $region16: #{bottleneck_forward.5} parent=11 // pred_fallthru
        _
      // Predicated region
      $region17: #{bottleneck_forward.5} parent=11 // pred_check
        %p143 = pneg %p78
      $region18: #{bottleneck_forward.5} parent=11 // pred_check_branch
        %145 = sbr.rel (%p143) target = $region20
      $region19: #{bottleneck_forward.5} parent=11 // pred_region
        _
      $region20: #{bottleneck_forward.5} parent=11 // pred_fallthru
        _
      // Predicated region
      $region21: #{bottleneck_forward.5} parent=11 // pred_check
        %p146 = pneg %p99
      $region22: #{bottleneck_forward.5} parent=11 // pred_check_branch
        %148 = sbr.rel (%p146) target = $region24
      $region23: #{bottleneck_forward.5} parent=11 // pred_region
        _
      $region24: #{bottleneck_forward.5} parent=11 // pred_fallthru
        _
    $region12: #{bottleneck_forward.5} parent=5 // pred_fallthru
      _
    %p149 = scmp.lt.s32.totalorder %s10, 2
    // Predicated region
    $region25: #{bottleneck_forward.5} parent=5 // pred_check
      %p150 = pneg %p149
    $region26: #{bottleneck_forward.5} parent=5 // pred_check_branch
      %152 = sbr.rel (%p150) target = $region28
    $region27: #{bottleneck_forward.5} parent=5 // pred_region
      // Predicated region
      $region29: #{bottleneck_forward.5} parent=27 // pred_check
        %p153 = pneg %p30
      $region30: #{bottleneck_forward.5} parent=27 // pred_check_branch
        %155 = sbr.rel (%p153) target = $region32
      $region31: #{bottleneck_forward.5} parent=27 // pred_region
        %p156 = scmp.lt.s32.totalorder %s10, 1
        %s157 = scalar_select %p156, %s10, 1
        %s158 = smul.addr %s157, 72
        %s159 = smul.addr %s158, 4
        %s160 = scalar_lea.vmem %s0, %s159
      $region32: #{bottleneck_forward.5} parent=27 // pred_fallthru
        _
    $region28: #{bottleneck_forward.5} parent=5 // pred_fallthru
      _
    %p161 = scmp.le.s32.totalorder 1, %s10
    %p162 = scmp.lt.s32.totalorder %s10, 3
    %p163 = pnand %p161, %p162
    %p164 = pneg %p163
    // Predicated region
    $region33: #{bottleneck_forward.5} parent=5 // pred_check
      _
    $region34: #{bottleneck_forward.5} parent=5 // pred_check_branch
      %166 = sbr.rel (%p163) target = $region36
    $region35: #{bottleneck_forward.5} parent=5 // pred_region
      %s167 = ssub.s32 %s10, 1
      %p168 = scmp.lt.s32.totalorder %s15, 1
      %s169 = scalar_select %p168, %s15, 1
      %s170 = smul.addr %s169, 72
      %s171 = smul.addr %s170, 4
      %s172 = scalar_lea.vmem %s0, %s171
      %p173 = pneg %p36
      %p174 = pneg %p33
      %p175 = pneg %p57
      %p176 = pneg %p54
      %p177 = pneg %p78
      %p178 = pneg %p75
      %p179 = pneg %p99
      %p180 = pneg %p96
      %p181 = pneg %p125
      %p182 = pneg %p122
      %p183 = scmp.lt.s32.totalorder %s15, 1
      %s184 = scalar_select %p183, %s15, 1
      %s185 = smul.addr %s184, 8
      %s186 = smul.addr %s185, 4
      %s187 = scalar_lea.vmem %s4, %s186
      %p188 = scmp.lt.s32.totalorder %s15, 1
      %s189 = scalar_select %p188, %s15, 1
      %s190 = smul.addr %s189, 72
      %s191 = smul.addr %s190, 4
      %s192 = scalar_lea.vmem %s0, %s191
      %p193 = scmp.lt.s32.totalorder %s15, 1
      %s194 = scalar_select %p193, %s15, 1
      %s195 = smul.addr %s194, 8
      %s196 = smul.addr %s195, 4
      %s197 = scalar_lea.vmem %s4, %s196
      %v199 = vld [vmem:[%s192] sm:$0xf]
      %v200 = vld [vmem:[%s192 + $0x20] sm:$0xf]
      %v201 = vld [vmem:[%s192 + $0x40] sm:$0xf]
      %v202 = vld [vmem:[%s192 + $0x60] sm:$0xf]
      %v203 = vld [vmem:[%s192 + $0x80] sm:$0xf]
      %v204 = vld [vmem:[%s192 + $0xa0] sm:$0xf]
      %v205 = vld [vmem:[%s192 + $0xc0] sm:$0xf]
      %v206 = vld [vmem:[%s192 + $0xe0] sm:$0xf]
      %v207 = vld [vmem:[%s1] sm:$0xf]
      %v208 = vld [vmem:[%s1 + $0x4] sm:$0xf]
      %v209 = vld [vmem:[%s1 + $0x8] sm:$0xf]
      %v210 = vld [vmem:[%s1 + $0xc] sm:$0xf]
      %s211 = scalar_lea.vmem %s192, 8
      %v212 = vld [vmem:[%s211] sm:$0xf]
      %v213 = vld [vmem:[%s211 + $0x20] sm:$0xf]
      %v214 = vld [vmem:[%s211 + $0x40] sm:$0xf]
      %v215 = vld [vmem:[%s211 + $0x60] sm:$0xf]
      %v216 = vld [vmem:[%s211 + $0x80] sm:$0xf]
      %v217 = vld [vmem:[%s211 + $0xa0] sm:$0xf]
      %v218 = vld [vmem:[%s211 + $0xc0] sm:$0xf]
      %v219 = vld [vmem:[%s211 + $0xe0] sm:$0xf]
      %s220 = scalar_lea.vmem %s1, 16
      %v221 = vld [vmem:[%s220] sm:$0xf]
      %v222 = vld [vmem:[%s220 + $0x4] sm:$0xf]
      %v223 = vld [vmem:[%s220 + $0x8] sm:$0xf]
      %v224 = vld [vmem:[%s220 + $0xc] sm:$0xf]
      %v233 = vunpack.c.l.b16 %v212
      %v234 = vunpack.c.l.b16 %v213
      %v235 = vunpack.c.l.b16 %v214
      %v236 = vunpack.c.l.b16 %v215
      %v237 = vunpack.c.l.b16 %v216
      %v238 = vunpack.c.l.b16 %v217
      %v239 = vunpack.c.l.b16 %v218
      %v240 = vunpack.c.l.b16 %v219
      %v241 = vpack.c.b16 %v234, %v233
      %v242 = vpack.c.b16 %v236, %v235
      %v243 = vpack.c.b16 %v238, %v237
      %v244 = vpack.c.b16 %v240, %v239
      %v249 = vunpack.c.l.b16 %v221
      %v250 = vunpack.c.l.b16 %v222
      %v251 = vunpack.c.l.b16 %v223
      %v252 = vunpack.c.l.b16 %v224
      %v253 = vpack.c.b16 %v250, %v249
      %v254 = vpack.c.b16 %v252, %v251
      %vm257 = vcmask 261120
      %v259 = vsel %vm257, %v241, 0
      %v262 = vsel %vm257, %v242, 0
      %v265 = vsel %vm257, %v243, 0
      %v268 = vsel %vm257, %v244, 0
      %270 = vmatprep.subr.bf16.mxu0 0
      %271 = vmatpush1.bf16.msra.mxu0 0
      %272 = vmatprep.subr.bf16.mxu0 0
      %273 = vmatpush1.bf16.msra.mxu0 0
      %274 = vmatprep.subr.bf16.mxu0 0
      %275 = vmatpush1.bf16.msra.mxu0 0
      %276 = vmatprep.subr.bf16.mxu0 0
      %277 = vmatpush1.bf16.msra.mxu0 0
      %278 = vmatprep.subr.bf16.mxu0 0
      %279 = vmatpush1.bf16.msra.mxu0 0
      %280 = vmatprep.subr.bf16.mxu0 0
      %281 = vmatpush1.bf16.msra.mxu0 0
      %282 = vmatprep.subr.bf16.mxu0 0
      %283 = vmatpush1.bf16.msra.mxu0 %v254
      %284 = vmatprep.subr.bf16.mxu0 0
      %285 = vmatpush1.bf16.msra.mxu0 %v253
      %286 = vmatprep.subr.bf16.mxu0 0
      %287 = vmatpush2.bf16.msra.mxu0 0
      %288 = vmatprep.subr.bf16.mxu0 0
      %289 = vmatpush2.bf16.msra.mxu0 0
      %290 = vmatprep.subr.bf16.mxu0 0
      %291 = vmatpush2.bf16.msra.mxu0 0
      %292 = vmatprep.subr.bf16.mxu0 0
      %293 = vmatpush2.bf16.msra.mxu0 0
      %294 = vmatprep.subr.bf16.mxu0 0
      %295 = vmatpush2.bf16.msra.mxu0 0
      %296 = vmatprep.subr.bf16.mxu0 0
      %297 = vmatpush2.bf16.msra.mxu0 0
      %298 = vmatprep.subr.bf16.mxu0 0
      %299 = vmatpush2.bf16.msra.mxu0 0
      %300 = vmatprep.subr.bf16.mxu0 0
      %301 = vmatpush2.bf16.msra.mxu0 0
      %302 = vmatprep.mubr.bf16.mxu0 0
      %303 = vmatmul.mubr.bf16.gmra.mxu0 %v259
      %v304 = vpop.f32.mrf.mxu0
      %v305 = vadd.f32 0.0, %v304
      %v306 = vpop.f32.mrf.mxu0
      %v307 = vpop.f32.mrf.mxu0
      %v308 = vadd.f32 0.0, %v307
      %v309 = vpop.f32.mrf.mxu0
      %310 = vmatprep.mubr.bf16.mxu0 0
      %311 = vmatmul.mubr.bf16.gmra.mxu0 %v262
      %v312 = vpop.f32.mrf.mxu0
      %v313 = vadd.f32 0.0, %v312
      %v314 = vpop.f32.mrf.mxu0
      %v315 = vpop.f32.mrf.mxu0
      %v316 = vadd.f32 0.0, %v315
      %v317 = vpop.f32.mrf.mxu0
      %318 = vmatprep.mubr.bf16.mxu0 0
      %319 = vmatmul.mubr.bf16.gmra.mxu0 %v265
      %v320 = vpop.f32.mrf.mxu0
      %v321 = vadd.f32 0.0, %v320
      %v322 = vpop.f32.mrf.mxu0
      %v323 = vpop.f32.mrf.mxu0
      %v324 = vadd.f32 0.0, %v323
      %v325 = vpop.f32.mrf.mxu0
      %326 = vmatprep.mubr.bf16.mxu0 0
      %327 = vmatmul.mubr.bf16.gmra.mxu0 %v268
      %v328 = vpop.f32.mrf.mxu0
      %v329 = vadd.f32 0.0, %v328
      %v330 = vpop.f32.mrf.mxu0
      %v331 = vpop.f32.mrf.mxu0
      %v332 = vadd.f32 0.0, %v331
      %v333 = vpop.f32.mrf.mxu0
      %334 = vdwg.mxu0
      %v343 = vunpack.c.l.b16 %v199
      %v344 = vunpack.c.l.b16 %v200
      %v345 = vunpack.c.l.b16 %v201
      %v346 = vunpack.c.l.b16 %v202
      %v347 = vunpack.c.l.b16 %v203
      %v348 = vunpack.c.l.b16 %v204
      %v349 = vunpack.c.l.b16 %v205
      %v350 = vunpack.c.l.b16 %v206
      %v351 = vpack.c.b16 %v344, %v343
      %v352 = vpack.c.b16 %v346, %v345
      %v353 = vpack.c.b16 %v348, %v347
      %v354 = vpack.c.b16 %v350, %v349
      %v359 = vunpack.c.l.b16 %v207
      %v360 = vunpack.c.l.b16 %v208
      %v361 = vunpack.c.l.b16 %v209
      %v362 = vunpack.c.l.b16 %v210
      %v363 = vpack.c.b16 %v360, %v359
      %v364 = vpack.c.b16 %v362, %v361
      %v368 = vsel %vm257, %v351, 0
      %v371 = vsel %vm257, %v352, 0
      %v374 = vsel %vm257, %v353, 0
      %v377 = vsel %vm257, %v354, 0
      %379 = vmatprep.subr.bf16.mxu0 0
      %380 = vmatpush1.bf16.msra.mxu0 0
      %381 = vmatprep.subr.bf16.mxu0 0
      %382 = vmatpush1.bf16.msra.mxu0 0
      %383 = vmatprep.subr.bf16.mxu0 0
      %384 = vmatpush1.bf16.msra.mxu0 0
      %385 = vmatprep.subr.bf16.mxu0 0
      %386 = vmatpush1.bf16.msra.mxu0 0
      %387 = vmatprep.subr.bf16.mxu0 0
      %388 = vmatpush1.bf16.msra.mxu0 0
      %389 = vmatprep.subr.bf16.mxu0 0
      %390 = vmatpush1.bf16.msra.mxu0 0
      %391 = vmatprep.subr.bf16.mxu0 0
      %392 = vmatpush1.bf16.msra.mxu0 %v364
      %393 = vmatprep.subr.bf16.mxu0 0
      %394 = vmatpush1.bf16.msra.mxu0 %v363
      %395 = vmatprep.subr.bf16.mxu0 0
      %396 = vmatpush2.bf16.msra.mxu0 0
      %397 = vmatprep.subr.bf16.mxu0 0
      %398 = vmatpush2.bf16.msra.mxu0 0
      %399 = vmatprep.subr.bf16.mxu0 0
      %400 = vmatpush2.bf16.msra.mxu0 0
      %401 = vmatprep.subr.bf16.mxu0 0
      %402 = vmatpush2.bf16.msra.mxu0 0
      %403 = vmatprep.subr.bf16.mxu0 0
      %404 = vmatpush2.bf16.msra.mxu0 0
      %405 = vmatprep.subr.bf16.mxu0 0
      %406 = vmatpush2.bf16.msra.mxu0 0
      %407 = vmatprep.subr.bf16.mxu0 0
      %408 = vmatpush2.bf16.msra.mxu0 0
      %409 = vmatprep.subr.bf16.mxu0 0
      %410 = vmatpush2.bf16.msra.mxu0 0
      %411 = vmatprep.mubr.bf16.mxu0 0
      %412 = vmatmul.mubr.bf16.gmra.mxu0 %v368
      %v413 = vpop.f32.mrf.mxu0
      %v414 = vadd.f32 %v305, %v413
      %v415 = vpop.f32.mrf.mxu0
      %v416 = vpop.f32.mrf.mxu0
      %v417 = vadd.f32 %v308, %v416
      %v418 = vpop.f32.mrf.mxu0
      %419 = vmatprep.mubr.bf16.mxu0 0
      %420 = vmatmul.mubr.bf16.gmra.mxu0 %v371
      %v421 = vpop.f32.mrf.mxu0
      %v422 = vadd.f32 %v313, %v421
      %v423 = vpop.f32.mrf.mxu0
      %v424 = vpop.f32.mrf.mxu0
      %v425 = vadd.f32 %v316, %v424
      %v426 = vpop.f32.mrf.mxu0
      %427 = vmatprep.mubr.bf16.mxu0 0
      %428 = vmatmul.mubr.bf16.gmra.mxu0 %v374
      %v429 = vpop.f32.mrf.mxu0
      %v430 = vadd.f32 %v321, %v429
      %v431 = vpop.f32.mrf.mxu0
      %v432 = vpop.f32.mrf.mxu0
      %v433 = vadd.f32 %v324, %v432
      %v434 = vpop.f32.mrf.mxu0
      %435 = vmatprep.mubr.bf16.mxu0 0
      %436 = vmatmul.mubr.bf16.gmra.mxu0 %v377
      %v437 = vpop.f32.mrf.mxu0
      %v438 = vadd.f32 %v329, %v437
      %v439 = vpop.f32.mrf.mxu0
      %v440 = vpop.f32.mrf.mxu0
      %v441 = vadd.f32 %v332, %v440
      %v442 = vpop.f32.mrf.mxu0
      %443 = vdwg.mxu0
      %v444 = vld [vmem:[%s192] sm:$0xf]
      %v445 = vld [vmem:[%s192 + $0x4] sm:$0x1]
      %v446 = vld [vmem:[%s192 + $0x20] sm:$0xf]
      %v447 = vld [vmem:[%s192 + $0x24] sm:$0x1]
      %v448 = vld [vmem:[%s192 + $0x40] sm:$0xf]
      %v449 = vld [vmem:[%s192 + $0x44] sm:$0x1]
      %v450 = vld [vmem:[%s192 + $0x60] sm:$0xf]
      %v451 = vld [vmem:[%s192 + $0x64] sm:$0x1]
      %v452 = vld [vmem:[%s192 + $0x80] sm:$0xf]
      %v453 = vld [vmem:[%s192 + $0x84] sm:$0x1]
      %v454 = vld [vmem:[%s192 + $0xa0] sm:$0xf]
      %v455 = vld [vmem:[%s192 + $0xa4] sm:$0x1]
      %v456 = vld [vmem:[%s192 + $0xc0] sm:$0xf]
      %v457 = vld [vmem:[%s192 + $0xc4] sm:$0x1]
      %v458 = vld [vmem:[%s192 + $0xe0] sm:$0xf]
      %v459 = vld [vmem:[%s192 + $0xe4] sm:$0x1]
      %vm460 = vsmask.f32 3328
      %vm461 = vsmask.f32 7440
      %vm462 = vmor %vm460, %vm461
      %v464 = vshrl.u32 %v444, 16
      %v466 = vrot.slane %v464, 4
      %v467 = vshll.u32 %v444, 16
      %v469 = vrot.slane %v467, 5
      %v470 = vor.u32 %v466, %v469
      %v471 = vrot.slane %v470, 4
      %v473 = vshll.u32 %v445, 16
      %v475 = vrot.slane %v473, 5
      %v476 = vsel %vm462, %v471, %v475
      %v478 = vshrl.u32 %v446, 16
      %v480 = vrot.slane %v478, 4
      %v481 = vshll.u32 %v446, 16
      %v483 = vrot.slane %v481, 5
      %v484 = vor.u32 %v480, %v483
      %v485 = vrot.slane %v484, 4
      %v487 = vshll.u32 %v447, 16
      %v489 = vrot.slane %v487, 5
      %v490 = vsel %vm462, %v485, %v489
      %v492 = vshrl.u32 %v448, 16
      %v494 = vrot.slane %v492, 4
      %v495 = vshll.u32 %v448, 16
      %v497 = vrot.slane %v495, 5
      %v498 = vor.u32 %v494, %v497
      %v499 = vrot.slane %v498, 4
      %v501 = vshll.u32 %v449, 16
      %v503 = vrot.slane %v501, 5
      %v504 = vsel %vm462, %v499, %v503
      %v506 = vshrl.u32 %v450, 16
      %v508 = vrot.slane %v506, 4
      %v509 = vshll.u32 %v450, 16
      %v511 = vrot.slane %v509, 5
      %v512 = vor.u32 %v508, %v511
      %v513 = vrot.slane %v512, 4
      %v515 = vshll.u32 %v451, 16
      %v517 = vrot.slane %v515, 5
      %v518 = vsel %vm462, %v513, %v517
      %v520 = vshrl.u32 %v452, 16
      %v522 = vrot.slane %v520, 4
      %v523 = vshll.u32 %v452, 16
      %v525 = vrot.slane %v523, 5
      %v526 = vor.u32 %v522, %v525
      %v527 = vrot.slane %v526, 4
      %v529 = vshll.u32 %v453, 16
      %v531 = vrot.slane %v529, 5
      %v532 = vsel %vm462, %v527, %v531
      %v534 = vshrl.u32 %v454, 16
      %v536 = vrot.slane %v534, 4
      %v537 = vshll.u32 %v454, 16
      %v539 = vrot.slane %v537, 5
      %v540 = vor.u32 %v536, %v539
      %v541 = vrot.slane %v540, 4
      %v543 = vshll.u32 %v455, 16
      %v545 = vrot.slane %v543, 5
      %v546 = vsel %vm462, %v541, %v545
      %v548 = vshrl.u32 %v456, 16
      %v550 = vrot.slane %v548, 4
      %v551 = vshll.u32 %v456, 16
      %v553 = vrot.slane %v551, 5
      %v554 = vor.u32 %v550, %v553
      %v555 = vrot.slane %v554, 4
      %v557 = vshll.u32 %v457, 16
      %v559 = vrot.slane %v557, 5
      %v560 = vsel %vm462, %v555, %v559
      %v562 = vshrl.u32 %v458, 16
      %v564 = vrot.slane %v562, 4
      %v565 = vshll.u32 %v458, 16
      %v567 = vrot.slane %v565, 5
      %v568 = vor.u32 %v564, %v567
      %v569 = vrot.slane %v568, 4
      %v571 = vshll.u32 %v459, 16
      %v573 = vrot.slane %v571, 5
      %v574 = vsel %vm462, %v569, %v573
      %s575 = scalar_lea.vmem %s1, 32
      %v576 = vld [vmem:[%s575] sm:$0xf]
      %v577 = vld [vmem:[%s575 + $0x4] sm:$0xf]
      %v578 = vld [vmem:[%s575 + $0x8] sm:$0xf]
      %v579 = vld [vmem:[%s575 + $0xc] sm:$0xf]
      %v580 = vunpack.c.l.b16 %v476
      %v581 = vunpack.c.l.b16 %v490
      %v582 = vunpack.c.l.b16 %v504
      %v583 = vunpack.c.l.b16 %v518
      %v584 = vunpack.c.l.b16 %v532
      %v585 = vunpack.c.l.b16 %v546
      %v586 = vunpack.c.l.b16 %v560
      %v587 = vunpack.c.l.b16 %v574
      %v588 = vpack.c.b16 %v581, %v580
      %v589 = vpack.c.b16 %v583, %v582
      %v590 = vpack.c.b16 %v585, %v584
      %v591 = vpack.c.b16 %v587, %v586
      %v596 = vunpack.c.l.b16 %v576
      %v597 = vunpack.c.l.b16 %v577
      %v598 = vunpack.c.l.b16 %v578
      %v599 = vunpack.c.l.b16 %v579
      %v600 = vpack.c.b16 %v597, %v596
      %v601 = vpack.c.b16 %v599, %v598
      %v605 = vsel %vm257, %v588, 0
      %v608 = vsel %vm257, %v589, 0
      %v611 = vsel %vm257, %v590, 0
      %v614 = vsel %vm257, %v591, 0
      %616 = vmatprep.subr.bf16.mxu0 0
      %617 = vmatpush1.bf16.msra.mxu0 0
      %618 = vmatprep.subr.bf16.mxu0 0
      %619 = vmatpush1.bf16.msra.mxu0 0
      %620 = vmatprep.subr.bf16.mxu0 0
      %621 = vmatpush1.bf16.msra.mxu0 0
      %622 = vmatprep.subr.bf16.mxu0 0
      %623 = vmatpush1.bf16.msra.mxu0 0
      %624 = vmatprep.subr.bf16.mxu0 0
      %625 = vmatpush1.bf16.msra.mxu0 0
      %626 = vmatprep.subr.bf16.mxu0 0
      %627 = vmatpush1.bf16.msra.mxu0 0
      %628 = vmatprep.subr.bf16.mxu0 0
      %629 = vmatpush1.bf16.msra.mxu0 %v601
      %630 = vmatprep.subr.bf16.mxu0 0
      %631 = vmatpush1.bf16.msra.mxu0 %v600
      %632 = vmatprep.subr.bf16.mxu0 0
      %633 = vmatpush2.bf16.msra.mxu0 0
      %634 = vmatprep.subr.bf16.mxu0 0
      %635 = vmatpush2.bf16.msra.mxu0 0
      %636 = vmatprep.subr.bf16.mxu0 0
      %637 = vmatpush2.bf16.msra.mxu0 0
      %638 = vmatprep.subr.bf16.mxu0 0
      %639 = vmatpush2.bf16.msra.mxu0 0
      %640 = vmatprep.subr.bf16.mxu0 0
      %641 = vmatpush2.bf16.msra.mxu0 0
      %642 = vmatprep.subr.bf16.mxu0 0
      %643 = vmatpush2.bf16.msra.mxu0 0
      %644 = vmatprep.subr.bf16.mxu0 0
      %645 = vmatpush2.bf16.msra.mxu0 0
      %646 = vmatprep.subr.bf16.mxu0 0
      %647 = vmatpush2.bf16.msra.mxu0 0
      %648 = vmatprep.mubr.bf16.mxu0 0
      %649 = vmatmul.mubr.bf16.gmra.mxu0 %v605
      %v650 = vpop.f32.mrf.mxu0
      %v651 = vadd.f32 0.0, %v650
      %v652 = vpop.f32.mrf.mxu0
      %v653 = vpop.f32.mrf.mxu0
      %v654 = vadd.f32 0.0, %v653
      %v655 = vpop.f32.mrf.mxu0
      %656 = vmatprep.mubr.bf16.mxu0 0
      %657 = vmatmul.mubr.bf16.gmra.mxu0 %v608
      %v658 = vpop.f32.mrf.mxu0
      %v659 = vadd.f32 0.0, %v658
      %v660 = vpop.f32.mrf.mxu0
      %v661 = vpop.f32.mrf.mxu0
      %v662 = vadd.f32 0.0, %v661
      %v663 = vpop.f32.mrf.mxu0
      %664 = vmatprep.mubr.bf16.mxu0 0
      %665 = vmatmul.mubr.bf16.gmra.mxu0 %v611
      %v666 = vpop.f32.mrf.mxu0
      %v667 = vadd.f32 0.0, %v666
      %v668 = vpop.f32.mrf.mxu0
      %v669 = vpop.f32.mrf.mxu0
      %v670 = vadd.f32 0.0, %v669
      %v671 = vpop.f32.mrf.mxu0
      %672 = vmatprep.mubr.bf16.mxu0 0
      %673 = vmatmul.mubr.bf16.gmra.mxu0 %v614
      %v674 = vpop.f32.mrf.mxu0
      %v675 = vadd.f32 0.0, %v674
      %v676 = vpop.f32.mrf.mxu0
      %v677 = vpop.f32.mrf.mxu0
      %v678 = vadd.f32 0.0, %v677
      %v679 = vpop.f32.mrf.mxu0
      %680 = vdwg.mxu0
      %v681 = vadd.f32 %v414, %v651
      %v682 = vadd.f32 %v417, %v654
      %v683 = vadd.f32 %v422, %v659
      %v684 = vadd.f32 %v425, %v662
      %v685 = vadd.f32 %v430, %v667
      %v686 = vadd.f32 %v433, %v670
      %v687 = vadd.f32 %v438, %v675
      %v688 = vadd.f32 %v441, %v678
      %s689 = scalar_lea.vmem %s192, 16
      %v690 = vld [vmem:[%s689] sm:$0xf]
      %v691 = vld [vmem:[%s689 + $0x20] sm:$0xf]
      %v692 = vld [vmem:[%s689 + $0x40] sm:$0xf]
      %v693 = vld [vmem:[%s689 + $0x60] sm:$0xf]
      %v694 = vld [vmem:[%s689 + $0x80] sm:$0xf]
      %v695 = vld [vmem:[%s689 + $0xa0] sm:$0xf]
      %v696 = vld [vmem:[%s689 + $0xc0] sm:$0xf]
      %v697 = vld [vmem:[%s689 + $0xe0] sm:$0xf]
      %s698 = scalar_lea.vmem %s1, 48
      %v699 = vld [vmem:[%s698] sm:$0xf]
      %v700 = vld [vmem:[%s698 + $0x4] sm:$0xf]
      %v701 = vld [vmem:[%s698 + $0x8] sm:$0xf]
      %v702 = vld [vmem:[%s698 + $0xc] sm:$0xf]
      %v711 = vunpack.c.l.b16 %v690
      %v712 = vunpack.c.l.b16 %v691
      %v713 = vunpack.c.l.b16 %v692
      %v714 = vunpack.c.l.b16 %v693
      %v715 = vunpack.c.l.b16 %v694
      %v716 = vunpack.c.l.b16 %v695
      %v717 = vunpack.c.l.b16 %v696
      %v718 = vunpack.c.l.b16 %v697
      %v719 = vpack.c.b16 %v712, %v711
      %v720 = vpack.c.b16 %v714, %v713
      %v721 = vpack.c.b16 %v716, %v715
      %v722 = vpack.c.b16 %v718, %v717
      %v727 = vunpack.c.l.b16 %v699
      %v728 = vunpack.c.l.b16 %v700
      %v729 = vunpack.c.l.b16 %v701
      %v730 = vunpack.c.l.b16 %v702
      %v731 = vpack.c.b16 %v728, %v727
      %v732 = vpack.c.b16 %v730, %v729
      %v736 = vsel %vm257, %v719, 0
      %v739 = vsel %vm257, %v720, 0
      %v742 = vsel %vm257, %v721, 0
      %v745 = vsel %vm257, %v722, 0
      %747 = vmatprep.subr.bf16.mxu0 0
      %748 = vmatpush1.bf16.msra.mxu0 0
      %749 = vmatprep.subr.bf16.mxu0 0
      %750 = vmatpush1.bf16.msra.mxu0 0
      %751 = vmatprep.subr.bf16.mxu0 0
      %752 = vmatpush1.bf16.msra.mxu0 0
      %753 = vmatprep.subr.bf16.mxu0 0
      %754 = vmatpush1.bf16.msra.mxu0 0
      %755 = vmatprep.subr.bf16.mxu0 0
      %756 = vmatpush1.bf16.msra.mxu0 0
      %757 = vmatprep.subr.bf16.mxu0 0
      %758 = vmatpush1.bf16.msra.mxu0 0
      %759 = vmatprep.subr.bf16.mxu0 0
      %760 = vmatpush1.bf16.msra.mxu0 %v732
      %761 = vmatprep.subr.bf16.mxu0 0
      %762 = vmatpush1.bf16.msra.mxu0 %v731
      %763 = vmatprep.subr.bf16.mxu0 0
      %764 = vmatpush2.bf16.msra.mxu0 0
      %765 = vmatprep.subr.bf16.mxu0 0
      %766 = vmatpush2.bf16.msra.mxu0 0
      %767 = vmatprep.subr.bf16.mxu0 0
      %768 = vmatpush2.bf16.msra.mxu0 0
      %769 = vmatprep.subr.bf16.mxu0 0
      %770 = vmatpush2.bf16.msra.mxu0 0
      %771 = vmatprep.subr.bf16.mxu0 0
      %772 = vmatpush2.bf16.msra.mxu0 0
      %773 = vmatprep.subr.bf16.mxu0 0
      %774 = vmatpush2.bf16.msra.mxu0 0
      %775 = vmatprep.subr.bf16.mxu0 0
      %776 = vmatpush2.bf16.msra.mxu0 0
      %777 = vmatprep.subr.bf16.mxu0 0
      %778 = vmatpush2.bf16.msra.mxu0 0
      %779 = vmatprep.mubr.bf16.mxu0 0
      %780 = vmatmul.mubr.bf16.gmra.mxu0 %v736
      %v781 = vpop.f32.mrf.mxu0
      %v782 = vadd.f32 0.0, %v781
      %v783 = vpop.f32.mrf.mxu0
      %v784 = vpop.f32.mrf.mxu0
      %v785 = vadd.f32 0.0, %v784
      %v786 = vpop.f32.mrf.mxu0
      %787 = vmatprep.mubr.bf16.mxu0 0
      %788 = vmatmul.mubr.bf16.gmra.mxu0 %v739
      %v789 = vpop.f32.mrf.mxu0
      %v790 = vadd.f32 0.0, %v789
      %v791 = vpop.f32.mrf.mxu0
      %v792 = vpop.f32.mrf.mxu0
      %v793 = vadd.f32 0.0, %v792
      %v794 = vpop.f32.mrf.mxu0
      %795 = vmatprep.mubr.bf16.mxu0 0
      %796 = vmatmul.mubr.bf16.gmra.mxu0 %v742
      %v797 = vpop.f32.mrf.mxu0
      %v798 = vadd.f32 0.0, %v797
      %v799 = vpop.f32.mrf.mxu0
      %v800 = vpop.f32.mrf.mxu0
      %v801 = vadd.f32 0.0, %v800
      %v802 = vpop.f32.mrf.mxu0
      %803 = vmatprep.mubr.bf16.mxu0 0
      %804 = vmatmul.mubr.bf16.gmra.mxu0 %v745
      %v805 = vpop.f32.mrf.mxu0
      %v806 = vadd.f32 0.0, %v805
      %v807 = vpop.f32.mrf.mxu0
      %v808 = vpop.f32.mrf.mxu0
      %v809 = vadd.f32 0.0, %v808
      %v810 = vpop.f32.mrf.mxu0
      %811 = vdwg.mxu0
      %v812 = vadd.f32 %v681, %v782
      %v813 = vadd.f32 %v682, %v785
      %v814 = vadd.f32 %v683, %v790
      %v815 = vadd.f32 %v684, %v793
      %v816 = vadd.f32 %v685, %v798
      %v817 = vadd.f32 %v686, %v801
      %v818 = vadd.f32 %v687, %v806
      %v819 = vadd.f32 %v688, %v809
      %s820 = scalar_lea.vmem %s192, 24
      %v821 = vld [vmem:[%s820] sm:$0xf]
      %v822 = vld [vmem:[%s820 + $0x20] sm:$0xf]
      %v823 = vld [vmem:[%s820 + $0x40] sm:$0xf]
      %v824 = vld [vmem:[%s820 + $0x60] sm:$0xf]
      %v825 = vld [vmem:[%s820 + $0x80] sm:$0xf]
      %v826 = vld [vmem:[%s820 + $0xa0] sm:$0xf]
      %v827 = vld [vmem:[%s820 + $0xc0] sm:$0xf]
      %v828 = vld [vmem:[%s820 + $0xe0] sm:$0xf]
      %s829 = scalar_lea.vmem %s1, 64
      %v830 = vld [vmem:[%s829] sm:$0xf]
      %v831 = vld [vmem:[%s829 + $0x4] sm:$0xf]
      %v832 = vld [vmem:[%s829 + $0x8] sm:$0xf]
      %v833 = vld [vmem:[%s829 + $0xc] sm:$0xf]
      %v842 = vunpack.c.l.b16 %v821
      %v843 = vunpack.c.l.b16 %v822
      %v844 = vunpack.c.l.b16 %v823
      %v845 = vunpack.c.l.b16 %v824
      %v846 = vunpack.c.l.b16 %v825
      %v847 = vunpack.c.l.b16 %v826
      %v848 = vunpack.c.l.b16 %v827
      %v849 = vunpack.c.l.b16 %v828
      %v850 = vpack.c.b16 %v843, %v842
      %v851 = vpack.c.b16 %v845, %v844
      %v852 = vpack.c.b16 %v847, %v846
      %v853 = vpack.c.b16 %v849, %v848
      %v858 = vunpack.c.l.b16 %v830
      %v859 = vunpack.c.l.b16 %v831
      %v860 = vunpack.c.l.b16 %v832
      %v861 = vunpack.c.l.b16 %v833
      %v862 = vpack.c.b16 %v859, %v858
      %v863 = vpack.c.b16 %v861, %v860
      %v867 = vsel %vm257, %v850, 0
      %v870 = vsel %vm257, %v851, 0
      %v873 = vsel %vm257, %v852, 0
      %v876 = vsel %vm257, %v853, 0
      %878 = vmatprep.subr.bf16.mxu0 0
      %879 = vmatpush1.bf16.msra.mxu0 0
      %880 = vmatprep.subr.bf16.mxu0 0
      %881 = vmatpush1.bf16.msra.mxu0 0
      %882 = vmatprep.subr.bf16.mxu0 0
      %883 = vmatpush1.bf16.msra.mxu0 0
      %884 = vmatprep.subr.bf16.mxu0 0
      %885 = vmatpush1.bf16.msra.mxu0 0
      %886 = vmatprep.subr.bf16.mxu0 0
      %887 = vmatpush1.bf16.msra.mxu0 0
      %888 = vmatprep.subr.bf16.mxu0 0
      %889 = vmatpush1.bf16.msra.mxu0 0
      %890 = vmatprep.subr.bf16.mxu0 0
      %891 = vmatpush1.bf16.msra.mxu0 %v863
      %892 = vmatprep.subr.bf16.mxu0 0
      %893 = vmatpush1.bf16.msra.mxu0 %v862
      %894 = vmatprep.subr.bf16.mxu0 0
      %895 = vmatpush2.bf16.msra.mxu0 0
      %896 = vmatprep.subr.bf16.mxu0 0
      %897 = vmatpush2.bf16.msra.mxu0 0
      %898 = vmatprep.subr.bf16.mxu0 0
      %899 = vmatpush2.bf16.msra.mxu0 0
      %900 = vmatprep.subr.bf16.mxu0 0
      %901 = vmatpush2.bf16.msra.mxu0 0
      %902 = vmatprep.subr.bf16.mxu0 0
      %903 = vmatpush2.bf16.msra.mxu0 0
      %904 = vmatprep.subr.bf16.mxu0 0
      %905 = vmatpush2.bf16.msra.mxu0 0
      %906 = vmatprep.subr.bf16.mxu0 0
      %907 = vmatpush2.bf16.msra.mxu0 0
      %908 = vmatprep.subr.bf16.mxu0 0
      %909 = vmatpush2.bf16.msra.mxu0 0
      %910 = vmatprep.mubr.bf16.mxu0 0
      %911 = vmatmul.mubr.bf16.gmra.mxu0 %v867
      %v912 = vpop.f32.mrf.mxu0
      %v913 = vadd.f32 0.0, %v912
      %v914 = vpop.f32.mrf.mxu0
      %v915 = vpop.f32.mrf.mxu0
      %v916 = vadd.f32 0.0, %v915
      %v917 = vpop.f32.mrf.mxu0
      %918 = vmatprep.mubr.bf16.mxu0 0
      %919 = vmatmul.mubr.bf16.gmra.mxu0 %v870
      %v920 = vpop.f32.mrf.mxu0
      %v921 = vadd.f32 0.0, %v920
      %v922 = vpop.f32.mrf.mxu0
      %v923 = vpop.f32.mrf.mxu0
      %v924 = vadd.f32 0.0, %v923
      %v925 = vpop.f32.mrf.mxu0
      %926 = vmatprep.mubr.bf16.mxu0 0
      %927 = vmatmul.mubr.bf16.gmra.mxu0 %v873
      %v928 = vpop.f32.mrf.mxu0
      %v929 = vadd.f32 0.0, %v928
      %v930 = vpop.f32.mrf.mxu0
      %v931 = vpop.f32.mrf.mxu0
      %v932 = vadd.f32 0.0, %v931
      %v933 = vpop.f32.mrf.mxu0
      %934 = vmatprep.mubr.bf16.mxu0 0
      %935 = vmatmul.mubr.bf16.gmra.mxu0 %v876
      %v936 = vpop.f32.mrf.mxu0
      %v937 = vadd.f32 0.0, %v936
      %v938 = vpop.f32.mrf.mxu0
      %v939 = vpop.f32.mrf.mxu0
      %v940 = vadd.f32 0.0, %v939
      %v941 = vpop.f32.mrf.mxu0
      %942 = vdwg.mxu0
      %v943 = vadd.f32 %v812, %v913
      %v944 = vadd.f32 %v813, %v916
      %v945 = vadd.f32 %v814, %v921
      %v946 = vadd.f32 %v815, %v924
      %v947 = vadd.f32 %v816, %v929
      %v948 = vadd.f32 %v817, %v932
      %v949 = vadd.f32 %v818, %v937
      %v950 = vadd.f32 %v819, %v940
      %v951 = vld [vmem:[%s689] sm:$0xf]
      %v952 = vld [vmem:[%s689 + $0x4] sm:$0x1]
      %v953 = vld [vmem:[%s689 + $0x20] sm:$0xf]
      %v954 = vld [vmem:[%s689 + $0x24] sm:$0x1]
      %v955 = vld [vmem:[%s689 + $0x40] sm:$0xf]
      %v956 = vld [vmem:[%s689 + $0x44] sm:$0x1]
      %v957 = vld [vmem:[%s689 + $0x60] sm:$0xf]
      %v958 = vld [vmem:[%s689 + $0x64] sm:$0x1]
      %v959 = vld [vmem:[%s689 + $0x80] sm:$0xf]
      %v960 = vld [vmem:[%s689 + $0x84] sm:$0x1]
      %v961 = vld [vmem:[%s689 + $0xa0] sm:$0xf]
      %v962 = vld [vmem:[%s689 + $0xa4] sm:$0x1]
      %v963 = vld [vmem:[%s689 + $0xc0] sm:$0xf]
      %v964 = vld [vmem:[%s689 + $0xc4] sm:$0x1]
      %v965 = vld [vmem:[%s689 + $0xe0] sm:$0xf]
      %v966 = vld [vmem:[%s689 + $0xe4] sm:$0x1]
      %v968 = vshrl.u32 %v951, 16
      %v970 = vrot.slane %v968, 4
      %v971 = vshll.u32 %v951, 16
      %v973 = vrot.slane %v971, 5
      %v974 = vor.u32 %v970, %v973
      %v975 = vrot.slane %v974, 4
      %v977 = vshll.u32 %v952, 16
      %v979 = vrot.slane %v977, 5
      %v980 = vsel %vm462, %v975, %v979
      %v982 = vshrl.u32 %v953, 16
      %v984 = vrot.slane %v982, 4
      %v985 = vshll.u32 %v953, 16
      %v987 = vrot.slane %v985, 5
      %v988 = vor.u32 %v984, %v987
      %v989 = vrot.slane %v988, 4
      %v991 = vshll.u32 %v954, 16
      %v993 = vrot.slane %v991, 5
      %v994 = vsel %vm462, %v989, %v993
      %v996 = vshrl.u32 %v955, 16
      %v998 = vrot.slane %v996, 4
      %v999 = vshll.u32 %v955, 16
      %v1001 = vrot.slane %v999, 5
      %v1002 = vor.u32 %v998, %v1001
      %v1003 = vrot.slane %v1002, 4
      %v1005 = vshll.u32 %v956, 16
      %v1007 = vrot.slane %v1005, 5
      %v1008 = vsel %vm462, %v1003, %v1007
      %v1010 = vshrl.u32 %v957, 16
      %v1012 = vrot.slane %v1010, 4
      %v1013 = vshll.u32 %v957, 16
      %v1015 = vrot.slane %v1013, 5
      %v1016 = vor.u32 %v1012, %v1015
      %v1017 = vrot.slane %v1016, 4
      %v1019 = vshll.u32 %v958, 16
      %v1021 = vrot.slane %v1019, 5
      %v1022 = vsel %vm462, %v1017, %v1021
      %v1024 = vshrl.u32 %v959, 16
      %v1026 = vrot.slane %v1024, 4
      %v1027 = vshll.u32 %v959, 16
      %v1029 = vrot.slane %v1027, 5
      %v1030 = vor.u32 %v1026, %v1029
      %v1031 = vrot.slane %v1030, 4
      %v1033 = vshll.u32 %v960, 16
      %v1035 = vrot.slane %v1033, 5
      %v1036 = vsel %vm462, %v1031, %v1035
      %v1038 = vshrl.u32 %v961, 16
      %v1040 = vrot.slane %v1038, 4
      %v1041 = vshll.u32 %v961, 16
      %v1043 = vrot.slane %v1041, 5
      %v1044 = vor.u32 %v1040, %v1043
      %v1045 = vrot.slane %v1044, 4
      %v1047 = vshll.u32 %v962, 16
      %v1049 = vrot.slane %v1047, 5
      %v1050 = vsel %vm462, %v1045, %v1049
      %v1052 = vshrl.u32 %v963, 16
      %v1054 = vrot.slane %v1052, 4
      %v1055 = vshll.u32 %v963, 16
      %v1057 = vrot.slane %v1055, 5
      %v1058 = vor.u32 %v1054, %v1057
      %v1059 = vrot.slane %v1058, 4
      %v1061 = vshll.u32 %v964, 16
      %v1063 = vrot.slane %v1061, 5
      %v1064 = vsel %vm462, %v1059, %v1063
      %v1066 = vshrl.u32 %v965, 16
      %v1068 = vrot.slane %v1066, 4
      %v1069 = vshll.u32 %v965, 16
      %v1071 = vrot.slane %v1069, 5
      %v1072 = vor.u32 %v1068, %v1071
      %v1073 = vrot.slane %v1072, 4
      %v1075 = vshll.u32 %v966, 16
      %v1077 = vrot.slane %v1075, 5
      %v1078 = vsel %vm462, %v1073, %v1077
      %s1079 = scalar_lea.vmem %s1, 80
      %v1080 = vld [vmem:[%s1079] sm:$0xf]
      %v1081 = vld [vmem:[%s1079 + $0x4] sm:$0xf]
      %v1082 = vld [vmem:[%s1079 + $0x8] sm:$0xf]
      %v1083 = vld [vmem:[%s1079 + $0xc] sm:$0xf]
      %v1084 = vunpack.c.l.b16 %v980
      %v1085 = vunpack.c.l.b16 %v994
      %v1086 = vunpack.c.l.b16 %v1008
      %v1087 = vunpack.c.l.b16 %v1022
      %v1088 = vunpack.c.l.b16 %v1036
      %v1089 = vunpack.c.l.b16 %v1050
      %v1090 = vunpack.c.l.b16 %v1064
      %v1091 = vunpack.c.l.b16 %v1078
      %v1092 = vpack.c.b16 %v1085, %v1084
      %v1093 = vpack.c.b16 %v1087, %v1086
      %v1094 = vpack.c.b16 %v1089, %v1088
      %v1095 = vpack.c.b16 %v1091, %v1090
      %v1100 = vunpack.c.l.b16 %v1080
      %v1101 = vunpack.c.l.b16 %v1081
      %v1102 = vunpack.c.l.b16 %v1082
      %v1103 = vunpack.c.l.b16 %v1083
      %v1104 = vpack.c.b16 %v1101, %v1100
      %v1105 = vpack.c.b16 %v1103, %v1102
      %v1109 = vsel %vm257, %v1092, 0
      %v1112 = vsel %vm257, %v1093, 0
      %v1115 = vsel %vm257, %v1094, 0
      %v1118 = vsel %vm257, %v1095, 0
      %1120 = vmatprep.subr.bf16.mxu0 0
      %1121 = vmatpush1.bf16.msra.mxu0 0
      %1122 = vmatprep.subr.bf16.mxu0 0
      %1123 = vmatpush1.bf16.msra.mxu0 0
      %1124 = vmatprep.subr.bf16.mxu0 0
      %1125 = vmatpush1.bf16.msra.mxu0 0
      %1126 = vmatprep.subr.bf16.mxu0 0
      %1127 = vmatpush1.bf16.msra.mxu0 0
      %1128 = vmatprep.subr.bf16.mxu0 0
      %1129 = vmatpush1.bf16.msra.mxu0 0
      %1130 = vmatprep.subr.bf16.mxu0 0
      %1131 = vmatpush1.bf16.msra.mxu0 0
      %1132 = vmatprep.subr.bf16.mxu0 0
      %1133 = vmatpush1.bf16.msra.mxu0 %v1105
      %1134 = vmatprep.subr.bf16.mxu0 0
      %1135 = vmatpush1.bf16.msra.mxu0 %v1104
      %1136 = vmatprep.subr.bf16.mxu0 0
      %1137 = vmatpush2.bf16.msra.mxu0 0
      %1138 = vmatprep.subr.bf16.mxu0 0
      %1139 = vmatpush2.bf16.msra.mxu0 0
      %1140 = vmatprep.subr.bf16.mxu0 0
      %1141 = vmatpush2.bf16.msra.mxu0 0
      %1142 = vmatprep.subr.bf16.mxu0 0
      %1143 = vmatpush2.bf16.msra.mxu0 0
      %1144 = vmatprep.subr.bf16.mxu0 0
      %1145 = vmatpush2.bf16.msra.mxu0 0
      %1146 = vmatprep.subr.bf16.mxu0 0
      %1147 = vmatpush2.bf16.msra.mxu0 0
      %1148 = vmatprep.subr.bf16.mxu0 0
      %1149 = vmatpush2.bf16.msra.mxu0 0
      %1150 = vmatprep.subr.bf16.mxu0 0
      %1151 = vmatpush2.bf16.msra.mxu0 0
      %1152 = vmatprep.mubr.bf16.mxu0 0
      %1153 = vmatmul.mubr.bf16.gmra.mxu0 %v1109
      %v1154 = vpop.f32.mrf.mxu0
      %v1155 = vadd.f32 0.0, %v1154
      %v1156 = vpop.f32.mrf.mxu0
      %v1157 = vpop.f32.mrf.mxu0
      %v1158 = vadd.f32 0.0, %v1157
      %v1159 = vpop.f32.mrf.mxu0
      %1160 = vmatprep.mubr.bf16.mxu0 0
      %1161 = vmatmul.mubr.bf16.gmra.mxu0 %v1112
      %v1162 = vpop.f32.mrf.mxu0
      %v1163 = vadd.f32 0.0, %v1162
      %v1164 = vpop.f32.mrf.mxu0
      %v1165 = vpop.f32.mrf.mxu0
      %v1166 = vadd.f32 0.0, %v1165
      %v1167 = vpop.f32.mrf.mxu0
      %1168 = vmatprep.mubr.bf16.mxu0 0
      %1169 = vmatmul.mubr.bf16.gmra.mxu0 %v1115
      %v1170 = vpop.f32.mrf.mxu0
      %v1171 = vadd.f32 0.0, %v1170
      %v1172 = vpop.f32.mrf.mxu0
      %v1173 = vpop.f32.mrf.mxu0
      %v1174 = vadd.f32 0.0, %v1173
      %v1175 = vpop.f32.mrf.mxu0
      %1176 = vmatprep.mubr.bf16.mxu0 0
      %1177 = vmatmul.mubr.bf16.gmra.mxu0 %v1118
      %v1178 = vpop.f32.mrf.mxu0
      %v1179 = vadd.f32 0.0, %v1178
      %v1180 = vpop.f32.mrf.mxu0
      %v1181 = vpop.f32.mrf.mxu0
      %v1182 = vadd.f32 0.0, %v1181
      %v1183 = vpop.f32.mrf.mxu0
      %1184 = vdwg.mxu0
      %v1185 = vadd.f32 %v943, %v1155
      %v1186 = vadd.f32 %v944, %v1158
      %v1187 = vadd.f32 %v945, %v1163
      %v1188 = vadd.f32 %v946, %v1166
      %v1189 = vadd.f32 %v947, %v1171
      %v1190 = vadd.f32 %v948, %v1174
      %v1191 = vadd.f32 %v949, %v1179
      %v1192 = vadd.f32 %v950, %v1182
      %s1193 = scalar_lea.vmem %s192, 32
      %v1194 = vld [vmem:[%s1193] sm:$0xf]
      %v1195 = vld [vmem:[%s1193 + $0x20] sm:$0xf]
      %v1196 = vld [vmem:[%s1193 + $0x40] sm:$0xf]
      %v1197 = vld [vmem:[%s1193 + $0x60] sm:$0xf]
      %v1198 = vld [vmem:[%s1193 + $0x80] sm:$0xf]
      %v1199 = vld [vmem:[%s1193 + $0xa0] sm:$0xf]
      %v1200 = vld [vmem:[%s1193 + $0xc0] sm:$0xf]
      %v1201 = vld [vmem:[%s1193 + $0xe0] sm:$0xf]
      %s1202 = scalar_lea.vmem %s1, 96
      %v1203 = vld [vmem:[%s1202] sm:$0xf]
      %v1204 = vld [vmem:[%s1202 + $0x4] sm:$0xf]
      %v1205 = vld [vmem:[%s1202 + $0x8] sm:$0xf]
      %v1206 = vld [vmem:[%s1202 + $0xc] sm:$0xf]
      %v1215 = vunpack.c.l.b16 %v1194
      %v1216 = vunpack.c.l.b16 %v1195
      %v1217 = vunpack.c.l.b16 %v1196
      %v1218 = vunpack.c.l.b16 %v1197
      %v1219 = vunpack.c.l.b16 %v1198
      %v1220 = vunpack.c.l.b16 %v1199
      %v1221 = vunpack.c.l.b16 %v1200
      %v1222 = vunpack.c.l.b16 %v1201
      %v1223 = vpack.c.b16 %v1216, %v1215
      %v1224 = vpack.c.b16 %v1218, %v1217
      %v1225 = vpack.c.b16 %v1220, %v1219
      %v1226 = vpack.c.b16 %v1222, %v1221
      %v1231 = vunpack.c.l.b16 %v1203
      %v1232 = vunpack.c.l.b16 %v1204
      %v1233 = vunpack.c.l.b16 %v1205
      %v1234 = vunpack.c.l.b16 %v1206
      %v1235 = vpack.c.b16 %v1232, %v1231
      %v1236 = vpack.c.b16 %v1234, %v1233
      %v1240 = vsel %vm257, %v1223, 0
      %v1243 = vsel %vm257, %v1224, 0
      %v1246 = vsel %vm257, %v1225, 0
      %v1249 = vsel %vm257, %v1226, 0
      %1251 = vmatprep.subr.bf16.mxu0 0
      %1252 = vmatpush1.bf16.msra.mxu0 0
      %1253 = vmatprep.subr.bf16.mxu0 0
      %1254 = vmatpush1.bf16.msra.mxu0 0
      %1255 = vmatprep.subr.bf16.mxu0 0
      %1256 = vmatpush1.bf16.msra.mxu0 0
      %1257 = vmatprep.subr.bf16.mxu0 0
      %1258 = vmatpush1.bf16.msra.mxu0 0
      %1259 = vmatprep.subr.bf16.mxu0 0
      %1260 = vmatpush1.bf16.msra.mxu0 0
      %1261 = vmatprep.subr.bf16.mxu0 0
      %1262 = vmatpush1.bf16.msra.mxu0 0
      %1263 = vmatprep.subr.bf16.mxu0 0
      %1264 = vmatpush1.bf16.msra.mxu0 %v1236
      %1265 = vmatprep.subr.bf16.mxu0 0
      %1266 = vmatpush1.bf16.msra.mxu0 %v1235
      %1267 = vmatprep.subr.bf16.mxu0 0
      %1268 = vmatpush2.bf16.msra.mxu0 0
      %1269 = vmatprep.subr.bf16.mxu0 0
      %1270 = vmatpush2.bf16.msra.mxu0 0
      %1271 = vmatprep.subr.bf16.mxu0 0
      %1272 = vmatpush2.bf16.msra.mxu0 0
      %1273 = vmatprep.subr.bf16.mxu0 0
      %1274 = vmatpush2.bf16.msra.mxu0 0
      %1275 = vmatprep.subr.bf16.mxu0 0
      %1276 = vmatpush2.bf16.msra.mxu0 0
      %1277 = vmatprep.subr.bf16.mxu0 0
      %1278 = vmatpush2.bf16.msra.mxu0 0
      %1279 = vmatprep.subr.bf16.mxu0 0
      %1280 = vmatpush2.bf16.msra.mxu0 0
      %1281 = vmatprep.subr.bf16.mxu0 0
      %1282 = vmatpush2.bf16.msra.mxu0 0
      %1283 = vmatprep.mubr.bf16.mxu0 0
      %1284 = vmatmul.mubr.bf16.gmra.mxu0 %v1240
      %v1285 = vpop.f32.mrf.mxu0
      %v1286 = vadd.f32 0.0, %v1285
      %v1287 = vpop.f32.mrf.mxu0
      %v1288 = vpop.f32.mrf.mxu0
      %v1289 = vadd.f32 0.0, %v1288
      %v1290 = vpop.f32.mrf.mxu0
      %1291 = vmatprep.mubr.bf16.mxu0 0
      %1292 = vmatmul.mubr.bf16.gmra.mxu0 %v1243
      %v1293 = vpop.f32.mrf.mxu0
      %v1294 = vadd.f32 0.0, %v1293
      %v1295 = vpop.f32.mrf.mxu0
      %v1296 = vpop.f32.mrf.mxu0
      %v1297 = vadd.f32 0.0, %v1296
      %v1298 = vpop.f32.mrf.mxu0
      %1299 = vmatprep.mubr.bf16.mxu0 0
      %1300 = vmatmul.mubr.bf16.gmra.mxu0 %v1246
      %v1301 = vpop.f32.mrf.mxu0
      %v1302 = vadd.f32 0.0, %v1301
      %v1303 = vpop.f32.mrf.mxu0
      %v1304 = vpop.f32.mrf.mxu0
      %v1305 = vadd.f32 0.0, %v1304
      %v1306 = vpop.f32.mrf.mxu0
      %1307 = vmatprep.mubr.bf16.mxu0 0
      %1308 = vmatmul.mubr.bf16.gmra.mxu0 %v1249
      %v1309 = vpop.f32.mrf.mxu0
      %v1310 = vadd.f32 0.0, %v1309
      %v1311 = vpop.f32.mrf.mxu0
      %v1312 = vpop.f32.mrf.mxu0
      %v1313 = vadd.f32 0.0, %v1312
      %v1314 = vpop.f32.mrf.mxu0
      %1315 = vdwg.mxu0
      %v1316 = vadd.f32 %v1185, %v1286
      %v1317 = vadd.f32 %v1186, %v1289
      %v1318 = vadd.f32 %v1187, %v1294
      %v1319 = vadd.f32 %v1188, %v1297
      %v1320 = vadd.f32 %v1189, %v1302
      %v1321 = vadd.f32 %v1190, %v1305
      %v1322 = vadd.f32 %v1191, %v1310
      %v1323 = vadd.f32 %v1192, %v1313
      %s1324 = scalar_lea.vmem %s192, 40
      %v1325 = vld [vmem:[%s1324] sm:$0xf]
      %v1326 = vld [vmem:[%s1324 + $0x20] sm:$0xf]
      %v1327 = vld [vmem:[%s1324 + $0x40] sm:$0xf]
      %v1328 = vld [vmem:[%s1324 + $0x60] sm:$0xf]
      %v1329 = vld [vmem:[%s1324 + $0x80] sm:$0xf]
      %v1330 = vld [vmem:[%s1324 + $0xa0] sm:$0xf]
      %v1331 = vld [vmem:[%s1324 + $0xc0] sm:$0xf]
      %v1332 = vld [vmem:[%s1324 + $0xe0] sm:$0xf]
      %s1333 = scalar_lea.vmem %s1, 112
      %v1334 = vld [vmem:[%s1333] sm:$0xf]
      %v1335 = vld [vmem:[%s1333 + $0x4] sm:$0xf]
      %v1336 = vld [vmem:[%s1333 + $0x8] sm:$0xf]
      %v1337 = vld [vmem:[%s1333 + $0xc] sm:$0xf]
      %v1346 = vunpack.c.l.b16 %v1325
      %v1347 = vunpack.c.l.b16 %v1326
      %v1348 = vunpack.c.l.b16 %v1327
      %v1349 = vunpack.c.l.b16 %v1328
      %v1350 = vunpack.c.l.b16 %v1329
      %v1351 = vunpack.c.l.b16 %v1330
      %v1352 = vunpack.c.l.b16 %v1331
      %v1353 = vunpack.c.l.b16 %v1332
      %v1354 = vpack.c.b16 %v1347, %v1346
      %v1355 = vpack.c.b16 %v1349, %v1348
      %v1356 = vpack.c.b16 %v1351, %v1350
      %v1357 = vpack.c.b16 %v1353, %v1352
      %v1362 = vunpack.c.l.b16 %v1334
      %v1363 = vunpack.c.l.b16 %v1335
      %v1364 = vunpack.c.l.b16 %v1336
      %v1365 = vunpack.c.l.b16 %v1337
      %v1366 = vpack.c.b16 %v1363, %v1362
      %v1367 = vpack.c.b16 %v1365, %v1364
      %v1371 = vsel %vm257, %v1354, 0
      %v1374 = vsel %vm257, %v1355, 0
      %v1377 = vsel %vm257, %v1356, 0
      %v1380 = vsel %vm257, %v1357, 0
      %1382 = vmatprep.subr.bf16.mxu0 0
      %1383 = vmatpush1.bf16.msra.mxu0 0
      %1384 = vmatprep.subr.bf16.mxu0 0
      %1385 = vmatpush1.bf16.msra.mxu0 0
      %1386 = vmatprep.subr.bf16.mxu0 0
      %1387 = vmatpush1.bf16.msra.mxu0 0
      %1388 = vmatprep.subr.bf16.mxu0 0
      %1389 = vmatpush1.bf16.msra.mxu0 0
      %1390 = vmatprep.subr.bf16.mxu0 0
      %1391 = vmatpush1.bf16.msra.mxu0 0
      %1392 = vmatprep.subr.bf16.mxu0 0
      %1393 = vmatpush1.bf16.msra.mxu0 0
      %1394 = vmatprep.subr.bf16.mxu0 0
      %1395 = vmatpush1.bf16.msra.mxu0 %v1367
      %1396 = vmatprep.subr.bf16.mxu0 0
      %1397 = vmatpush1.bf16.msra.mxu0 %v1366
      %1398 = vmatprep.subr.bf16.mxu0 0
      %1399 = vmatpush2.bf16.msra.mxu0 0
      %1400 = vmatprep.subr.bf16.mxu0 0
      %1401 = vmatpush2.bf16.msra.mxu0 0
      %1402 = vmatprep.subr.bf16.mxu0 0
      %1403 = vmatpush2.bf16.msra.mxu0 0
      %1404 = vmatprep.subr.bf16.mxu0 0
      %1405 = vmatpush2.bf16.msra.mxu0 0
      %1406 = vmatprep.subr.bf16.mxu0 0
      %1407 = vmatpush2.bf16.msra.mxu0 0
      %1408 = vmatprep.subr.bf16.mxu0 0
      %1409 = vmatpush2.bf16.msra.mxu0 0
      %1410 = vmatprep.subr.bf16.mxu0 0
      %1411 = vmatpush2.bf16.msra.mxu0 0
      %1412 = vmatprep.subr.bf16.mxu0 0
      %1413 = vmatpush2.bf16.msra.mxu0 0
      %1414 = vmatprep.mubr.bf16.mxu0 0
      %1415 = vmatmul.mubr.bf16.gmra.mxu0 %v1371
      %v1416 = vpop.f32.mrf.mxu0
      %v1417 = vadd.f32 0.0, %v1416
      %v1418 = vpop.f32.mrf.mxu0
      %v1419 = vpop.f32.mrf.mxu0
      %v1420 = vadd.f32 0.0, %v1419
      %v1421 = vpop.f32.mrf.mxu0
      %1422 = vmatprep.mubr.bf16.mxu0 0
      %1423 = vmatmul.mubr.bf16.gmra.mxu0 %v1374
      %v1424 = vpop.f32.mrf.mxu0
      %v1425 = vadd.f32 0.0, %v1424
      %v1426 = vpop.f32.mrf.mxu0
      %v1427 = vpop.f32.mrf.mxu0
      %v1428 = vadd.f32 0.0, %v1427
      %v1429 = vpop.f32.mrf.mxu0
      %1430 = vmatprep.mubr.bf16.mxu0 0
      %1431 = vmatmul.mubr.bf16.gmra.mxu0 %v1377
      %v1432 = vpop.f32.mrf.mxu0
      %v1433 = vadd.f32 0.0, %v1432
      %v1434 = vpop.f32.mrf.mxu0
      %v1435 = vpop.f32.mrf.mxu0
      %v1436 = vadd.f32 0.0, %v1435
      %v1437 = vpop.f32.mrf.mxu0
      %1438 = vmatprep.mubr.bf16.mxu0 0
      %1439 = vmatmul.mubr.bf16.gmra.mxu0 %v1380
      %v1440 = vpop.f32.mrf.mxu0
      %v1441 = vadd.f32 0.0, %v1440
      %v1442 = vpop.f32.mrf.mxu0
      %v1443 = vpop.f32.mrf.mxu0
      %v1444 = vadd.f32 0.0, %v1443
      %v1445 = vpop.f32.mrf.mxu0
      %1446 = vdwg.mxu0
      %v1447 = vadd.f32 %v1316, %v1417
      %v1448 = vadd.f32 %v1317, %v1420
      %v1449 = vadd.f32 %v1318, %v1425
      %v1450 = vadd.f32 %v1319, %v1428
      %v1451 = vadd.f32 %v1320, %v1433
      %v1452 = vadd.f32 %v1321, %v1436
      %v1453 = vadd.f32 %v1322, %v1441
      %v1454 = vadd.f32 %v1323, %v1444
      %v1455 = vld [vmem:[%s1193] sm:$0xf]
      %v1456 = vld [vmem:[%s1193 + $0x4] sm:$0x1]
      %v1457 = vld [vmem:[%s1193 + $0x20] sm:$0xf]
      %v1458 = vld [vmem:[%s1193 + $0x24] sm:$0x1]
      %v1459 = vld [vmem:[%s1193 + $0x40] sm:$0xf]
      %v1460 = vld [vmem:[%s1193 + $0x44] sm:$0x1]
      %v1461 = vld [vmem:[%s1193 + $0x60] sm:$0xf]
      %v1462 = vld [vmem:[%s1193 + $0x64] sm:$0x1]
      %v1463 = vld [vmem:[%s1193 + $0x80] sm:$0xf]
      %v1464 = vld [vmem:[%s1193 + $0x84] sm:$0x1]
      %v1465 = vld [vmem:[%s1193 + $0xa0] sm:$0xf]
      %v1466 = vld [vmem:[%s1193 + $0xa4] sm:$0x1]
      %v1467 = vld [vmem:[%s1193 + $0xc0] sm:$0xf]
      %v1468 = vld [vmem:[%s1193 + $0xc4] sm:$0x1]
      %v1469 = vld [vmem:[%s1193 + $0xe0] sm:$0xf]
      %v1470 = vld [vmem:[%s1193 + $0xe4] sm:$0x1]
      %v1472 = vshrl.u32 %v1455, 16
      %v1474 = vrot.slane %v1472, 4
      %v1475 = vshll.u32 %v1455, 16
      %v1477 = vrot.slane %v1475, 5
      %v1478 = vor.u32 %v1474, %v1477
      %v1479 = vrot.slane %v1478, 4
      %v1481 = vshll.u32 %v1456, 16
      %v1483 = vrot.slane %v1481, 5
      %v1484 = vsel %vm462, %v1479, %v1483
      %v1486 = vshrl.u32 %v1457, 16
      %v1488 = vrot.slane %v1486, 4
      %v1489 = vshll.u32 %v1457, 16
      %v1491 = vrot.slane %v1489, 5
      %v1492 = vor.u32 %v1488, %v1491
      %v1493 = vrot.slane %v1492, 4
      %v1495 = vshll.u32 %v1458, 16
      %v1497 = vrot.slane %v1495, 5
      %v1498 = vsel %vm462, %v1493, %v1497
      %v1500 = vshrl.u32 %v1459, 16
      %v1502 = vrot.slane %v1500, 4
      %v1503 = vshll.u32 %v1459, 16
      %v1505 = vrot.slane %v1503, 5
      %v1506 = vor.u32 %v1502, %v1505
      %v1507 = vrot.slane %v1506, 4
      %v1509 = vshll.u32 %v1460, 16
      %v1511 = vrot.slane %v1509, 5
      %v1512 = vsel %vm462, %v1507, %v1511
      %v1514 = vshrl.u32 %v1461, 16
      %v1516 = vrot.slane %v1514, 4
      %v1517 = vshll.u32 %v1461, 16
      %v1519 = vrot.slane %v1517, 5
      %v1520 = vor.u32 %v1516, %v1519
      %v1521 = vrot.slane %v1520, 4
      %v1523 = vshll.u32 %v1462, 16
      %v1525 = vrot.slane %v1523, 5
      %v1526 = vsel %vm462, %v1521, %v1525
      %v1528 = vshrl.u32 %v1463, 16
      %v1530 = vrot.slane %v1528, 4
      %v1531 = vshll.u32 %v1463, 16
      %v1533 = vrot.slane %v1531, 5
      %v1534 = vor.u32 %v1530, %v1533
      %v1535 = vrot.slane %v1534, 4
      %v1537 = vshll.u32 %v1464, 16
      %v1539 = vrot.slane %v1537, 5
      %v1540 = vsel %vm462, %v1535, %v1539
      %v1542 = vshrl.u32 %v1465, 16
      %v1544 = vrot.slane %v1542, 4
      %v1545 = vshll.u32 %v1465, 16
      %v1547 = vrot.slane %v1545, 5
      %v1548 = vor.u32 %v1544, %v1547
      %v1549 = vrot.slane %v1548, 4
      %v1551 = vshll.u32 %v1466, 16
      %v1553 = vrot.slane %v1551, 5
      %v1554 = vsel %vm462, %v1549, %v1553
      %v1556 = vshrl.u32 %v1467, 16
      %v1558 = vrot.slane %v1556, 4
      %v1559 = vshll.u32 %v1467, 16
      %v1561 = vrot.slane %v1559, 5
      %v1562 = vor.u32 %v1558, %v1561
      %v1563 = vrot.slane %v1562, 4
      %v1565 = vshll.u32 %v1468, 16
      %v1567 = vrot.slane %v1565, 5
      %v1568 = vsel %vm462, %v1563, %v1567
      %v1570 = vshrl.u32 %v1469, 16
      %v1572 = vrot.slane %v1570, 4
      %v1573 = vshll.u32 %v1469, 16
      %v1575 = vrot.slane %v1573, 5
      %v1576 = vor.u32 %v1572, %v1575
      %v1577 = vrot.slane %v1576, 4
      %v1579 = vshll.u32 %v1470, 16
      %v1581 = vrot.slane %v1579, 5
      %v1582 = vsel %vm462, %v1577, %v1581
      %s1583 = scalar_lea.vmem %s1, 128
      %v1584 = vld [vmem:[%s1583] sm:$0xf]
      %v1585 = vld [vmem:[%s1583 + $0x4] sm:$0xf]
      %v1586 = vld [vmem:[%s1583 + $0x8] sm:$0xf]
      %v1587 = vld [vmem:[%s1583 + $0xc] sm:$0xf]
      %v1588 = vunpack.c.l.b16 %v1484
      %v1589 = vunpack.c.l.b16 %v1498
      %v1590 = vunpack.c.l.b16 %v1512
      %v1591 = vunpack.c.l.b16 %v1526
      %v1592 = vunpack.c.l.b16 %v1540
      %v1593 = vunpack.c.l.b16 %v1554
      %v1594 = vunpack.c.l.b16 %v1568
      %v1595 = vunpack.c.l.b16 %v1582
      %v1596 = vpack.c.b16 %v1589, %v1588
      %v1597 = vpack.c.b16 %v1591, %v1590
      %v1598 = vpack.c.b16 %v1593, %v1592
      %v1599 = vpack.c.b16 %v1595, %v1594
      %v1604 = vunpack.c.l.b16 %v1584
      %v1605 = vunpack.c.l.b16 %v1585
      %v1606 = vunpack.c.l.b16 %v1586
      %v1607 = vunpack.c.l.b16 %v1587
      %v1608 = vpack.c.b16 %v1605, %v1604
      %v1609 = vpack.c.b16 %v1607, %v1606
      %v1613 = vsel %vm257, %v1596, 0
      %v1616 = vsel %vm257, %v1597, 0
      %v1619 = vsel %vm257, %v1598, 0
      %v1622 = vsel %vm257, %v1599, 0
      %1624 = vmatprep.subr.bf16.mxu0 0
      %1625 = vmatpush1.bf16.msra.mxu0 0
      %1626 = vmatprep.subr.bf16.mxu0 0
      %1627 = vmatpush1.bf16.msra.mxu0 0
      %1628 = vmatprep.subr.bf16.mxu0 0
      %1629 = vmatpush1.bf16.msra.mxu0 0
      %1630 = vmatprep.subr.bf16.mxu0 0
      %1631 = vmatpush1.bf16.msra.mxu0 0
      %1632 = vmatprep.subr.bf16.mxu0 0
      %1633 = vmatpush1.bf16.msra.mxu0 0
      %1634 = vmatprep.subr.bf16.mxu0 0
      %1635 = vmatpush1.bf16.msra.mxu0 0
      %1636 = vmatprep.subr.bf16.mxu0 0
      %1637 = vmatpush1.bf16.msra.mxu0 %v1609
      %1638 = vmatprep.subr.bf16.mxu0 0
      %1639 = vmatpush1.bf16.msra.mxu0 %v1608
      %1640 = vmatprep.subr.bf16.mxu0 0
      %1641 = vmatpush2.bf16.msra.mxu0 0
      %1642 = vmatprep.subr.bf16.mxu0 0
      %1643 = vmatpush2.bf16.msra.mxu0 0
      %1644 = vmatprep.subr.bf16.mxu0 0
      %1645 = vmatpush2.bf16.msra.mxu0 0
      %1646 = vmatprep.subr.bf16.mxu0 0
      %1647 = vmatpush2.bf16.msra.mxu0 0
      %1648 = vmatprep.subr.bf16.mxu0 0
      %1649 = vmatpush2.bf16.msra.mxu0 0
      %1650 = vmatprep.subr.bf16.mxu0 0
      %1651 = vmatpush2.bf16.msra.mxu0 0
      %1652 = vmatprep.subr.bf16.mxu0 0
      %1653 = vmatpush2.bf16.msra.mxu0 0
      %1654 = vmatprep.subr.bf16.mxu0 0
      %1655 = vmatpush2.bf16.msra.mxu0 0
      %1656 = vmatprep.mubr.bf16.mxu0 0
      %1657 = vmatmul.mubr.bf16.gmra.mxu0 %v1613
      %v1658 = vpop.f32.mrf.mxu0
      %v1659 = vadd.f32 0.0, %v1658
      %v1660 = vpop.f32.mrf.mxu0
      %v1661 = vpop.f32.mrf.mxu0
      %v1662 = vadd.f32 0.0, %v1661
      %v1663 = vpop.f32.mrf.mxu0
      %1664 = vmatprep.mubr.bf16.mxu0 0
      %1665 = vmatmul.mubr.bf16.gmra.mxu0 %v1616
      %v1666 = vpop.f32.mrf.mxu0
      %v1667 = vadd.f32 0.0, %v1666
      %v1668 = vpop.f32.mrf.mxu0
      %v1669 = vpop.f32.mrf.mxu0
      %v1670 = vadd.f32 0.0, %v1669
      %v1671 = vpop.f32.mrf.mxu0
      %1672 = vmatprep.mubr.bf16.mxu0 0
      %1673 = vmatmul.mubr.bf16.gmra.mxu0 %v1619
      %v1674 = vpop.f32.mrf.mxu0
      %v1675 = vadd.f32 0.0, %v1674
      %v1676 = vpop.f32.mrf.mxu0
      %v1677 = vpop.f32.mrf.mxu0
      %v1678 = vadd.f32 0.0, %v1677
      %v1679 = vpop.f32.mrf.mxu0
      %1680 = vmatprep.mubr.bf16.mxu0 0
      %1681 = vmatmul.mubr.bf16.gmra.mxu0 %v1622
      %v1682 = vpop.f32.mrf.mxu0
      %v1683 = vadd.f32 0.0, %v1682
      %v1684 = vpop.f32.mrf.mxu0
      %v1685 = vpop.f32.mrf.mxu0
      %v1686 = vadd.f32 0.0, %v1685
      %v1687 = vpop.f32.mrf.mxu0
      %1688 = vdwg.mxu0
      %v1689 = vadd.f32 %v1447, %v1659
      %v1690 = vadd.f32 %v1448, %v1662
      %v1691 = vadd.f32 %v1449, %v1667
      %v1692 = vadd.f32 %v1450, %v1670
      %v1693 = vadd.f32 %v1451, %v1675
      %v1694 = vadd.f32 %v1452, %v1678
      %v1695 = vadd.f32 %v1453, %v1683
      %v1696 = vadd.f32 %v1454, %v1686
      %v1697 = vld [vmem:[%s2] sm:$0x1]
      %v1699 = vlaneseq
      %v1700 = vshrl.u32 %v1699, 7
      %v1701 = vsub.s32 0, %v1700
      %v1702 = vrot.slane %v1697, %v1701
      %v1704 = vmul.f32 %v1689, %v1702
      %v1705 = vmul.f32 %v1690, %v1702
      %v1706 = vmul.f32 %v1691, %v1702
      %v1707 = vmul.f32 %v1692, %v1702
      %v1708 = vmul.f32 %v1693, %v1702
      %v1709 = vmul.f32 %v1694, %v1702
      %v1710 = vmul.f32 %v1695, %v1702
      %v1711 = vmul.f32 %v1696, %v1702
      %v1712 = vld [vmem:[%s3] sm:$0x1]
      %v1714 = vlaneseq
      %v1715 = vshrl.u32 %v1714, 7
      %v1716 = vsub.s32 0, %v1715
      %v1717 = vrot.slane %v1712, %v1716
      %v1719 = vadd.f32 %v1704, %v1717
      %v1720 = vadd.f32 %v1705, %v1717
      %v1721 = vadd.f32 %v1706, %v1717
      %v1722 = vadd.f32 %v1707, %v1717
      %v1723 = vadd.f32 %v1708, %v1717
      %v1724 = vadd.f32 %v1709, %v1717
      %v1725 = vadd.f32 %v1710, %v1717
      %v1726 = vadd.f32 %v1711, %v1717
      %v1727 = vmax.f32 %v1719, 0.0
      %v1728 = vmax.f32 %v1720, 0.0
      %v1729 = vmax.f32 %v1721, 0.0
      %v1730 = vmax.f32 %v1722, 0.0
      %v1731 = vmax.f32 %v1723, 0.0
      %v1732 = vmax.f32 %v1724, 0.0
      %v1733 = vmax.f32 %v1725, 0.0
      %v1734 = vmax.f32 %v1726, 0.0
      %v1735 = vpack.c.bf16 %v1728, %v1727
      %v1736 = vpack.c.bf16 %v1730, %v1729
      %v1737 = vpack.c.bf16 %v1732, %v1731
      %v1738 = vpack.c.bf16 %v1734, %v1733
      %v1743 = vunpack.c.l.b16 %v1735
      %v1744 = vunpack.c.h.b16 %v1735
      %v1745 = vunpack.c.l.b16 %v1736
      %v1746 = vunpack.c.h.b16 %v1736
      %v1747 = vunpack.c.l.b16 %v1737
      %v1748 = vunpack.c.h.b16 %v1737
      %v1749 = vunpack.c.l.b16 %v1738
      %v1750 = vunpack.c.h.b16 %v1738
      %v1751 = vpack.c.b16 %v1743, %v1743
      %v1752 = vpack.c.b16 %v1744, %v1744
      %v1753 = vpack.c.b16 %v1745, %v1745
      %v1754 = vpack.c.b16 %v1746, %v1746
      %v1755 = vpack.c.b16 %v1747, %v1747
      %v1756 = vpack.c.b16 %v1748, %v1748
      %v1757 = vpack.c.b16 %v1749, %v1749
      %v1758 = vpack.c.b16 %v1750, %v1750
      %vm1767 = vcmask 257024
      %1768 = vst.msk [vmem:[%s197] sm:$0xf] %vm1767, %v1751
      %1769 = vst.msk [vmem:[%s197 + $0x4] sm:$0xf] %vm1767, %v1752
      %1770 = vst.msk [vmem:[%s197 + $0x8] sm:$0xf] %vm1767, %v1753
      %1771 = vst.msk [vmem:[%s197 + $0xc] sm:$0xf] %vm1767, %v1754
      %1772 = vst.msk [vmem:[%s197 + $0x10] sm:$0xf] %vm1767, %v1755
      %1773 = vst.msk [vmem:[%s197 + $0x14] sm:$0xf] %vm1767, %v1756
      %1774 = vst.msk [vmem:[%s197 + $0x18] sm:$0xf] %vm1767, %v1757
      %1775 = vst.msk [vmem:[%s197 + $0x1c] sm:$0xf] %vm1767, %v1758
      %p1776 = scmp.lt.s32.totalorder %s15, 1
      %s1777 = scalar_select %p1776, %s15, 1
      %s1778 = smul.addr %s1777, 8
      %s1779 = smul.addr %s1778, 4
      %s1780 = scalar_lea.vmem %s4, %s1779
      // Predicated region
      $region37: #{bottleneck_forward.5} parent=35 // pred_check
        %p1781 = pneg %p122
      $region38: #{bottleneck_forward.5} parent=35 // pred_check_branch
        %1783 = sbr.rel (%p1781) target = $region40
      $region39: #{bottleneck_forward.5} parent=35 // pred_region
        _
      $region40: #{bottleneck_forward.5} parent=35 // pred_fallthru
        _
    $region36: #{bottleneck_forward.5} parent=5 // pred_fallthru
      _
    %p1784 = scmp.le.s32.totalorder 2, %s10
    // Predicated region
    $region41: #{bottleneck_forward.5} parent=5 // pred_check
      %p1785 = pneg %p1784
    $region42: #{bottleneck_forward.5} parent=5 // pred_check_branch
      %1787 = sbr.rel (%p1785) target = $region44
    $region43: #{bottleneck_forward.5} parent=5 // pred_region
      %s1788 = ssub.s32 %s10, 2
      // Predicated region
      $region45: #{bottleneck_forward.5} parent=43 // pred_check
        %p1789 = pneg %p128
      $region46: #{bottleneck_forward.5} parent=43 // pred_check_branch
        %1791 = sbr.rel (%p1789) target = $region48
      $region47: #{bottleneck_forward.5} parent=43 // pred_region
        %p1792 = scmp.lt.s32.totalorder %s16, 1
        %s1793 = scalar_select %p1792, %s16, 1
        %s1794 = smul.addr %s1793, 8
        %s1795 = smul.addr %s1794, 4
        %s1796 = scalar_lea.vmem %s4, %s1795
      $region48: #{bottleneck_forward.5} parent=43 // pred_fallthru
        _
    $region44: #{bottleneck_forward.5} parent=5 // pred_fallthru
      _
  $region6: #{bottleneck_forward.5} parent=0 // loop_footer
    %s14 = sadd.s32 1, %s10
  $region7: #{bottleneck_forward.5} parent=0 // loop_footer_branch
    %9 = sbr.rel target = $region3
  $region8: #{bottleneck_forward.5} parent=0 // loop_exit
    _

</llo_original>
